<compile_context>
chip_gen: v7x
topology: tpu7x:2x2x1
jax: 0.10.0
libtpu: 0.0.40
codegen_flags: <defaults>
</compile_context>

<pallas_src>
import numpy as np

import jax
import jax.numpy as jnp
from jax import lax
from jax.experimental import pallas as pl
from jax.experimental.pallas import tpu as pltpu


# --------------------------- host-side weight prep -------------------------- #

def _conv_as_banded_mats(w, wi):
    """Pack an OIHW conv weight into shifted banded matmul matrices.

    Returns mats of shape (2, K, Ci*wi, Co*(wo//2)) where, for parity p and
    kernel row ki, (input slab row h+ki) @ mats[p, ki] accumulates the conv
    output row h restricted to even (p=0) / odd (p=1) output columns, laid out
    as [co*(wo//2) + q]  (wo = 2q + p).
    """
    co_n, ci_n, k, _ = w.shape
    wo = wi - k + 1
    q_n = wo // 2
    P, KI, CI, CO, KJ, Q = np.meshgrid(
        np.arange(2), np.arange(k), np.arange(ci_n), np.arange(co_n),
        np.arange(k), np.arange(q_n), indexing="ij")
    rows = CI * wi + 2 * Q + P + KJ          # input slab column index
    cols = CO * q_n + Q                       # output slab column index
    vals = w[CO, CI, KI, KJ]                  # gather conv taps
    mats = jnp.zeros((2, k, ci_n * wi, co_n * q_n), jnp.float32)
    return mats.at[P, KI, rows, cols].set(vals)


def _pool_row_select(h):
    """0/1 matrices (2, h//2, h) picking even / odd rows (H-direction pool)."""
    sel = np.zeros((2, h // 2, h), np.float32)
    sel[0, np.arange(h // 2), 2 * np.arange(h // 2)] = 1.0
    sel[1, np.arange(h // 2), 2 * np.arange(h // 2) + 1] = 1.0
    return jnp.asarray(sel)


def _fc1_permuted_rows(fc1_w):
    """Regroup fc1 rows (torch order c*25+h*5+w) into (h, c*5+w) blocks."""
    h, c, w = np.meshgrid(np.arange(5), np.arange(16), np.arange(5),
                          indexing="ij")
    src = (c * 25 + h * 5 + w).reshape(5, 80)
    return fc1_w[src]                         # (5, 80, 120)


def prepare_params(params):
    """One-time parameter prep (banded conv mats, bias rows, fc1 permute)."""
    bf16, f32 = jnp.bfloat16, jnp.float32
    m1 = _conv_as_banded_mats(params["conv1_w"], wi=32)   # padded 28+4
    m2 = _conv_as_banded_mats(params["conv2_w"], wi=14)
    return {
        "c1me": m1[0].astype(bf16), "c1mo": m1[1].astype(bf16),
        "c1b": jnp.repeat(params["conv1_b"], 14).reshape(1, 84).astype(f32),
        "s1": _pool_row_select(28),
        "c2me": m2[0].astype(bf16), "c2mo": m2[1].astype(bf16),
        "c2b": jnp.repeat(params["conv2_b"], 5).reshape(1, 80).astype(f32),
        "s2": _pool_row_select(10),
        "f1w": _fc1_permuted_rows(params["fc1_w"]).astype(bf16),
        "f1b": params["fc1_b"].reshape(1, 120).astype(f32),
        "f2w": params["fc2_w"].astype(bf16),
        "f2b": params["fc2_b"].reshape(1, 84).astype(f32),
        "f3w": params["fc3_w"].astype(bf16),
        "f3b": params["fc3_b"].reshape(1, 10).astype(f32),
    }


# ------------------------------ fused kernel -------------------------------- #

def _lenet_kernel(x_ref, c1me_ref, c1mo_ref, c1b_ref, s1_ref,
                  c2me_ref, c2mo_ref, c2b_ref, s2_ref,
                  f1w_ref, f1b_ref, f2w_ref, f2b_ref, f3w_ref, f3b_ref,
                  o_ref, x_s, p1_s, p2_s):
    f32, bf16 = jnp.float32, jnp.bfloat16
    K = 5

    # Stage this sample's padded 32x32 slab in VMEM for cheap row slicing.
    x_s[...] = x_ref[0]                                       # (32, 32) f32

    # ---- conv1 + ReLU + 2x2 maxpool (fully fused, MXU matmuls) ----
    acc_e = jnp.zeros((28, 84), f32)                          # even wo columns
    acc_o = jnp.zeros((28, 84), f32)                          # odd  wo columns
    for ki in range(K):
        rows = x_s[ki:ki + 28, :].astype(bf16)                # (28, 32)
        acc_e += jnp.dot(rows, c1me_ref[ki], preferred_element_type=f32)
        acc_o += jnp.dot(rows, c1mo_ref[ki], preferred_element_type=f32)
    m1 = jnp.maximum(jnp.maximum(acc_e, acc_o) + c1b_ref[...], 0.0)  # (28, 84)
    p1_s[...] = jnp.maximum(                                  # H-direction pool
        jnp.dot(s1_ref[0], m1, preferred_element_type=f32),
        jnp.dot(s1_ref[1], m1, preferred_element_type=f32))   # (14, 6*14)

    # ---- conv2 + ReLU + 2x2 maxpool ----
    acc_e = jnp.zeros((10, 80), f32)
    acc_o = jnp.zeros((10, 80), f32)
    for ki in range(K):
        rows = p1_s[ki:ki + 10, :].astype(bf16)               # (10, 84)
        acc_e += jnp.dot(rows, c2me_ref[ki], preferred_element_type=f32)
        acc_o += jnp.dot(rows, c2mo_ref[ki], preferred_element_type=f32)
    m2 = jnp.maximum(jnp.maximum(acc_e, acc_o) + c2b_ref[...], 0.0)  # (10, 80)
    p2_s[...] = jnp.maximum(
        jnp.dot(s2_ref[0], m2, preferred_element_type=f32),
        jnp.dot(s2_ref[1], m2, preferred_element_type=f32))   # (5, 16*5)

    # ---- classifier: fc1 accumulated over the 5 spatial rows, fc2, fc3 ----
    z = f1b_ref[...]                                          # (1, 120)
    for h in range(5):
        z = z + jnp.dot(p2_s[h:h + 1, :].astype(bf16), f1w_ref[h],
                        preferred_element_type=f32)
    z = jnp.maximum(z, 0.0)
    z = jnp.maximum(
        jnp.dot(z.astype(bf16), f2w_ref[...], preferred_element_type=f32)
        + f2b_ref[...], 0.0)                                  # (1, 84)
    out = (jnp.dot(z.astype(bf16), f3w_ref[...], preferred_element_type=f32)
           + f3b_ref[...])                                    # (1, 10)
    o_ref[0] = out.astype(o_ref.dtype)


def lenet_forward(prepped, x_nchw):
    """LeNet forward: one fused pallas_call, one grid step per sample."""
    N, C, H, W = x_nchw.shape
    assert (C, H, W) == (1, 28, 28)
    # Fold Conv2d(padding=2) into a cheap host-side zero pad of the input.
    x = jnp.pad(x_nchw[:, 0, :, :], ((0, 0), (2, 2), (2, 2)))  # (N, 32, 32)

    out = pl.pallas_call(
        _lenet_kernel,
        out_shape=jax.ShapeDtypeStruct((N, 1, 10), jnp.float32),
        grid=(N,),
        in_specs=[
            pl.BlockSpec((1, 32, 32), lambda n: (n, 0, 0)),    # input sample
            pl.BlockSpec((5, 32, 84), lambda n: (0, 0, 0)),    # conv1 even cols
            pl.BlockSpec((5, 32, 84), lambda n: (0, 0, 0)),    # conv1 odd cols
            pl.BlockSpec((1, 84), lambda n: (0, 0)),           # conv1 bias row
            pl.BlockSpec((2, 14, 28), lambda n: (0, 0, 0)),    # pool1 row select
            pl.BlockSpec((5, 84, 80), lambda n: (0, 0, 0)),    # conv2 even cols
            pl.BlockSpec((5, 84, 80), lambda n: (0, 0, 0)),    # conv2 odd cols
            pl.BlockSpec((1, 80), lambda n: (0, 0)),           # conv2 bias row
            pl.BlockSpec((2, 5, 10), lambda n: (0, 0, 0)),     # pool2 row select
            pl.BlockSpec((5, 80, 120), lambda n: (0, 0, 0)),   # fc1 (permuted)
            pl.BlockSpec((1, 120), lambda n: (0, 0)),
            pl.BlockSpec((120, 84), lambda n: (0, 0)),
            pl.BlockSpec((1, 84), lambda n: (0, 0)),
            pl.BlockSpec((84, 10), lambda n: (0, 0)),
            pl.BlockSpec((1, 10), lambda n: (0, 0)),
        ],
        out_specs=pl.BlockSpec((1, 1, 10), lambda n: (n, 0, 0)),
        scratch_shapes=[
            pltpu.VMEM((32, 32), jnp.float32),   # staged input slab
            pltpu.VMEM((14, 84), jnp.float32),   # pool1 output slab
            pltpu.VMEM((5, 80), jnp.float32),    # pool2 output slab
        ],
        compiler_params=pltpu.CompilerParams(
            dimension_semantics=("parallel",)),  # v7x: samples across both TCs
    )(x, prepped["c1me"], prepped["c1mo"], prepped["c1b"], prepped["s1"],
      prepped["c2me"], prepped["c2mo"], prepped["c2b"], prepped["s2"],
      prepped["f1w"], prepped["f1b"], prepped["f2w"], prepped["f2b"],
      prepped["f3w"], prepped["f3b"])
    return out.reshape(N, 10)


# ------------------------- pure-JAX reference (f32) ------------------------- #

def _reference_forward(params, x):
    dn = ("NCHW", "OIHW", "NCHW")
    y = lax.conv_general_dilated(x, params["conv1_w"], (1, 1),
                                 ((2, 2), (2, 2)), dimension_numbers=dn)
    y = jnp.maximum(y + params["conv1_b"][None, :, None, None], 0.0)
    y = lax.reduce_window(y, -jnp.inf, lax.max, (1, 1, 2, 2), (1, 1, 2, 2),
                          "VALID")
    y = lax.conv_general_dilated(y, params["conv2_w"], (1, 1), "VALID",
                                 dimension_numbers=dn)
    y = jnp.maximum(y + params["conv2_b"][None, :, None, None], 0.0)
    y = lax.reduce_window(y, -jnp.inf, lax.max, (1, 1, 2, 2), (1, 1, 2, 2),
                          "VALID")
    y = y.reshape(y.shape[0], -1)                      # torch.flatten(x, 1)
    y = jnp.maximum(y @ params["fc1_w"] + params["fc1_b"], 0.0)
    y = jnp.maximum(y @ params["fc2_w"] + params["fc2_b"], 0.0)
    return y @ params["fc3_w"] + params["fc3_b"]


# ----------------------------------- main ------------------------------------ #

if __name__ == "__main__":
    key = jax.random.PRNGKey(0)
    ks = jax.random.split(key, 11)

    def init(k, shape, scale=0.1):
        return (scale * jax.random.normal(k, shape)).astype(jnp.float32)

    # Deterministic synthetic parameters (shapes from LeNet.__init__).
    params = {
        "conv1_w": init(ks[0], (6, 1, 5, 5)),    # Conv2d(1, 6, 5, padding=2)
        "conv1_b": init(ks[1], (6,)),
        "conv2_w": init(ks[2], (16, 6, 5, 5)),   # Conv2d(6, 16, 5)
        "conv2_b": init(ks[3], (16,)),
        "fc1_w":   init(ks[4], (400, 120)),      # Linear(400, 120), stored (in, out)
        "fc1_b":   init(ks[5], (120,)),
        "fc2_w":   init(ks[6], (120, 84)),       # Linear(120, 84)
        "fc2_b":   init(ks[7], (84,)),
        "fc3_w":   init(ks[8], (84, 10)),        # Linear(84, 10)
        "fc3_b":   init(ks[9], (10,)),
    }

    # LeNet's classifier requires 28x28 single-channel input (16*5*5 = 400).
    x = jax.random.normal(ks[10], (2, 1, 28, 28), dtype=jnp.float32)

    prepped = prepare_params(params)             # one-time parameter prep
    fwd = jax.jit(lenet_forward)
    out = jax.block_until_ready(fwd(prepped, x))

    assert out.shape == (2, 10), out.shape
    assert out.dtype == jnp.float32

    # bf16 MXU operands -> allow a loose tolerance vs the f32 reference.
    ref = _reference_forward(params, x)
    max_err = float(jnp.max(jnp.abs(out - ref)))
    assert max_err < 1e-1, f"max abs err {max_err}"
    print("KERNEL_OK")
</pallas_src>

<mosaic_0001>
module attributes {stable_mosaic.version = 11 : i64} {
  func.func @_lenet_kernel(%arg0: i32, %arg1: memref<1x32x32xf32, #tpu.memory_space<vmem>>, %arg2: memref<5x32x84xbf16, #tpu.memory_space<vmem>>, %arg3: memref<5x32x84xbf16, #tpu.memory_space<vmem>>, %arg4: memref<1x84xf32, #tpu.memory_space<vmem>>, %arg5: memref<2x14x28xf32, #tpu.memory_space<vmem>>, %arg6: memref<5x84x80xbf16, #tpu.memory_space<vmem>>, %arg7: memref<5x84x80xbf16, #tpu.memory_space<vmem>>, %arg8: memref<1x80xf32, #tpu.memory_space<vmem>>, %arg9: memref<2x5x10xf32, #tpu.memory_space<vmem>>, %arg10: memref<5x80x120xbf16, #tpu.memory_space<vmem>>, %arg11: memref<1x120xf32, #tpu.memory_space<vmem>>, %arg12: memref<120x84xbf16, #tpu.memory_space<vmem>>, %arg13: memref<1x84xf32, #tpu.memory_space<vmem>>, %arg14: memref<84x10xbf16, #tpu.memory_space<vmem>>, %arg15: memref<1x10xf32, #tpu.memory_space<vmem>>, %arg16: memref<1x1x10xf32, #tpu.memory_space<vmem>>, %arg17: memref<32x32xf32, #tpu.memory_space<vmem>>, %arg18: memref<14x84xf32, #tpu.memory_space<vmem>>, %arg19: memref<5x80xf32, #tpu.memory_space<vmem>>) attributes {dimension_semantics = [#tpu.dimension_semantics<parallel>], iteration_bounds = array<i64: 2>, scalar_prefetch = 0 : i64, scratch_operands = 3 : i64, tpu.core_type = #tpu.core_type<tc>, window_params = [{transform_indices = @transform_0, window_bounds = array<i64: 1, 32, 32>}, {pipeline_mode = #tpu.pipeline_mode<synchronous>, transform_indices = @transform_1, window_bounds = array<i64: 5, 32, 84>}, {pipeline_mode = #tpu.pipeline_mode<synchronous>, transform_indices = @transform_2, window_bounds = array<i64: 5, 32, 84>}, {pipeline_mode = #tpu.pipeline_mode<synchronous>, transform_indices = @transform_3, window_bounds = array<i64: 1, 84>}, {pipeline_mode = #tpu.pipeline_mode<synchronous>, transform_indices = @transform_4, window_bounds = array<i64: 2, 14, 28>}, {pipeline_mode = #tpu.pipeline_mode<synchronous>, transform_indices = @transform_5, window_bounds = array<i64: 5, 84, 80>}, {pipeline_mode = #tpu.pipeline_mode<synchronous>, transform_indices = @transform_6, window_bounds = array<i64: 5, 84, 80>}, {pipeline_mode = #tpu.pipeline_mode<synchronous>, transform_indices = @transform_7, window_bounds = array<i64: 1, 80>}, {pipeline_mode = #tpu.pipeline_mode<synchronous>, transform_indices = @transform_8, window_bounds = array<i64: 2, 5, 10>}, {pipeline_mode = #tpu.pipeline_mode<synchronous>, transform_indices = @transform_9, window_bounds = array<i64: 5, 80, 120>}, {pipeline_mode = #tpu.pipeline_mode<synchronous>, transform_indices = @transform_10, window_bounds = array<i64: 1, 120>}, {pipeline_mode = #tpu.pipeline_mode<synchronous>, transform_indices = @transform_11, window_bounds = array<i64: 120, 84>}, {pipeline_mode = #tpu.pipeline_mode<synchronous>, transform_indices = @transform_12, window_bounds = array<i64: 1, 84>}, {pipeline_mode = #tpu.pipeline_mode<synchronous>, transform_indices = @transform_13, window_bounds = array<i64: 84, 10>}, {pipeline_mode = #tpu.pipeline_mode<synchronous>, transform_indices = @transform_14, window_bounds = array<i64: 1, 10>}, {transform_indices = @transform_15, window_bounds = array<i64: 1, 1, 10>}]} {
    %c0 = arith.constant 0 : index
    %c0_0 = arith.constant 0 : index
    %c0_1 = arith.constant 0 : index
    %0 = vector.load %arg1[%c0, %c0_0, %c0_1] : memref<1x32x32xf32, #tpu.memory_space<vmem>>, vector<1x32x32xf32>
    %1 = vector.shape_cast %0 : vector<1x32x32xf32> to vector<32x32xf32>
    %c0_2 = arith.constant 0 : index
    %c0_3 = arith.constant 0 : index
    %2 = vector.load %arg17[%c0_2, %c0_3] : memref<32x32xf32, #tpu.memory_space<vmem>>, vector<32x32xf32>
    tpu.vector_store %arg17[%c0_2, %c0_3], %1 {strides = array<i32>} : memref<32x32xf32, #tpu.memory_space<vmem>>, vector<32x32xf32>,
    %cst = arith.constant 0.000000e+00 : f32
    %3 = vector.broadcast %cst : f32 to vector<28x84xf32>
    %cst_4 = arith.constant 0.000000e+00 : f32
    %4 = vector.broadcast %cst_4 : f32 to vector<28x84xf32>
    %c0_5 = arith.constant 0 : index
    %c0_6 = arith.constant 0 : index
    %5 = vector.load %arg17[%c0_5, %c0_6] : memref<32x32xf32, #tpu.memory_space<vmem>>, vector<28x32xf32>
    %6 = arith.truncf %5 : vector<28x32xf32> to vector<28x32xbf16>
    %c0_7 = arith.constant 0 : index
    %c0_8 = arith.constant 0 : index
    %c0_9 = arith.constant 0 : index
    %7 = vector.load %arg2[%c0_7, %c0_8, %c0_9] : memref<5x32x84xbf16, #tpu.memory_space<vmem>>, vector<1x32x84xbf16>
    %8 = vector.shape_cast %7 : vector<1x32x84xbf16> to vector<32x84xbf16>
    %cst_10 = arith.constant dense<0.000000e+00> : vector<28x84xf32>
    %9 = tpu.matmul %6, %8, %cst_10 {dimension_numbers = #tpu.dot_dimension_numbers<[1], [0], [0], [1], [0, 0, 1, 1], [], []>} : vector<28x32xbf16>, vector<32x84xbf16>, vector<28x84xf32> -> vector<28x84xf32>
    %10 = arith.addf %3, %9 : vector<28x84xf32>
    %c0_11 = arith.constant 0 : index
    %c0_12 = arith.constant 0 : index
    %c0_13 = arith.constant 0 : index
    %11 = vector.load %arg3[%c0_11, %c0_12, %c0_13] : memref<5x32x84xbf16, #tpu.memory_space<vmem>>, vector<1x32x84xbf16>
    %12 = vector.shape_cast %11 : vector<1x32x84xbf16> to vector<32x84xbf16>
    %cst_14 = arith.constant dense<0.000000e+00> : vector<28x84xf32>
    %13 = tpu.matmul %6, %12, %cst_14 {dimension_numbers = #tpu.dot_dimension_numbers<[1], [0], [0], [1], [0, 0, 1, 1], [], []>} : vector<28x32xbf16>, vector<32x84xbf16>, vector<28x84xf32> -> vector<28x84xf32>
    %14 = arith.addf %4, %13 : vector<28x84xf32>
    %c1 = arith.constant 1 : index
    %c0_15 = arith.constant 0 : index
    %15 = vector.load %arg17[%c1, %c0_15] : memref<32x32xf32, #tpu.memory_space<vmem>>, vector<28x32xf32>
    %16 = arith.truncf %15 : vector<28x32xf32> to vector<28x32xbf16>
    %c1_16 = arith.constant 1 : index
    %c0_17 = arith.constant 0 : index
    %c0_18 = arith.constant 0 : index
    %17 = vector.load %arg2[%c1_16, %c0_17, %c0_18] : memref<5x32x84xbf16, #tpu.memory_space<vmem>>, vector<1x32x84xbf16>
    %18 = vector.shape_cast %17 : vector<1x32x84xbf16> to vector<32x84xbf16>
    %cst_19 = arith.constant dense<0.000000e+00> : vector<28x84xf32>
    %19 = tpu.matmul %16, %18, %cst_19 {dimension_numbers = #tpu.dot_dimension_numbers<[1], [0], [0], [1], [0, 0, 1, 1], [], []>} : vector<28x32xbf16>, vector<32x84xbf16>, vector<28x84xf32> -> vector<28x84xf32>
    %20 = arith.addf %10, %19 : vector<28x84xf32>
    %c1_20 = arith.constant 1 : index
    %c0_21 = arith.constant 0 : index
    %c0_22 = arith.constant 0 : index
    %21 = vector.load %arg3[%c1_20, %c0_21, %c0_22] : memref<5x32x84xbf16, #tpu.memory_space<vmem>>, vector<1x32x84xbf16>
    %22 = vector.shape_cast %21 : vector<1x32x84xbf16> to vector<32x84xbf16>
    %cst_23 = arith.constant dense<0.000000e+00> : vector<28x84xf32>
    %23 = tpu.matmul %16, %22, %cst_23 {dimension_numbers = #tpu.dot_dimension_numbers<[1], [0], [0], [1], [0, 0, 1, 1], [], []>} : vector<28x32xbf16>, vector<32x84xbf16>, vector<28x84xf32> -> vector<28x84xf32>
    %24 = arith.addf %14, %23 : vector<28x84xf32>
    %c2 = arith.constant 2 : index
    %c0_24 = arith.constant 0 : index
    %25 = vector.load %arg17[%c2, %c0_24] : memref<32x32xf32, #tpu.memory_space<vmem>>, vector<28x32xf32>
    %26 = arith.truncf %25 : vector<28x32xf32> to vector<28x32xbf16>
    %c2_25 = arith.constant 2 : index
    %c0_26 = arith.constant 0 : index
    %c0_27 = arith.constant 0 : index
    %27 = vector.load %arg2[%c2_25, %c0_26, %c0_27] : memref<5x32x84xbf16, #tpu.memory_space<vmem>>, vector<1x32x84xbf16>
    %28 = vector.shape_cast %27 : vector<1x32x84xbf16> to vector<32x84xbf16>
    %cst_28 = arith.constant dense<0.000000e+00> : vector<28x84xf32>
    %29 = tpu.matmul %26, %28, %cst_28 {dimension_numbers = #tpu.dot_dimension_numbers<[1], [0], [0], [1], [0, 0, 1, 1], [], []>} : vector<28x32xbf16>, vector<32x84xbf16>, vector<28x84xf32> -> vector<28x84xf32>
    %30 = arith.addf %20, %29 : vector<28x84xf32>
    %c2_29 = arith.constant 2 : index
    %c0_30 = arith.constant 0 : index
    %c0_31 = arith.constant 0 : index
    %31 = vector.load %arg3[%c2_29, %c0_30, %c0_31] : memref<5x32x84xbf16, #tpu.memory_space<vmem>>, vector<1x32x84xbf16>
    %32 = vector.shape_cast %31 : vector<1x32x84xbf16> to vector<32x84xbf16>
    %cst_32 = arith.constant dense<0.000000e+00> : vector<28x84xf32>
    %33 = tpu.matmul %26, %32, %cst_32 {dimension_numbers = #tpu.dot_dimension_numbers<[1], [0], [0], [1], [0, 0, 1, 1], [], []>} : vector<28x32xbf16>, vector<32x84xbf16>, vector<28x84xf32> -> vector<28x84xf32>
    %34 = arith.addf %24, %33 : vector<28x84xf32>
    %c3 = arith.constant 3 : index
    %c0_33 = arith.constant 0 : index
    %35 = vector.load %arg17[%c3, %c0_33] : memref<32x32xf32, #tpu.memory_space<vmem>>, vector<28x32xf32>
    %36 = arith.truncf %35 : vector<28x32xf32> to vector<28x32xbf16>
    %c3_34 = arith.constant 3 : index
    %c0_35 = arith.constant 0 : index
    %c0_36 = arith.constant 0 : index
    %37 = vector.load %arg2[%c3_34, %c0_35, %c0_36] : memref<5x32x84xbf16, #tpu.memory_space<vmem>>, vector<1x32x84xbf16>
    %38 = vector.shape_cast %37 : vector<1x32x84xbf16> to vector<32x84xbf16>
    %cst_37 = arith.constant dense<0.000000e+00> : vector<28x84xf32>
    %39 = tpu.matmul %36, %38, %cst_37 {dimension_numbers = #tpu.dot_dimension_numbers<[1], [0], [0], [1], [0, 0, 1, 1], [], []>} : vector<28x32xbf16>, vector<32x84xbf16>, vector<28x84xf32> -> vector<28x84xf32>
    %40 = arith.addf %30, %39 : vector<28x84xf32>
    %c3_38 = arith.constant 3 : index
    %c0_39 = arith.constant 0 : index
    %c0_40 = arith.constant 0 : index
    %41 = vector.load %arg3[%c3_38, %c0_39, %c0_40] : memref<5x32x84xbf16, #tpu.memory_space<vmem>>, vector<1x32x84xbf16>
    %42 = vector.shape_cast %41 : vector<1x32x84xbf16> to vector<32x84xbf16>
    %cst_41 = arith.constant dense<0.000000e+00> : vector<28x84xf32>
    %43 = tpu.matmul %36, %42, %cst_41 {dimension_numbers = #tpu.dot_dimension_numbers<[1], [0], [0], [1], [0, 0, 1, 1], [], []>} : vector<28x32xbf16>, vector<32x84xbf16>, vector<28x84xf32> -> vector<28x84xf32>
    %44 = arith.addf %34, %43 : vector<28x84xf32>
    %c4 = arith.constant 4 : index
    %c0_42 = arith.constant 0 : index
    %45 = vector.load %arg17[%c4, %c0_42] : memref<32x32xf32, #tpu.memory_space<vmem>>, vector<28x32xf32>
    %46 = arith.truncf %45 : vector<28x32xf32> to vector<28x32xbf16>
    %c4_43 = arith.constant 4 : index
    %c0_44 = arith.constant 0 : index
    %c0_45 = arith.constant 0 : index
    %47 = vector.load %arg2[%c4_43, %c0_44, %c0_45] : memref<5x32x84xbf16, #tpu.memory_space<vmem>>, vector<1x32x84xbf16>
    %48 = vector.shape_cast %47 : vector<1x32x84xbf16> to vector<32x84xbf16>
    %cst_46 = arith.constant dense<0.000000e+00> : vector<28x84xf32>
    %49 = tpu.matmul %46, %48, %cst_46 {dimension_numbers = #tpu.dot_dimension_numbers<[1], [0], [0], [1], [0, 0, 1, 1], [], []>} : vector<28x32xbf16>, vector<32x84xbf16>, vector<28x84xf32> -> vector<28x84xf32>
    %50 = arith.addf %40, %49 : vector<28x84xf32>
    %c4_47 = arith.constant 4 : index
    %c0_48 = arith.constant 0 : index
    %c0_49 = arith.constant 0 : index
    %51 = vector.load %arg3[%c4_47, %c0_48, %c0_49] : memref<5x32x84xbf16, #tpu.memory_space<vmem>>, vector<1x32x84xbf16>
    %52 = vector.shape_cast %51 : vector<1x32x84xbf16> to vector<32x84xbf16>
    %cst_50 = arith.constant dense<0.000000e+00> : vector<28x84xf32>
    %53 = tpu.matmul %46, %52, %cst_50 {dimension_numbers = #tpu.dot_dimension_numbers<[1], [0], [0], [1], [0, 0, 1, 1], [], []>} : vector<28x32xbf16>, vector<32x84xbf16>, vector<28x84xf32> -> vector<28x84xf32>
    %54 = arith.addf %44, %53 : vector<28x84xf32>
    %55 = arith.maximumf %50, %54 : vector<28x84xf32>
    %c0_51 = arith.constant 0 : index
    %c0_52 = arith.constant 0 : index
    %56 = vector.load %arg4[%c0_51, %c0_52] : memref<1x84xf32, #tpu.memory_space<vmem>>, vector<1x84xf32>
    %57 = vector.broadcast %56 : vector<1x84xf32> to vector<28x84xf32>
    %58 = arith.addf %55, %57 : vector<28x84xf32>
    %cst_53 = arith.constant 0.000000e+00 : f32
    %59 = vector.broadcast %cst_53 : f32 to vector<28x84xf32>
    %60 = arith.maximumf %58, %59 : vector<28x84xf32>
    %c0_54 = arith.constant 0 : index
    %c0_55 = arith.constant 0 : index
    %c0_56 = arith.constant 0 : index
    %61 = vector.load %arg5[%c0_54, %c0_55, %c0_56] : memref<2x14x28xf32, #tpu.memory_space<vmem>>, vector<1x14x28xf32>
    %62 = vector.shape_cast %61 : vector<1x14x28xf32> to vector<14x28xf32>
    %cst_57 = arith.constant dense<0.000000e+00> : vector<14x84xf32>
    %63 = tpu.matmul %62, %60, %cst_57 {dimension_numbers = #tpu.dot_dimension_numbers<[1], [0], [0], [1], [0, 0, 1, 1], [], []>} : vector<14x28xf32>, vector<28x84xf32>, vector<14x84xf32> -> vector<14x84xf32>
    %c1_58 = arith.constant 1 : index
    %c0_59 = arith.constant 0 : index
    %c0_60 = arith.constant 0 : index
    %64 = vector.load %arg5[%c1_58, %c0_59, %c0_60] : memref<2x14x28xf32, #tpu.memory_space<vmem>>, vector<1x14x28xf32>
    %65 = vector.shape_cast %64 : vector<1x14x28xf32> to vector<14x28xf32>
    %cst_61 = arith.constant dense<0.000000e+00> : vector<14x84xf32>
    %66 = tpu.matmul %65, %60, %cst_61 {dimension_numbers = #tpu.dot_dimension_numbers<[1], [0], [0], [1], [0, 0, 1, 1], [], []>} : vector<14x28xf32>, vector<28x84xf32>, vector<14x84xf32> -> vector<14x84xf32>
    %67 = arith.maximumf %63, %66 : vector<14x84xf32>
    %c0_62 = arith.constant 0 : index
    %c0_63 = arith.constant 0 : index
    %68 = vector.load %arg18[%c0_62, %c0_63] : memref<14x84xf32, #tpu.memory_space<vmem>>, vector<14x84xf32>
    tpu.vector_store %arg18[%c0_62, %c0_63], %67 {strides = array<i32>} : memref<14x84xf32, #tpu.memory_space<vmem>>, vector<14x84xf32>,
    %cst_64 = arith.constant 0.000000e+00 : f32
    %69 = vector.broadcast %cst_64 : f32 to vector<10x80xf32>
    %cst_65 = arith.constant 0.000000e+00 : f32
    %70 = vector.broadcast %cst_65 : f32 to vector<10x80xf32>
    %c0_66 = arith.constant 0 : index
    %c0_67 = arith.constant 0 : index
    %71 = vector.load %arg18[%c0_66, %c0_67] : memref<14x84xf32, #tpu.memory_space<vmem>>, vector<10x84xf32>
    %72 = arith.truncf %71 : vector<10x84xf32> to vector<10x84xbf16>
    %c0_68 = arith.constant 0 : index
    %c0_69 = arith.constant 0 : index
    %c0_70 = arith.constant 0 : index
    %73 = vector.load %arg6[%c0_68, %c0_69, %c0_70] : memref<5x84x80xbf16, #tpu.memory_space<vmem>>, vector<1x84x80xbf16>
    %74 = vector.shape_cast %73 : vector<1x84x80xbf16> to vector<84x80xbf16>
    %cst_71 = arith.constant dense<0.000000e+00> : vector<10x80xf32>
    %75 = tpu.matmul %72, %74, %cst_71 {dimension_numbers = #tpu.dot_dimension_numbers<[1], [0], [0], [1], [0, 0, 1, 1], [], []>} : vector<10x84xbf16>, vector<84x80xbf16>, vector<10x80xf32> -> vector<10x80xf32>
    %76 = arith.addf %69, %75 : vector<10x80xf32>
    %c0_72 = arith.constant 0 : index
    %c0_73 = arith.constant 0 : index
    %c0_74 = arith.constant 0 : index
    %77 = vector.load %arg7[%c0_72, %c0_73, %c0_74] : memref<5x84x80xbf16, #tpu.memory_space<vmem>>, vector<1x84x80xbf16>
    %78 = vector.shape_cast %77 : vector<1x84x80xbf16> to vector<84x80xbf16>
    %cst_75 = arith.constant dense<0.000000e+00> : vector<10x80xf32>
    %79 = tpu.matmul %72, %78, %cst_75 {dimension_numbers = #tpu.dot_dimension_numbers<[1], [0], [0], [1], [0, 0, 1, 1], [], []>} : vector<10x84xbf16>, vector<84x80xbf16>, vector<10x80xf32> -> vector<10x80xf32>
    %80 = arith.addf %70, %79 : vector<10x80xf32>
    %c1_76 = arith.constant 1 : index
    %c0_77 = arith.constant 0 : index
    %81 = vector.load %arg18[%c1_76, %c0_77] : memref<14x84xf32, #tpu.memory_space<vmem>>, vector<10x84xf32>
    %82 = arith.truncf %81 : vector<10x84xf32> to vector<10x84xbf16>
    %c1_78 = arith.constant 1 : index
    %c0_79 = arith.constant 0 : index
    %c0_80 = arith.constant 0 : index
    %83 = vector.load %arg6[%c1_78, %c0_79, %c0_80] : memref<5x84x80xbf16, #tpu.memory_space<vmem>>, vector<1x84x80xbf16>
    %84 = vector.shape_cast %83 : vector<1x84x80xbf16> to vector<84x80xbf16>
    %cst_81 = arith.constant dense<0.000000e+00> : vector<10x80xf32>
    %85 = tpu.matmul %82, %84, %cst_81 {dimension_numbers = #tpu.dot_dimension_numbers<[1], [0], [0], [1], [0, 0, 1, 1], [], []>} : vector<10x84xbf16>, vector<84x80xbf16>, vector<10x80xf32> -> vector<10x80xf32>
    %86 = arith.addf %76, %85 : vector<10x80xf32>
    %c1_82 = arith.constant 1 : index
    %c0_83 = arith.constant 0 : index
    %c0_84 = arith.constant 0 : index
    %87 = vector.load %arg7[%c1_82, %c0_83, %c0_84] : memref<5x84x80xbf16, #tpu.memory_space<vmem>>, vector<1x84x80xbf16>
    %88 = vector.shape_cast %87 : vector<1x84x80xbf16> to vector<84x80xbf16>
    %cst_85 = arith.constant dense<0.000000e+00> : vector<10x80xf32>
    %89 = tpu.matmul %82, %88, %cst_85 {dimension_numbers = #tpu.dot_dimension_numbers<[1], [0], [0], [1], [0, 0, 1, 1], [], []>} : vector<10x84xbf16>, vector<84x80xbf16>, vector<10x80xf32> -> vector<10x80xf32>
    %90 = arith.addf %80, %89 : vector<10x80xf32>
    %c2_86 = arith.constant 2 : index
    %c0_87 = arith.constant 0 : index
    %91 = vector.load %arg18[%c2_86, %c0_87] : memref<14x84xf32, #tpu.memory_space<vmem>>, vector<10x84xf32>
    %92 = arith.truncf %91 : vector<10x84xf32> to vector<10x84xbf16>
    %c2_88 = arith.constant 2 : index
    %c0_89 = arith.constant 0 : index
    %c0_90 = arith.constant 0 : index
    %93 = vector.load %arg6[%c2_88, %c0_89, %c0_90] : memref<5x84x80xbf16, #tpu.memory_space<vmem>>, vector<1x84x80xbf16>
    %94 = vector.shape_cast %93 : vector<1x84x80xbf16> to vector<84x80xbf16>
    %cst_91 = arith.constant dense<0.000000e+00> : vector<10x80xf32>
    %95 = tpu.matmul %92, %94, %cst_91 {dimension_numbers = #tpu.dot_dimension_numbers<[1], [0], [0], [1], [0, 0, 1, 1], [], []>} : vector<10x84xbf16>, vector<84x80xbf16>, vector<10x80xf32> -> vector<10x80xf32>
    %96 = arith.addf %86, %95 : vector<10x80xf32>
    %c2_92 = arith.constant 2 : index
    %c0_93 = arith.constant 0 : index
    %c0_94 = arith.constant 0 : index
    %97 = vector.load %arg7[%c2_92, %c0_93, %c0_94] : memref<5x84x80xbf16, #tpu.memory_space<vmem>>, vector<1x84x80xbf16>
    %98 = vector.shape_cast %97 : vector<1x84x80xbf16> to vector<84x80xbf16>
    %cst_95 = arith.constant dense<0.000000e+00> : vector<10x80xf32>
    %99 = tpu.matmul %92, %98, %cst_95 {dimension_numbers = #tpu.dot_dimension_numbers<[1], [0], [0], [1], [0, 0, 1, 1], [], []>} : vector<10x84xbf16>, vector<84x80xbf16>, vector<10x80xf32> -> vector<10x80xf32>
    %100 = arith.addf %90, %99 : vector<10x80xf32>
    %c3_96 = arith.constant 3 : index
    %c0_97 = arith.constant 0 : index
    %101 = vector.load %arg18[%c3_96, %c0_97] : memref<14x84xf32, #tpu.memory_space<vmem>>, vector<10x84xf32>
    %102 = arith.truncf %101 : vector<10x84xf32> to vector<10x84xbf16>
    %c3_98 = arith.constant 3 : index
    %c0_99 = arith.constant 0 : index
    %c0_100 = arith.constant 0 : index
    %103 = vector.load %arg6[%c3_98, %c0_99, %c0_100] : memref<5x84x80xbf16, #tpu.memory_space<vmem>>, vector<1x84x80xbf16>
    %104 = vector.shape_cast %103 : vector<1x84x80xbf16> to vector<84x80xbf16>
    %cst_101 = arith.constant dense<0.000000e+00> : vector<10x80xf32>
    %105 = tpu.matmul %102, %104, %cst_101 {dimension_numbers = #tpu.dot_dimension_numbers<[1], [0], [0], [1], [0, 0, 1, 1], [], []>} : vector<10x84xbf16>, vector<84x80xbf16>, vector<10x80xf32> -> vector<10x80xf32>
    %106 = arith.addf %96, %105 : vector<10x80xf32>
    %c3_102 = arith.constant 3 : index
    %c0_103 = arith.constant 0 : index
    %c0_104 = arith.constant 0 : index
    %107 = vector.load %arg7[%c3_102, %c0_103, %c0_104] : memref<5x84x80xbf16, #tpu.memory_space<vmem>>, vector<1x84x80xbf16>
    %108 = vector.shape_cast %107 : vector<1x84x80xbf16> to vector<84x80xbf16>
    %cst_105 = arith.constant dense<0.000000e+00> : vector<10x80xf32>
    %109 = tpu.matmul %102, %108, %cst_105 {dimension_numbers = #tpu.dot_dimension_numbers<[1], [0], [0], [1], [0, 0, 1, 1], [], []>} : vector<10x84xbf16>, vector<84x80xbf16>, vector<10x80xf32> -> vector<10x80xf32>
    %110 = arith.addf %100, %109 : vector<10x80xf32>
    %c4_106 = arith.constant 4 : index
    %c0_107 = arith.constant 0 : index
    %111 = vector.load %arg18[%c4_106, %c0_107] : memref<14x84xf32, #tpu.memory_space<vmem>>, vector<10x84xf32>
    %112 = arith.truncf %111 : vector<10x84xf32> to vector<10x84xbf16>
    %c4_108 = arith.constant 4 : index
    %c0_109 = arith.constant 0 : index
    %c0_110 = arith.constant 0 : index
    %113 = vector.load %arg6[%c4_108, %c0_109, %c0_110] : memref<5x84x80xbf16, #tpu.memory_space<vmem>>, vector<1x84x80xbf16>
    %114 = vector.shape_cast %113 : vector<1x84x80xbf16> to vector<84x80xbf16>
    %cst_111 = arith.constant dense<0.000000e+00> : vector<10x80xf32>
    %115 = tpu.matmul %112, %114, %cst_111 {dimension_numbers = #tpu.dot_dimension_numbers<[1], [0], [0], [1], [0, 0, 1, 1], [], []>} : vector<10x84xbf16>, vector<84x80xbf16>, vector<10x80xf32> -> vector<10x80xf32>
    %116 = arith.addf %106, %115 : vector<10x80xf32>
    %c4_112 = arith.constant 4 : index
    %c0_113 = arith.constant 0 : index
    %c0_114 = arith.constant 0 : index
    %117 = vector.load %arg7[%c4_112, %c0_113, %c0_114] : memref<5x84x80xbf16, #tpu.memory_space<vmem>>, vector<1x84x80xbf16>
    %118 = vector.shape_cast %117 : vector<1x84x80xbf16> to vector<84x80xbf16>
    %cst_115 = arith.constant dense<0.000000e+00> : vector<10x80xf32>
    %119 = tpu.matmul %112, %118, %cst_115 {dimension_numbers = #tpu.dot_dimension_numbers<[1], [0], [0], [1], [0, 0, 1, 1], [], []>} : vector<10x84xbf16>, vector<84x80xbf16>, vector<10x80xf32> -> vector<10x80xf32>
    %120 = arith.addf %110, %119 : vector<10x80xf32>
    %121 = arith.maximumf %116, %120 : vector<10x80xf32>
    %c0_116 = arith.constant 0 : index
    %c0_117 = arith.constant 0 : index
    %122 = vector.load %arg8[%c0_116, %c0_117] : memref<1x80xf32, #tpu.memory_space<vmem>>, vector<1x80xf32>
    %123 = vector.broadcast %122 : vector<1x80xf32> to vector<10x80xf32>
    %124 = arith.addf %121, %123 : vector<10x80xf32>
    %cst_118 = arith.constant 0.000000e+00 : f32
    %125 = vector.broadcast %cst_118 : f32 to vector<10x80xf32>
    %126 = arith.maximumf %124, %125 : vector<10x80xf32>
    %c0_119 = arith.constant 0 : index
    %c0_120 = arith.constant 0 : index
    %c0_121 = arith.constant 0 : index
    %127 = vector.load %arg9[%c0_119, %c0_120, %c0_121] : memref<2x5x10xf32, #tpu.memory_space<vmem>>, vector<1x5x10xf32>
    %128 = vector.shape_cast %127 : vector<1x5x10xf32> to vector<5x10xf32>
    %cst_122 = arith.constant dense<0.000000e+00> : vector<5x80xf32>
    %129 = tpu.matmul %128, %126, %cst_122 {dimension_numbers = #tpu.dot_dimension_numbers<[1], [0], [0], [1], [0, 0, 1, 1], [], []>} : vector<5x10xf32>, vector<10x80xf32>, vector<5x80xf32> -> vector<5x80xf32>
    %c1_123 = arith.constant 1 : index
    %c0_124 = arith.constant 0 : index
    %c0_125 = arith.constant 0 : index
    %130 = vector.load %arg9[%c1_123, %c0_124, %c0_125] : memref<2x5x10xf32, #tpu.memory_space<vmem>>, vector<1x5x10xf32>
    %131 = vector.shape_cast %130 : vector<1x5x10xf32> to vector<5x10xf32>
    %cst_126 = arith.constant dense<0.000000e+00> : vector<5x80xf32>
    %132 = tpu.matmul %131, %126, %cst_126 {dimension_numbers = #tpu.dot_dimension_numbers<[1], [0], [0], [1], [0, 0, 1, 1], [], []>} : vector<5x10xf32>, vector<10x80xf32>, vector<5x80xf32> -> vector<5x80xf32>
    %133 = arith.maximumf %129, %132 : vector<5x80xf32>
    %c0_127 = arith.constant 0 : index
    %c0_128 = arith.constant 0 : index
    %134 = vector.load %arg19[%c0_127, %c0_128] : memref<5x80xf32, #tpu.memory_space<vmem>>, vector<5x80xf32>
    tpu.vector_store %arg19[%c0_127, %c0_128], %133 {strides = array<i32>} : memref<5x80xf32, #tpu.memory_space<vmem>>, vector<5x80xf32>,
    %c0_129 = arith.constant 0 : index
    %c0_130 = arith.constant 0 : index
    %135 = vector.load %arg11[%c0_129, %c0_130] : memref<1x120xf32, #tpu.memory_space<vmem>>, vector<1x120xf32>
    %c0_131 = arith.constant 0 : index
    %c0_132 = arith.constant 0 : index
    %136 = vector.load %arg19[%c0_131, %c0_132] : memref<5x80xf32, #tpu.memory_space<vmem>>, vector<1x80xf32>
    %137 = arith.truncf %136 : vector<1x80xf32> to vector<1x80xbf16>
    %c0_133 = arith.constant 0 : index
    %c0_134 = arith.constant 0 : index
    %c0_135 = arith.constant 0 : index
    %138 = vector.load %arg10[%c0_133, %c0_134, %c0_135] : memref<5x80x120xbf16, #tpu.memory_space<vmem>>, vector<1x80x120xbf16>
    %139 = vector.shape_cast %138 : vector<1x80x120xbf16> to vector<80x120xbf16>
    %cst_136 = arith.constant dense<0.000000e+00> : vector<1x120xf32>
    %140 = tpu.matmul %137, %139, %cst_136 {dimension_numbers = #tpu.dot_dimension_numbers<[1], [0], [0], [1], [0, 0, 1, 1], [], []>} : vector<1x80xbf16>, vector<80x120xbf16>, vector<1x120xf32> -> vector<1x120xf32>
    %141 = arith.addf %135, %140 : vector<1x120xf32>
    %c1_137 = arith.constant 1 : index
    %c0_138 = arith.constant 0 : index
    %142 = vector.load %arg19[%c1_137, %c0_138] : memref<5x80xf32, #tpu.memory_space<vmem>>, vector<1x80xf32>
    %143 = arith.truncf %142 : vector<1x80xf32> to vector<1x80xbf16>
    %c1_139 = arith.constant 1 : index
    %c0_140 = arith.constant 0 : index
    %c0_141 = arith.constant 0 : index
    %144 = vector.load %arg10[%c1_139, %c0_140, %c0_141] : memref<5x80x120xbf16, #tpu.memory_space<vmem>>, vector<1x80x120xbf16>
    %145 = vector.shape_cast %144 : vector<1x80x120xbf16> to vector<80x120xbf16>
    %cst_142 = arith.constant dense<0.000000e+00> : vector<1x120xf32>
    %146 = tpu.matmul %143, %145, %cst_142 {dimension_numbers = #tpu.dot_dimension_numbers<[1], [0], [0], [1], [0, 0, 1, 1], [], []>} : vector<1x80xbf16>, vector<80x120xbf16>, vector<1x120xf32> -> vector<1x120xf32>
    %147 = arith.addf %141, %146 : vector<1x120xf32>
    %c2_143 = arith.constant 2 : index
    %c0_144 = arith.constant 0 : index
    %148 = vector.load %arg19[%c2_143, %c0_144] : memref<5x80xf32, #tpu.memory_space<vmem>>, vector<1x80xf32>
    %149 = arith.truncf %148 : vector<1x80xf32> to vector<1x80xbf16>
    %c2_145 = arith.constant 2 : index
    %c0_146 = arith.constant 0 : index
    %c0_147 = arith.constant 0 : index
    %150 = vector.load %arg10[%c2_145, %c0_146, %c0_147] : memref<5x80x120xbf16, #tpu.memory_space<vmem>>, vector<1x80x120xbf16>
    %151 = vector.shape_cast %150 : vector<1x80x120xbf16> to vector<80x120xbf16>
    %cst_148 = arith.constant dense<0.000000e+00> : vector<1x120xf32>
    %152 = tpu.matmul %149, %151, %cst_148 {dimension_numbers = #tpu.dot_dimension_numbers<[1], [0], [0], [1], [0, 0, 1, 1], [], []>} : vector<1x80xbf16>, vector<80x120xbf16>, vector<1x120xf32> -> vector<1x120xf32>
    %153 = arith.addf %147, %152 : vector<1x120xf32>
    %c3_149 = arith.constant 3 : index
    %c0_150 = arith.constant 0 : index
    %154 = vector.load %arg19[%c3_149, %c0_150] : memref<5x80xf32, #tpu.memory_space<vmem>>, vector<1x80xf32>
    %155 = arith.truncf %154 : vector<1x80xf32> to vector<1x80xbf16>
    %c3_151 = arith.constant 3 : index
    %c0_152 = arith.constant 0 : index
    %c0_153 = arith.constant 0 : index
    %156 = vector.load %arg10[%c3_151, %c0_152, %c0_153] : memref<5x80x120xbf16, #tpu.memory_space<vmem>>, vector<1x80x120xbf16>
    %157 = vector.shape_cast %156 : vector<1x80x120xbf16> to vector<80x120xbf16>
    %cst_154 = arith.constant dense<0.000000e+00> : vector<1x120xf32>
    %158 = tpu.matmul %155, %157, %cst_154 {dimension_numbers = #tpu.dot_dimension_numbers<[1], [0], [0], [1], [0, 0, 1, 1], [], []>} : vector<1x80xbf16>, vector<80x120xbf16>, vector<1x120xf32> -> vector<1x120xf32>
    %159 = arith.addf %153, %158 : vector<1x120xf32>
    %c4_155 = arith.constant 4 : index
    %c0_156 = arith.constant 0 : index
    %160 = vector.load %arg19[%c4_155, %c0_156] : memref<5x80xf32, #tpu.memory_space<vmem>>, vector<1x80xf32>
    %161 = arith.truncf %160 : vector<1x80xf32> to vector<1x80xbf16>
    %c4_157 = arith.constant 4 : index
    %c0_158 = arith.constant 0 : index
    %c0_159 = arith.constant 0 : index
    %162 = vector.load %arg10[%c4_157, %c0_158, %c0_159] : memref<5x80x120xbf16, #tpu.memory_space<vmem>>, vector<1x80x120xbf16>
    %163 = vector.shape_cast %162 : vector<1x80x120xbf16> to vector<80x120xbf16>
    %cst_160 = arith.constant dense<0.000000e+00> : vector<1x120xf32>
    %164 = tpu.matmul %161, %163, %cst_160 {dimension_numbers = #tpu.dot_dimension_numbers<[1], [0], [0], [1], [0, 0, 1, 1], [], []>} : vector<1x80xbf16>, vector<80x120xbf16>, vector<1x120xf32> -> vector<1x120xf32>
    %165 = arith.addf %159, %164 : vector<1x120xf32>
    %cst_161 = arith.constant 0.000000e+00 : f32
    %166 = vector.broadcast %cst_161 : f32 to vector<1x120xf32>
    %167 = arith.maximumf %165, %166 : vector<1x120xf32>
    %168 = arith.truncf %167 : vector<1x120xf32> to vector<1x120xbf16>
    %c0_162 = arith.constant 0 : index
    %c0_163 = arith.constant 0 : index
    %169 = vector.load %arg12[%c0_162, %c0_163] : memref<120x84xbf16, #tpu.memory_space<vmem>>, vector<120x84xbf16>
    %cst_164 = arith.constant dense<0.000000e+00> : vector<1x84xf32>
    %170 = tpu.matmul %168, %169, %cst_164 {dimension_numbers = #tpu.dot_dimension_numbers<[1], [0], [0], [1], [0, 0, 1, 1], [], []>} : vector<1x120xbf16>, vector<120x84xbf16>, vector<1x84xf32> -> vector<1x84xf32>
    %c0_165 = arith.constant 0 : index
    %c0_166 = arith.constant 0 : index
    %171 = vector.load %arg13[%c0_165, %c0_166] : memref<1x84xf32, #tpu.memory_space<vmem>>, vector<1x84xf32>
    %172 = arith.addf %170, %171 : vector<1x84xf32>
    %cst_167 = arith.constant 0.000000e+00 : f32
    %173 = vector.broadcast %cst_167 : f32 to vector<1x84xf32>
    %174 = arith.maximumf %172, %173 : vector<1x84xf32>
    %175 = arith.truncf %174 : vector<1x84xf32> to vector<1x84xbf16>
    %c0_168 = arith.constant 0 : index
    %c0_169 = arith.constant 0 : index
    %176 = vector.load %arg14[%c0_168, %c0_169] : memref<84x10xbf16, #tpu.memory_space<vmem>>, vector<84x10xbf16>
    %cst_170 = arith.constant dense<0.000000e+00> : vector<1x10xf32>
    %177 = tpu.matmul %175, %176, %cst_170 {dimension_numbers = #tpu.dot_dimension_numbers<[1], [0], [0], [1], [0, 0, 1, 1], [], []>} : vector<1x84xbf16>, vector<84x10xbf16>, vector<1x10xf32> -> vector<1x10xf32>
    %c0_171 = arith.constant 0 : index
    %c0_172 = arith.constant 0 : index
    %178 = vector.load %arg15[%c0_171, %c0_172] : memref<1x10xf32, #tpu.memory_space<vmem>>, vector<1x10xf32>
    %179 = arith.addf %177, %178 : vector<1x10xf32>
    %c0_173 = arith.constant 0 : index
    %c0_174 = arith.constant 0 : index
    %c0_175 = arith.constant 0 : index
    %180 = vector.load %arg16[%c0_173, %c0_174, %c0_175] : memref<1x1x10xf32, #tpu.memory_space<vmem>>, vector<1x1x10xf32>
    %181 = vector.shape_cast %180 : vector<1x1x10xf32> to vector<1x10xf32>
    %182 = vector.shape_cast %179 : vector<1x10xf32> to vector<1x1x10xf32>
    tpu.vector_store %arg16[%c0_173, %c0_174, %c0_175], %182 {strides = array<i32>} : memref<1x1x10xf32, #tpu.memory_space<vmem>>, vector<1x1x10xf32>,
    return
  }
  func.func @transform_0(%arg0: i32) -> (i32, i32, i32) {
    %c0_i32 = arith.constant 0 : i32
    %c0_i32_0 = arith.constant 0 : i32
    %c0_i32_1 = arith.constant 0 : i32
    return %arg0, %c0_i32, %c0_i32_0 : i32, i32, i32
  }
  func.func @transform_1(%arg0: i32) -> (i32, i32, i32) {
    %c0_i32 = arith.constant 0 : i32
    %c0_i32_0 = arith.constant 0 : i32
    %c0_i32_1 = arith.constant 0 : i32
    %c0_i32_2 = arith.constant 0 : i32
    return %c0_i32, %c0_i32_0, %c0_i32_1 : i32, i32, i32
  }
  func.func @transform_2(%arg0: i32) -> (i32, i32, i32) {
    %c0_i32 = arith.constant 0 : i32
    %c0_i32_0 = arith.constant 0 : i32
    %c0_i32_1 = arith.constant 0 : i32
    %c0_i32_2 = arith.constant 0 : i32
    return %c0_i32, %c0_i32_0, %c0_i32_1 : i32, i32, i32
  }
  func.func @transform_3(%arg0: i32) -> (i32, i32) {
    %c0_i32 = arith.constant 0 : i32
    %c0_i32_0 = arith.constant 0 : i32
    %c0_i32_1 = arith.constant 0 : i32
    return %c0_i32, %c0_i32_0 : i32, i32
  }
  func.func @transform_4(%arg0: i32) -> (i32, i32, i32) {
    %c0_i32 = arith.constant 0 : i32
    %c0_i32_0 = arith.constant 0 : i32
    %c0_i32_1 = arith.constant 0 : i32
    %c0_i32_2 = arith.constant 0 : i32
    return %c0_i32, %c0_i32_0, %c0_i32_1 : i32, i32, i32
  }
  func.func @transform_5(%arg0: i32) -> (i32, i32, i32) {
    %c0_i32 = arith.constant 0 : i32
    %c0_i32_0 = arith.constant 0 : i32
    %c0_i32_1 = arith.constant 0 : i32
    %c0_i32_2 = arith.constant 0 : i32
    return %c0_i32, %c0_i32_0, %c0_i32_1 : i32, i32, i32
  }
  func.func @transform_6(%arg0: i32) -> (i32, i32, i32) {
    %c0_i32 = arith.constant 0 : i32
    %c0_i32_0 = arith.constant 0 : i32
    %c0_i32_1 = arith.constant 0 : i32
    %c0_i32_2 = arith.constant 0 : i32
    return %c0_i32, %c0_i32_0, %c0_i32_1 : i32, i32, i32
  }
  func.func @transform_7(%arg0: i32) -> (i32, i32) {
    %c0_i32 = arith.constant 0 : i32
    %c0_i32_0 = arith.constant 0 : i32
    %c0_i32_1 = arith.constant 0 : i32
    return %c0_i32, %c0_i32_0 : i32, i32
  }
  func.func @transform_8(%arg0: i32) -> (i32, i32, i32) {
    %c0_i32 = arith.constant 0 : i32
    %c0_i32_0 = arith.constant 0 : i32
    %c0_i32_1 = arith.constant 0 : i32
    %c0_i32_2 = arith.constant 0 : i32
    return %c0_i32, %c0_i32_0, %c0_i32_1 : i32, i32, i32
  }
  func.func @transform_9(%arg0: i32) -> (i32, i32, i32) {
    %c0_i32 = arith.constant 0 : i32
    %c0_i32_0 = arith.constant 0 : i32
    %c0_i32_1 = arith.constant 0 : i32
    %c0_i32_2 = arith.constant 0 : i32
    return %c0_i32, %c0_i32_0, %c0_i32_1 : i32, i32, i32
  }
  func.func @transform_10(%arg0: i32) -> (i32, i32) {
    %c0_i32 = arith.constant 0 : i32
    %c0_i32_0 = arith.constant 0 : i32
    %c0_i32_1 = arith.constant 0 : i32
    return %c0_i32, %c0_i32_0 : i32, i32
  }
  func.func @transform_11(%arg0: i32) -> (i32, i32) {
    %c0_i32 = arith.constant 0 : i32
    %c0_i32_0 = arith.constant 0 : i32
    %c0_i32_1 = arith.constant 0 : i32
    return %c0_i32, %c0_i32_0 : i32, i32
  }
  func.func @transform_12(%arg0: i32) -> (i32, i32) {
    %c0_i32 = arith.constant 0 : i32
    %c0_i32_0 = arith.constant 0 : i32
    %c0_i32_1 = arith.constant 0 : i32
    return %c0_i32, %c0_i32_0 : i32, i32
  }
  func.func @transform_13(%arg0: i32) -> (i32, i32) {
    %c0_i32 = arith.constant 0 : i32
    %c0_i32_0 = arith.constant 0 : i32
    %c0_i32_1 = arith.constant 0 : i32
    return %c0_i32, %c0_i32_0 : i32, i32
  }
  func.func @transform_14(%arg0: i32) -> (i32, i32) {
    %c0_i32 = arith.constant 0 : i32
    %c0_i32_0 = arith.constant 0 : i32
    %c0_i32_1 = arith.constant 0 : i32
    return %c0_i32, %c0_i32_0 : i32, i32
  }
  func.func @transform_15(%arg0: i32) -> (i32, i32, i32) {
    %c0_i32 = arith.constant 0 : i32
    %c0_i32_0 = arith.constant 0 : i32
    %c0_i32_1 = arith.constant 0 : i32
    return %arg0, %c0_i32, %c0_i32_0 : i32, i32, i32
  }
}

</mosaic_0001>

<llo_original>
// kernel: lenet_forward.1
$region0: #{lenet_forward.1}
  #allocation0 [shape = 'u32[]', space=smem, size = 0x4, offset = 0x4, fixed_abs, tag = 'smem constant byte address 0x4 - core index']
  #allocation1 [shape = 'u32[144,128]{1,0:T(1,128)}', space=vmem, size = 0x12000, scoped, tag = 'internal scratch']
  #allocation2 [shape = 'f32[32,32]{1,0:T(8,128)}', space=vmem, size = 0x4000, scoped, tag = 'scratch operand']
  #allocation3 [shape = 'f32[14,84]{1,0:T(8,128)}', space=vmem, size = 0x2000, scoped, tag = 'scratch operand']
  #allocation4 [shape = 'f32[5,80]{1,0:T(8,128)}', space=vmem, size = 0x1000, scoped, tag = 'scratch operand']
  %s0 = inlined_call_operand.vmem [shape: f32[2,32,32], index: 0, kind: input, shape index: {}]
  %s1 = inlined_call_operand.vmem [shape: bf16[5,32,84], index: 1, kind: input, shape index: {}]
  %s2 = inlined_call_operand.vmem [shape: bf16[5,32,84], index: 2, kind: input, shape index: {}]
  %s3 = inlined_call_operand.vmem [shape: f32[1,84], index: 3, kind: input, shape index: {}]
  %s4 = inlined_call_operand.vmem [shape: f32[2,14,28], index: 4, kind: input, shape index: {}]
  %s5 = inlined_call_operand.vmem [shape: bf16[5,84,80], index: 5, kind: input, shape index: {}]
  %s6 = inlined_call_operand.vmem [shape: bf16[5,84,80], index: 6, kind: input, shape index: {}]
  %s7 = inlined_call_operand.vmem [shape: f32[1,80], index: 7, kind: input, shape index: {}]
  %s8 = inlined_call_operand.vmem [shape: f32[2,5,10], index: 8, kind: input, shape index: {}]
  %s9 = inlined_call_operand.vmem [shape: bf16[5,80,120], index: 9, kind: input, shape index: {}]
  %s10 = inlined_call_operand.vmem [shape: f32[1,120], index: 10, kind: input, shape index: {}]
  %s11 = inlined_call_operand.vmem [shape: bf16[120,84], index: 11, kind: input, shape index: {}]
  %s12 = inlined_call_operand.vmem [shape: f32[1,84], index: 12, kind: input, shape index: {}]
  %s13 = inlined_call_operand.vmem [shape: bf16[84,10], index: 13, kind: input, shape index: {}]
  %s14 = inlined_call_operand.vmem [shape: f32[1,10], index: 14, kind: input, shape index: {}]
  %s15 = inlined_call_operand.hbm [shape: f32[2,1,10], index: 15, kind: output, shape index: {}]
  %s16 = sld [smem:[#allocation0]]
  $region93: #{lenet_forward.1} parent=0
    _
  %s18 = ssub.s32 1, %s16
  %s19 = scalar_select 0, %s18, %s16
  $region1: #{lenet_forward.1} parent=0
    #allocation5 [shape = 'u8[1024]{0}', space=vmem, size = 0x400, scoped, tag = 'output window, operand 0']
    #allocation6 [shape = 's32[2]{0}', space=sflag, size = 0x8, scoped, tag = 'scoped memory for lenet_forward.1']
    %20 = vsyncpa [#allocation6], 0
    %s21 = scalar_lea.sflag [#allocation6], 1
    %22 = vsyncpa %s21, 0
    loop: start=0, step=1, limit=4
    $region2: #{lenet_forward.1} parent=1 // loop_pre_header
      _
    $region3: #{lenet_forward.1} parent=1 // loop_header
      %s24 = sphi 0, %s28
      %p25 = scmp.ge.s32.totalorder %s24, 4
      %s34 = sphi 0, %s36
      %s37 = sphi 0, %s34
      %s38 = sphi 0, %s37
      %s54 = sphi 0, %s38
      %s58 = sphi 0, %s58
      %s60 = sphi 0, %s58
      %s61 = sphi 0, %s60
      %s75 = sphi 0, %s61
      %s79 = sphi 0, %s79
      %s81 = sphi 0, %s79
      %s82 = sphi 0, %s81
      %s96 = sphi 0, %s82
      %s100 = sphi 0, %s100
      %s102 = sphi 0, %s100
      %s103 = sphi 0, %s102
      %s117 = sphi 0, %s103
      %s121 = sphi 0, %s121
      %s123 = sphi 0, %s121
      %s124 = sphi 0, %s123
      %s138 = sphi 0, %s124
      %s142 = sphi 0, %s142
      %s144 = sphi 0, %s142
      %s145 = sphi 0, %s144
      %s159 = sphi 0, %s145
      %s163 = sphi 0, %s163
      %s165 = sphi 0, %s163
      %s166 = sphi 0, %s165
      %s180 = sphi 0, %s166
      %s184 = sphi 0, %s184
      %s186 = sphi 0, %s184
      %s187 = sphi 0, %s186
      %s201 = sphi 0, %s187
      %s205 = sphi 0, %s205
      %s207 = sphi 0, %s205
      %s208 = sphi 0, %s207
      %s222 = sphi 0, %s208
      %s226 = sphi 0, %s226
      %s228 = sphi 0, %s226
      %s229 = sphi 0, %s228
      %s243 = sphi 0, %s229
      %s247 = sphi 0, %s247
      %s249 = sphi 0, %s247
      %s250 = sphi 0, %s249
      %s264 = sphi 0, %s250
      %s268 = sphi 0, %s268
      %s270 = sphi 0, %s268
      %s271 = sphi 0, %s270
      %s285 = sphi 0, %s271
      %s289 = sphi 0, %s289
      %s291 = sphi 0, %s289
      %s292 = sphi 0, %s291
      %s306 = sphi 0, %s292
      %s310 = sphi 0, %s310
      %s312 = sphi 0, %s310
      %s313 = sphi 0, %s312
      %s327 = sphi 0, %s313
      %s331 = sphi 0, %s331
      %s333 = sphi 0, %s331
      %s334 = sphi 0, %s333
      %s348 = sphi 0, %s334
      %s354 = sphi 0, %s356
      %s357 = sphi 0, %s354
      %s358 = sphi 0, %s357
      %s374 = sphi 0, %s358
    $region4: #{lenet_forward.1} parent=1 // loop_header_branch
      %27 = sbr.rel (%p25) target = $region8
    $region5: #{lenet_forward.1} parent=1 // loop_body
      %s29 = ssub.s32 %s24, 1
      %s30 = ssub.s32 %s24, 2
      %s31 = sadd.s32 %s24, 1
      %s32 = ssub.s32 %s24, %s31
      %p33 = scmp.eq.s32.totalorder %s32, 0
      %s35 = sadd.s32 %s34, 1
      %s36 = scalar_select %p33, %s34, %s35
      %p39 = pneg %p33
      %p40 = scmp.eq.s32.totalorder %s24, 1
      %p41 = por %p39, %p40
      %p42 = scmp.ne.s32.totalorder %s34, %s37
      %p43 = scmp.eq.s32.totalorder %s24, 0
      %p44 = por %p42, %p43
      %p45 = scmp.ne.s32.totalorder %s34, %s37
      %p46 = scmp.eq.s32.totalorder %s29, 1
      %p47 = por %p45, %p46
      %p48 = scmp.ne.s32.totalorder %s37, %s38
      %p49 = scmp.eq.s32.totalorder %s29, 0
      %p50 = por %p48, %p49
      %p51 = scmp.ne.s32.totalorder %s37, %s38
      %p52 = scmp.eq.s32.totalorder %s30, 1
      %p53 = por %p51, %p52
      %p55 = scmp.ne.s32.totalorder %s38, %s54
      %p56 = scmp.eq.s32.totalorder %s30, 0
      %p57 = por %p55, %p56
      %s59 = sadd.s32 %s58, 1
      %p62 = scmp.eq.s32.totalorder %s24, 1
      %p63 = scmp.ne.s32.totalorder %s58, %s60
      %p64 = scmp.eq.s32.totalorder %s24, 0
      %p65 = por %p63, %p64
      %p66 = scmp.ne.s32.totalorder %s58, %s60
      %p67 = scmp.eq.s32.totalorder %s29, 1
      %p68 = por %p66, %p67
      %p69 = scmp.ne.s32.totalorder %s60, %s61
      %p70 = scmp.eq.s32.totalorder %s29, 0
      %p71 = por %p69, %p70
      %p72 = scmp.ne.s32.totalorder %s60, %s61
      %p73 = scmp.eq.s32.totalorder %s30, 1
      %p74 = por %p72, %p73
      %p76 = scmp.ne.s32.totalorder %s61, %s75
      %p77 = scmp.eq.s32.totalorder %s30, 0
      %p78 = por %p76, %p77
      %s80 = sadd.s32 %s79, 1
      %p83 = scmp.eq.s32.totalorder %s24, 1
      %p84 = scmp.ne.s32.totalorder %s79, %s81
      %p85 = scmp.eq.s32.totalorder %s24, 0
      %p86 = por %p84, %p85
      %p87 = scmp.ne.s32.totalorder %s79, %s81
      %p88 = scmp.eq.s32.totalorder %s29, 1
      %p89 = por %p87, %p88
      %p90 = scmp.ne.s32.totalorder %s81, %s82
      %p91 = scmp.eq.s32.totalorder %s29, 0
      %p92 = por %p90, %p91
      %p93 = scmp.ne.s32.totalorder %s81, %s82
      %p94 = scmp.eq.s32.totalorder %s30, 1
      %p95 = por %p93, %p94
      %p97 = scmp.ne.s32.totalorder %s82, %s96
      %p98 = scmp.eq.s32.totalorder %s30, 0
      %p99 = por %p97, %p98
      %s101 = sadd.s32 %s100, 1
      %p104 = scmp.eq.s32.totalorder %s24, 1
      %p105 = scmp.ne.s32.totalorder %s100, %s102
      %p106 = scmp.eq.s32.totalorder %s24, 0
      %p107 = por %p105, %p106
      %p108 = scmp.ne.s32.totalorder %s100, %s102
      %p109 = scmp.eq.s32.totalorder %s29, 1
      %p110 = por %p108, %p109
      %p111 = scmp.ne.s32.totalorder %s102, %s103
      %p112 = scmp.eq.s32.totalorder %s29, 0
      %p113 = por %p111, %p112
      %p114 = scmp.ne.s32.totalorder %s102, %s103
      %p115 = scmp.eq.s32.totalorder %s30, 1
      %p116 = por %p114, %p115
      %p118 = scmp.ne.s32.totalorder %s103, %s117
      %p119 = scmp.eq.s32.totalorder %s30, 0
      %p120 = por %p118, %p119
      %s122 = sadd.s32 %s121, 1
      %p125 = scmp.eq.s32.totalorder %s24, 1
      %p126 = scmp.ne.s32.totalorder %s121, %s123
      %p127 = scmp.eq.s32.totalorder %s24, 0
      %p128 = por %p126, %p127
      %p129 = scmp.ne.s32.totalorder %s121, %s123
      %p130 = scmp.eq.s32.totalorder %s29, 1
      %p131 = por %p129, %p130
      %p132 = scmp.ne.s32.totalorder %s123, %s124
      %p133 = scmp.eq.s32.totalorder %s29, 0
      %p134 = por %p132, %p133
      %p135 = scmp.ne.s32.totalorder %s123, %s124
      %p136 = scmp.eq.s32.totalorder %s30, 1
      %p137 = por %p135, %p136
      %p139 = scmp.ne.s32.totalorder %s124, %s138
      %p140 = scmp.eq.s32.totalorder %s30, 0
      %p141 = por %p139, %p140
      %s143 = sadd.s32 %s142, 1
      %p146 = scmp.eq.s32.totalorder %s24, 1
      %p147 = scmp.ne.s32.totalorder %s142, %s144
      %p148 = scmp.eq.s32.totalorder %s24, 0
      %p149 = por %p147, %p148
      %p150 = scmp.ne.s32.totalorder %s142, %s144
      %p151 = scmp.eq.s32.totalorder %s29, 1
      %p152 = por %p150, %p151
      %p153 = scmp.ne.s32.totalorder %s144, %s145
      %p154 = scmp.eq.s32.totalorder %s29, 0
      %p155 = por %p153, %p154
      %p156 = scmp.ne.s32.totalorder %s144, %s145
      %p157 = scmp.eq.s32.totalorder %s30, 1
      %p158 = por %p156, %p157
      %p160 = scmp.ne.s32.totalorder %s145, %s159
      %p161 = scmp.eq.s32.totalorder %s30, 0
      %p162 = por %p160, %p161
      %s164 = sadd.s32 %s163, 1
      %p167 = scmp.eq.s32.totalorder %s24, 1
      %p168 = scmp.ne.s32.totalorder %s163, %s165
      %p169 = scmp.eq.s32.totalorder %s24, 0
      %p170 = por %p168, %p169
      %p171 = scmp.ne.s32.totalorder %s163, %s165
      %p172 = scmp.eq.s32.totalorder %s29, 1
      %p173 = por %p171, %p172
      %p174 = scmp.ne.s32.totalorder %s165, %s166
      %p175 = scmp.eq.s32.totalorder %s29, 0
      %p176 = por %p174, %p175
      %p177 = scmp.ne.s32.totalorder %s165, %s166
      %p178 = scmp.eq.s32.totalorder %s30, 1
      %p179 = por %p177, %p178
      %p181 = scmp.ne.s32.totalorder %s166, %s180
      %p182 = scmp.eq.s32.totalorder %s30, 0
      %p183 = por %p181, %p182
      %s185 = sadd.s32 %s184, 1
      %p188 = scmp.eq.s32.totalorder %s24, 1
      %p189 = scmp.ne.s32.totalorder %s184, %s186
      %p190 = scmp.eq.s32.totalorder %s24, 0
      %p191 = por %p189, %p190
      %p192 = scmp.ne.s32.totalorder %s184, %s186
      %p193 = scmp.eq.s32.totalorder %s29, 1
      %p194 = por %p192, %p193
      %p195 = scmp.ne.s32.totalorder %s186, %s187
      %p196 = scmp.eq.s32.totalorder %s29, 0
      %p197 = por %p195, %p196
      %p198 = scmp.ne.s32.totalorder %s186, %s187
      %p199 = scmp.eq.s32.totalorder %s30, 1
      %p200 = por %p198, %p199
      %p202 = scmp.ne.s32.totalorder %s187, %s201
      %p203 = scmp.eq.s32.totalorder %s30, 0
      %p204 = por %p202, %p203
      %s206 = sadd.s32 %s205, 1
      %p209 = scmp.eq.s32.totalorder %s24, 1
      %p210 = scmp.ne.s32.totalorder %s205, %s207
      %p211 = scmp.eq.s32.totalorder %s24, 0
      %p212 = por %p210, %p211
      %p213 = scmp.ne.s32.totalorder %s205, %s207
      %p214 = scmp.eq.s32.totalorder %s29, 1
      %p215 = por %p213, %p214
      %p216 = scmp.ne.s32.totalorder %s207, %s208
      %p217 = scmp.eq.s32.totalorder %s29, 0
      %p218 = por %p216, %p217
      %p219 = scmp.ne.s32.totalorder %s207, %s208
      %p220 = scmp.eq.s32.totalorder %s30, 1
      %p221 = por %p219, %p220
      %p223 = scmp.ne.s32.totalorder %s208, %s222
      %p224 = scmp.eq.s32.totalorder %s30, 0
      %p225 = por %p223, %p224
      %s227 = sadd.s32 %s226, 1
      %p230 = scmp.eq.s32.totalorder %s24, 1
      %p231 = scmp.ne.s32.totalorder %s226, %s228
      %p232 = scmp.eq.s32.totalorder %s24, 0
      %p233 = por %p231, %p232
      %p234 = scmp.ne.s32.totalorder %s226, %s228
      %p235 = scmp.eq.s32.totalorder %s29, 1
      %p236 = por %p234, %p235
      %p237 = scmp.ne.s32.totalorder %s228, %s229
      %p238 = scmp.eq.s32.totalorder %s29, 0
      %p239 = por %p237, %p238
      %p240 = scmp.ne.s32.totalorder %s228, %s229
      %p241 = scmp.eq.s32.totalorder %s30, 1
      %p242 = por %p240, %p241
      %p244 = scmp.ne.s32.totalorder %s229, %s243
      %p245 = scmp.eq.s32.totalorder %s30, 0
      %p246 = por %p244, %p245
      %s248 = sadd.s32 %s247, 1
      %p251 = scmp.eq.s32.totalorder %s24, 1
      %p252 = scmp.ne.s32.totalorder %s247, %s249
      %p253 = scmp.eq.s32.totalorder %s24, 0
      %p254 = por %p252, %p253
      %p255 = scmp.ne.s32.totalorder %s247, %s249
      %p256 = scmp.eq.s32.totalorder %s29, 1
      %p257 = por %p255, %p256
      %p258 = scmp.ne.s32.totalorder %s249, %s250
      %p259 = scmp.eq.s32.totalorder %s29, 0
      %p260 = por %p258, %p259
      %p261 = scmp.ne.s32.totalorder %s249, %s250
      %p262 = scmp.eq.s32.totalorder %s30, 1
      %p263 = por %p261, %p262
      %p265 = scmp.ne.s32.totalorder %s250, %s264
      %p266 = scmp.eq.s32.totalorder %s30, 0
      %p267 = por %p265, %p266
      %s269 = sadd.s32 %s268, 1
      %p272 = scmp.eq.s32.totalorder %s24, 1
      %p273 = scmp.ne.s32.totalorder %s268, %s270
      %p274 = scmp.eq.s32.totalorder %s24, 0
      %p275 = por %p273, %p274
      %p276 = scmp.ne.s32.totalorder %s268, %s270
      %p277 = scmp.eq.s32.totalorder %s29, 1
      %p278 = por %p276, %p277
      %p279 = scmp.ne.s32.totalorder %s270, %s271
      %p280 = scmp.eq.s32.totalorder %s29, 0
      %p281 = por %p279, %p280
      %p282 = scmp.ne.s32.totalorder %s270, %s271
      %p283 = scmp.eq.s32.totalorder %s30, 1
      %p284 = por %p282, %p283
      %p286 = scmp.ne.s32.totalorder %s271, %s285
      %p287 = scmp.eq.s32.totalorder %s30, 0
      %p288 = por %p286, %p287
      %s290 = sadd.s32 %s289, 1
      %p293 = scmp.eq.s32.totalorder %s24, 1
      %p294 = scmp.ne.s32.totalorder %s289, %s291
      %p295 = scmp.eq.s32.totalorder %s24, 0
      %p296 = por %p294, %p295
      %p297 = scmp.ne.s32.totalorder %s289, %s291
      %p298 = scmp.eq.s32.totalorder %s29, 1
      %p299 = por %p297, %p298
      %p300 = scmp.ne.s32.totalorder %s291, %s292
      %p301 = scmp.eq.s32.totalorder %s29, 0
      %p302 = por %p300, %p301
      %p303 = scmp.ne.s32.totalorder %s291, %s292
      %p304 = scmp.eq.s32.totalorder %s30, 1
      %p305 = por %p303, %p304
      %p307 = scmp.ne.s32.totalorder %s292, %s306
      %p308 = scmp.eq.s32.totalorder %s30, 0
      %p309 = por %p307, %p308
      %s311 = sadd.s32 %s310, 1
      %p314 = scmp.eq.s32.totalorder %s24, 1
      %p315 = scmp.ne.s32.totalorder %s310, %s312
      %p316 = scmp.eq.s32.totalorder %s24, 0
      %p317 = por %p315, %p316
      %p318 = scmp.ne.s32.totalorder %s310, %s312
      %p319 = scmp.eq.s32.totalorder %s29, 1
      %p320 = por %p318, %p319
      %p321 = scmp.ne.s32.totalorder %s312, %s313
      %p322 = scmp.eq.s32.totalorder %s29, 0
      %p323 = por %p321, %p322
      %p324 = scmp.ne.s32.totalorder %s312, %s313
      %p325 = scmp.eq.s32.totalorder %s30, 1
      %p326 = por %p324, %p325
      %p328 = scmp.ne.s32.totalorder %s313, %s327
      %p329 = scmp.eq.s32.totalorder %s30, 0
      %p330 = por %p328, %p329
      %s332 = sadd.s32 %s331, 1
      %p335 = scmp.eq.s32.totalorder %s24, 1
      %p336 = scmp.ne.s32.totalorder %s331, %s333
      %p337 = scmp.eq.s32.totalorder %s24, 0
      %p338 = por %p336, %p337
      %p339 = scmp.ne.s32.totalorder %s331, %s333
      %p340 = scmp.eq.s32.totalorder %s29, 1
      %p341 = por %p339, %p340
      %p342 = scmp.ne.s32.totalorder %s333, %s334
      %p343 = scmp.eq.s32.totalorder %s29, 0
      %p344 = por %p342, %p343
      %p345 = scmp.ne.s32.totalorder %s333, %s334
      %p346 = scmp.eq.s32.totalorder %s30, 1
      %p347 = por %p345, %p346
      %p349 = scmp.ne.s32.totalorder %s334, %s348
      %p350 = scmp.eq.s32.totalorder %s30, 0
      %p351 = por %p349, %p350
      %s352 = ssub.s32 %s24, %s31
      %p353 = scmp.eq.s32.totalorder %s352, 0
      %s355 = sadd.s32 %s354, 1
      %s356 = scalar_select %p353, %s354, %s355
      %p359 = pneg %p353
      %p360 = scmp.eq.s32.totalorder %s24, 1
      %p361 = por %p359, %p360
      %p362 = scmp.ne.s32.totalorder %s354, %s357
      %p363 = scmp.eq.s32.totalorder %s24, 0
      %p364 = por %p362, %p363
      %p365 = scmp.ne.s32.totalorder %s354, %s357
      %p366 = scmp.eq.s32.totalorder %s29, 1
      %p367 = por %p365, %p366
      %p368 = scmp.ne.s32.totalorder %s357, %s358
      %p369 = scmp.eq.s32.totalorder %s29, 0
      %p370 = por %p368, %p369
      %p371 = scmp.ne.s32.totalorder %s357, %s358
      %p372 = scmp.eq.s32.totalorder %s30, 1
      %p373 = por %p371, %p372
      %p375 = scmp.ne.s32.totalorder %s358, %s374
      %p376 = scmp.eq.s32.totalorder %s30, 0
      %p377 = por %p375, %p376
      %p378 = scmp.le.s32.totalorder 1, %s24
      %p379 = scmp.lt.s32.totalorder %s24, 3
      %p380 = pnand %p378, %p379
      %p381 = pneg %p380
      // Predicated region
      $region9: #{lenet_forward.1} parent=5 // pred_check
        _
      $region10: #{lenet_forward.1} parent=5 // pred_check_branch
        %383 = sbr.rel (%p380) target = $region12
      $region11: #{lenet_forward.1} parent=5 // pred_region
        %s384 = ssub.s32 %s24, 1
        // Predicated region
        $region13: #{lenet_forward.1} parent=11 // pred_check
          %p385 = pneg %p71
        $region14: #{lenet_forward.1} parent=11 // pred_check_branch
          %387 = sbr.rel (%p385) target = $region16
        $region15: #{lenet_forward.1} parent=11 // pred_region
          _
        $region16: #{lenet_forward.1} parent=11 // pred_fallthru
          _
        // Predicated region
        $region17: #{lenet_forward.1} parent=11 // pred_check
          %p388 = pneg %p92
        $region18: #{lenet_forward.1} parent=11 // pred_check_branch
          %390 = sbr.rel (%p388) target = $region20
        $region19: #{lenet_forward.1} parent=11 // pred_region
          _
        $region20: #{lenet_forward.1} parent=11 // pred_fallthru
          _
        // Predicated region
        $region21: #{lenet_forward.1} parent=11 // pred_check
          %p391 = pneg %p113
        $region22: #{lenet_forward.1} parent=11 // pred_check_branch
          %393 = sbr.rel (%p391) target = $region24
        $region23: #{lenet_forward.1} parent=11 // pred_region
          _
        $region24: #{lenet_forward.1} parent=11 // pred_fallthru
          _
        // Predicated region
        $region25: #{lenet_forward.1} parent=11 // pred_check
          %p394 = pneg %p134
        $region26: #{lenet_forward.1} parent=11 // pred_check_branch
          %396 = sbr.rel (%p394) target = $region28
        $region27: #{lenet_forward.1} parent=11 // pred_region
          _
        $region28: #{lenet_forward.1} parent=11 // pred_fallthru
          _
        // Predicated region
        $region29: #{lenet_forward.1} parent=11 // pred_check
          %p397 = pneg %p155
        $region30: #{lenet_forward.1} parent=11 // pred_check_branch
          %399 = sbr.rel (%p397) target = $region32
        $region31: #{lenet_forward.1} parent=11 // pred_region
          _
        $region32: #{lenet_forward.1} parent=11 // pred_fallthru
          _
        // Predicated region
        $region33: #{lenet_forward.1} parent=11 // pred_check
          %p400 = pneg %p176
        $region34: #{lenet_forward.1} parent=11 // pred_check_branch
          %402 = sbr.rel (%p400) target = $region36
        $region35: #{lenet_forward.1} parent=11 // pred_region
          _
        $region36: #{lenet_forward.1} parent=11 // pred_fallthru
          _
        // Predicated region
        $region37: #{lenet_forward.1} parent=11 // pred_check
          %p403 = pneg %p197
        $region38: #{lenet_forward.1} parent=11 // pred_check_branch
          %405 = sbr.rel (%p403) target = $region40
        $region39: #{lenet_forward.1} parent=11 // pred_region
          _
        $region40: #{lenet_forward.1} parent=11 // pred_fallthru
          _
        // Predicated region
        $region41: #{lenet_forward.1} parent=11 // pred_check
          %p406 = pneg %p218
        $region42: #{lenet_forward.1} parent=11 // pred_check_branch
          %408 = sbr.rel (%p406) target = $region44
        $region43: #{lenet_forward.1} parent=11 // pred_region
          _
        $region44: #{lenet_forward.1} parent=11 // pred_fallthru
          _
        // Predicated region
        $region45: #{lenet_forward.1} parent=11 // pred_check
          %p409 = pneg %p239
        $region46: #{lenet_forward.1} parent=11 // pred_check_branch
          %411 = sbr.rel (%p409) target = $region48
        $region47: #{lenet_forward.1} parent=11 // pred_region
          _
        $region48: #{lenet_forward.1} parent=11 // pred_fallthru
          _
        // Predicated region
        $region49: #{lenet_forward.1} parent=11 // pred_check
          %p412 = pneg %p260
        $region50: #{lenet_forward.1} parent=11 // pred_check_branch
          %414 = sbr.rel (%p412) target = $region52
        $region51: #{lenet_forward.1} parent=11 // pred_region
          _
        $region52: #{lenet_forward.1} parent=11 // pred_fallthru
          _
        // Predicated region
        $region53: #{lenet_forward.1} parent=11 // pred_check
          %p415 = pneg %p281
        $region54: #{lenet_forward.1} parent=11 // pred_check_branch
          %417 = sbr.rel (%p415) target = $region56
        $region55: #{lenet_forward.1} parent=11 // pred_region
          _
        $region56: #{lenet_forward.1} parent=11 // pred_fallthru
          _
        // Predicated region
        $region57: #{lenet_forward.1} parent=11 // pred_check
          %p418 = pneg %p302
        $region58: #{lenet_forward.1} parent=11 // pred_check_branch
          %420 = sbr.rel (%p418) target = $region60
        $region59: #{lenet_forward.1} parent=11 // pred_region
          _
        $region60: #{lenet_forward.1} parent=11 // pred_fallthru
          _
        // Predicated region
        $region61: #{lenet_forward.1} parent=11 // pred_check
          %p421 = pneg %p323
        $region62: #{lenet_forward.1} parent=11 // pred_check_branch
          %423 = sbr.rel (%p421) target = $region64
        $region63: #{lenet_forward.1} parent=11 // pred_region
          _
        $region64: #{lenet_forward.1} parent=11 // pred_fallthru
          _
        // Predicated region
        $region65: #{lenet_forward.1} parent=11 // pred_check
          %p424 = pneg %p344
        $region66: #{lenet_forward.1} parent=11 // pred_check_branch
          %426 = sbr.rel (%p424) target = $region68
        $region67: #{lenet_forward.1} parent=11 // pred_region
          _
        $region68: #{lenet_forward.1} parent=11 // pred_fallthru
          _
      $region12: #{lenet_forward.1} parent=5 // pred_fallthru
        _
      %p427 = scmp.lt.s32.totalorder %s24, 2
      // Predicated region
      $region69: #{lenet_forward.1} parent=5 // pred_check
        %p428 = pneg %p427
      $region70: #{lenet_forward.1} parent=5 // pred_check_branch
        %430 = sbr.rel (%p428) target = $region72
      $region71: #{lenet_forward.1} parent=5 // pred_region
        // Predicated region
        $region73: #{lenet_forward.1} parent=71 // pred_check
          %p431 = pneg %p44
        $region74: #{lenet_forward.1} parent=71 // pred_check_branch
          %433 = sbr.rel (%p431) target = $region76
        $region75: #{lenet_forward.1} parent=71 // pred_region
          %p434 = scmp.lt.s32.totalorder %s24, 1
          %s435 = scalar_select %p434, %s24, 1
          %s436 = smul.addr %s435, 4
          %s437 = smul.addr %s436, 8
          %s438 = scalar_lea.vmem %s0, %s437
        $region76: #{lenet_forward.1} parent=71 // pred_fallthru
          _
      $region72: #{lenet_forward.1} parent=5 // pred_fallthru
        _
      %p439 = scmp.le.s32.totalorder 1, %s24
      %p440 = scmp.lt.s32.totalorder %s24, 3
      %p441 = pnand %p439, %p440
      %p442 = pneg %p441
      // Predicated region
      $region77: #{lenet_forward.1} parent=5 // pred_check
        _
      $region78: #{lenet_forward.1} parent=5 // pred_check_branch
        %444 = sbr.rel (%p441) target = $region80
      $region79: #{lenet_forward.1} parent=5 // pred_region
        %s445 = ssub.s32 %s24, 1
        %p446 = scmp.lt.s32.totalorder %s29, 1
        %s447 = scalar_select %p446, %s29, 1
        %s448 = smul.addr %s447, 4
        %s449 = smul.addr %s448, 8
        %s450 = scalar_lea.vmem %s0, %s449
        %p451 = pneg %p50
        %p452 = pneg %p47
        %p453 = pneg %p71
        %p454 = pneg %p68
        %p455 = pneg %p92
        %p456 = pneg %p89
        %p457 = pneg %p113
        %p458 = pneg %p110
        %p459 = pneg %p134
        %p460 = pneg %p131
        %p461 = pneg %p155
        %p462 = pneg %p152
        %p463 = pneg %p176
        %p464 = pneg %p173
        %p465 = pneg %p197
        %p466 = pneg %p194
        %p467 = pneg %p218
        %p468 = pneg %p215
        %p469 = pneg %p239
        %p470 = pneg %p236
        %p471 = pneg %p260
        %p472 = pneg %p257
        %p473 = pneg %p281
        %p474 = pneg %p278
        %p475 = pneg %p302
        %p476 = pneg %p299
        %p477 = pneg %p323
        %p478 = pneg %p320
        %p479 = pneg %p344
        %p480 = pneg %p341
        %p481 = pneg %p370
        %p482 = pneg %p367
        %s483 = sand.u32 %s357, 1
        %s484 = scalar_lea.sflag [#allocation6], %s483
        %s485 = sand.u32 %s357, 1
        %s486 = scalar_lea.vmem [#allocation5], %s485
        %p487 = scmp.lt.s32.totalorder %s29, 1
        %s488 = scalar_select %p487, %s29, 1
        %s489 = smul.addr %s488, 4
        %s490 = smul.addr %s489, 8
        %s491 = scalar_lea.vmem %s0, %s490
        %v493 = vld [vmem:[%s491] sm:$0xff]
        %v494 = vld [vmem:[%s491 + $0x8] sm:$0xff]
        %v495 = vld [vmem:[%s491 + $0x10] sm:$0xff]
        %v496 = vld [vmem:[%s491 + $0x18] sm:$0xff]
        %vm497 = vcmask 261120
        %498 = vst.msk [vmem:[#allocation2] sm:$0xff] %vm497, %v493
        %499 = vst.msk [vmem:[#allocation2 + $0x8] sm:$0xff] %vm497, %v494
        %500 = vst.msk [vmem:[#allocation2 + $0x10] sm:$0xff] %vm497, %v495
        %501 = vst.msk [vmem:[#allocation2 + $0x18] sm:$0xff] %vm497, %v496
        %v502 = vld [vmem:[#allocation2] sm:$0xff]
        %v503 = vld [vmem:[#allocation2 + $0x8] sm:$0xff]
        %v504 = vld [vmem:[#allocation2 + $0x10] sm:$0xff]
        %v505 = vld [vmem:[#allocation2 + $0x18] sm:$0xf]
        %v506 = vpack.c.bf16 %v503, %v502
        %v507 = vpack.c.bf16 %v505, %v504
        %v508 = vld [vmem:[%s1] sm:$0xf]
        %v509 = vld [vmem:[%s1 + $0x4] sm:$0xf]
        %v510 = vld [vmem:[%s1 + $0x8] sm:$0xf]
        %v511 = vld [vmem:[%s1 + $0xc] sm:$0xf]
        %v512 = vld [vmem:[%s2] sm:$0xf]
        %v513 = vld [vmem:[%s2 + $0x4] sm:$0xf]
        %v514 = vld [vmem:[%s2 + $0x8] sm:$0xf]
        %v515 = vld [vmem:[%s2 + $0xc] sm:$0xf]
        %v516 = vld [vmem:[#allocation2 + $0x1] sm:$0xff]
        %v517 = vld [vmem:[#allocation2 + $0x9] sm:$0xff]
        %v518 = vld [vmem:[#allocation2 + $0x11] sm:$0xff]
        %v519 = vld [vmem:[#allocation2 + $0x19] sm:$0xf]
        %v520 = vpack.c.bf16 %v517, %v516
        %v521 = vpack.c.bf16 %v519, %v518
        %s522 = scalar_lea.vmem %s1, 16
        %v523 = vld [vmem:[%s522] sm:$0xf]
        %v524 = vld [vmem:[%s522 + $0x4] sm:$0xf]
        %v525 = vld [vmem:[%s522 + $0x8] sm:$0xf]
        %v526 = vld [vmem:[%s522 + $0xc] sm:$0xf]
        %v531 = vunpack.c.l.b16 %v523
        %v532 = vunpack.c.l.b16 %v524
        %v533 = vunpack.c.l.b16 %v525
        %v534 = vunpack.c.l.b16 %v526
        %v535 = vpack.c.b16 %v532, %v531
        %v536 = vpack.c.b16 %v534, %v533
        %v540 = vsel %vm497, %v520, 0
        %v543 = vsel %vm497, %v521, 0
        %545 = vmatprep.subr.bf16.mxu0 0
        %546 = vmatpush1.bf16.msra.mxu0 %v535
        %547 = vmatprep.subr.bf16.mxu0 0
        %548 = vmatpush1.bf16.msra.mxu0 %v536
        %549 = vmatprep.subr.bf16.mxu0 0
        %550 = vmatpush1.bf16.msra.mxu0 0
        %551 = vmatprep.subr.bf16.mxu0 0
        %552 = vmatpush1.bf16.msra.mxu0 0
        %553 = vmatprep.subr.bf16.mxu0 0
        %554 = vmatpush1.bf16.msra.mxu0 0
        %555 = vmatprep.subr.bf16.mxu0 0
        %556 = vmatpush1.bf16.msra.mxu0 0
        %557 = vmatprep.subr.bf16.mxu0 0
        %558 = vmatpush1.bf16.msra.mxu0 0
        %559 = vmatprep.subr.bf16.mxu0 0
        %560 = vmatpush1.bf16.msra.mxu0 0
        %561 = vmatprep.subr.bf16.mxu0 0
        %562 = vmatpush1.bf16.msra.mxu0 0
        %563 = vmatprep.subr.bf16.mxu0 0
        %564 = vmatpush1.bf16.msra.mxu0 0
        %565 = vmatprep.subr.bf16.mxu0 0
        %566 = vmatpush1.bf16.msra.mxu0 0
        %567 = vmatprep.subr.bf16.mxu0 0
        %568 = vmatpush1.bf16.msra.mxu0 0
        %569 = vmatprep.subr.bf16.mxu0 0
        %570 = vmatpush1.bf16.msra.mxu0 0
        %571 = vmatprep.subr.bf16.mxu0 0
        %572 = vmatpush1.bf16.msra.mxu0 0
        %573 = vmatprep.subr.bf16.mxu0 0
        %574 = vmatpush1.bf16.msra.mxu0 0
        %575 = vmatprep.subr.bf16.mxu0 0
        %576 = vmatpush1.bf16.msra.mxu0 0
        %577 = vmatprep.mubr.bf16.mxu0 0
        %578 = vmatmul.mubr.bf16.gmra.mrb[0].mxu0 %v540
        %v579 = vpop.f32.mrb[0].mxu0
        %v580 = vadd.f32 0.0, %v579
        %v581 = vpop.f32.mrb[0].mxu0
        %v582 = vpop.f32.mrb[0].mxu0
        %v583 = vadd.f32 0.0, %v582
        %v584 = vpop.f32.mrb[0].mxu0
        %585 = vmatprep.mubr.bf16.mxu0 0
        %586 = vmatmul.mubr.bf16.gmra.mrb[0].mxu0 %v543
        %v587 = vpop.f32.mrb[0].mxu0
        %v588 = vadd.f32 0.0, %v587
        %v589 = vpop.f32.mrb[0].mxu0
        %v590 = vpop.f32.mrb[0].mxu0
        %v591 = vadd.f32 0.0, %v590
        %v592 = vpop.f32.mrb[0].mxu0
        %593 = vdwg.mxu0
        %v598 = vunpack.c.l.b16 %v508
        %v599 = vunpack.c.l.b16 %v509
        %v600 = vunpack.c.l.b16 %v510
        %v601 = vunpack.c.l.b16 %v511
        %v602 = vpack.c.b16 %v599, %v598
        %v603 = vpack.c.b16 %v601, %v600
        %v607 = vsel %vm497, %v506, 0
        %v610 = vsel %vm497, %v507, 0
        %612 = vmatprep.subr.bf16.mxu0 0
        %613 = vmatpush1.bf16.msra.mxu0 %v602
        %614 = vmatprep.subr.bf16.mxu0 0
        %615 = vmatpush1.bf16.msra.mxu0 %v603
        %616 = vmatprep.subr.bf16.mxu0 0
        %617 = vmatpush1.bf16.msra.mxu0 0
        %618 = vmatprep.subr.bf16.mxu0 0
        %619 = vmatpush1.bf16.msra.mxu0 0
        %620 = vmatprep.subr.bf16.mxu0 0
        %621 = vmatpush1.bf16.msra.mxu0 0
        %622 = vmatprep.subr.bf16.mxu0 0
        %623 = vmatpush1.bf16.msra.mxu0 0
        %624 = vmatprep.subr.bf16.mxu0 0
        %625 = vmatpush1.bf16.msra.mxu0 0
        %626 = vmatprep.subr.bf16.mxu0 0
        %627 = vmatpush1.bf16.msra.mxu0 0
        %628 = vmatprep.subr.bf16.mxu0 0
        %629 = vmatpush1.bf16.msra.mxu0 0
        %630 = vmatprep.subr.bf16.mxu0 0
        %631 = vmatpush1.bf16.msra.mxu0 0
        %632 = vmatprep.subr.bf16.mxu0 0
        %633 = vmatpush1.bf16.msra.mxu0 0
        %634 = vmatprep.subr.bf16.mxu0 0
        %635 = vmatpush1.bf16.msra.mxu0 0
        %636 = vmatprep.subr.bf16.mxu0 0
        %637 = vmatpush1.bf16.msra.mxu0 0
        %638 = vmatprep.subr.bf16.mxu0 0
        %639 = vmatpush1.bf16.msra.mxu0 0
        %640 = vmatprep.subr.bf16.mxu0 0
        %641 = vmatpush1.bf16.msra.mxu0 0
        %642 = vmatprep.subr.bf16.mxu0 0
        %643 = vmatpush1.bf16.msra.mxu0 0
        %644 = vmatprep.mubr.bf16.mxu0 0
        %645 = vmatmul.mubr.bf16.gmra.mrb[0].mxu0 %v607
        %v646 = vpop.f32.mrb[0].mxu0
        %v647 = vadd.f32 %v580, %v646
        %v648 = vpop.f32.mrb[0].mxu0
        %v649 = vpop.f32.mrb[0].mxu0
        %v650 = vadd.f32 %v583, %v649
        %v651 = vpop.f32.mrb[0].mxu0
        %652 = vmatprep.mubr.bf16.mxu0 0
        %653 = vmatmul.mubr.bf16.gmra.mrb[0].mxu0 %v610
        %v654 = vpop.f32.mrb[0].mxu0
        %v655 = vadd.f32 %v588, %v654
        %v656 = vpop.f32.mrb[0].mxu0
        %v657 = vpop.f32.mrb[0].mxu0
        %v658 = vadd.f32 %v591, %v657
        %v659 = vpop.f32.mrb[0].mxu0
        %660 = vdwg.mxu0
        %s661 = scalar_lea.vmem %s2, 16
        %v662 = vld [vmem:[%s661] sm:$0xf]
        %v663 = vld [vmem:[%s661 + $0x4] sm:$0xf]
        %v664 = vld [vmem:[%s661 + $0x8] sm:$0xf]
        %v665 = vld [vmem:[%s661 + $0xc] sm:$0xf]
        %v670 = vunpack.c.l.b16 %v662
        %v671 = vunpack.c.l.b16 %v663
        %v672 = vunpack.c.l.b16 %v664
        %v673 = vunpack.c.l.b16 %v665
        %v674 = vpack.c.b16 %v671, %v670
        %v675 = vpack.c.b16 %v673, %v672
        %678 = vmatprep.subr.bf16.mxu0 0
        %679 = vmatpush1.bf16.msra.mxu0 %v674
        %680 = vmatprep.subr.bf16.mxu0 0
        %681 = vmatpush1.bf16.msra.mxu0 %v675
        %682 = vmatprep.subr.bf16.mxu0 0
        %683 = vmatpush1.bf16.msra.mxu0 0
        %684 = vmatprep.subr.bf16.mxu0 0
        %685 = vmatpush1.bf16.msra.mxu0 0
        %686 = vmatprep.subr.bf16.mxu0 0
        %687 = vmatpush1.bf16.msra.mxu0 0
        %688 = vmatprep.subr.bf16.mxu0 0
        %689 = vmatpush1.bf16.msra.mxu0 0
        %690 = vmatprep.subr.bf16.mxu0 0
        %691 = vmatpush1.bf16.msra.mxu0 0
        %692 = vmatprep.subr.bf16.mxu0 0
        %693 = vmatpush1.bf16.msra.mxu0 0
        %694 = vmatprep.subr.bf16.mxu0 0
        %695 = vmatpush1.bf16.msra.mxu0 0
        %696 = vmatprep.subr.bf16.mxu0 0
        %697 = vmatpush1.bf16.msra.mxu0 0
        %698 = vmatprep.subr.bf16.mxu0 0
        %699 = vmatpush1.bf16.msra.mxu0 0
        %700 = vmatprep.subr.bf16.mxu0 0
        %701 = vmatpush1.bf16.msra.mxu0 0
        %702 = vmatprep.subr.bf16.mxu0 0
        %703 = vmatpush1.bf16.msra.mxu0 0
        %704 = vmatprep.subr.bf16.mxu0 0
        %705 = vmatpush1.bf16.msra.mxu0 0
        %706 = vmatprep.subr.bf16.mxu0 0
        %707 = vmatpush1.bf16.msra.mxu0 0
        %708 = vmatprep.subr.bf16.mxu0 0
        %709 = vmatpush1.bf16.msra.mxu0 0
        %710 = vmatprep.mubr.bf16.mxu0 0
        %711 = vmatmul.mubr.bf16.gmra.mrb[0].mxu0 %v540
        %v712 = vpop.f32.mrb[0].mxu0
        %v713 = vadd.f32 0.0, %v712
        %v714 = vpop.f32.mrb[0].mxu0
        %v715 = vpop.f32.mrb[0].mxu0
        %v716 = vadd.f32 0.0, %v715
        %v717 = vpop.f32.mrb[0].mxu0
        %718 = vmatprep.mubr.bf16.mxu0 0
        %719 = vmatmul.mubr.bf16.gmra.mrb[0].mxu0 %v543
        %v720 = vpop.f32.mrb[0].mxu0
        %v721 = vadd.f32 0.0, %v720
        %v722 = vpop.f32.mrb[0].mxu0
        %v723 = vpop.f32.mrb[0].mxu0
        %v724 = vadd.f32 0.0, %v723
        %v725 = vpop.f32.mrb[0].mxu0
        %726 = vdwg.mxu0
        %v731 = vunpack.c.l.b16 %v512
        %v732 = vunpack.c.l.b16 %v513
        %v733 = vunpack.c.l.b16 %v514
        %v734 = vunpack.c.l.b16 %v515
        %v735 = vpack.c.b16 %v732, %v731
        %v736 = vpack.c.b16 %v734, %v733
        %739 = vmatprep.subr.bf16.mxu0 0
        %740 = vmatpush1.bf16.msra.mxu0 %v735
        %741 = vmatprep.subr.bf16.mxu0 0
        %742 = vmatpush1.bf16.msra.mxu0 %v736
        %743 = vmatprep.subr.bf16.mxu0 0
        %744 = vmatpush1.bf16.msra.mxu0 0
        %745 = vmatprep.subr.bf16.mxu0 0
        %746 = vmatpush1.bf16.msra.mxu0 0
        %747 = vmatprep.subr.bf16.mxu0 0
        %748 = vmatpush1.bf16.msra.mxu0 0
        %749 = vmatprep.subr.bf16.mxu0 0
        %750 = vmatpush1.bf16.msra.mxu0 0
        %751 = vmatprep.subr.bf16.mxu0 0
        %752 = vmatpush1.bf16.msra.mxu0 0
        %753 = vmatprep.subr.bf16.mxu0 0
        %754 = vmatpush1.bf16.msra.mxu0 0
        %755 = vmatprep.subr.bf16.mxu0 0
        %756 = vmatpush1.bf16.msra.mxu0 0
        %757 = vmatprep.subr.bf16.mxu0 0
        %758 = vmatpush1.bf16.msra.mxu0 0
        %759 = vmatprep.subr.bf16.mxu0 0
        %760 = vmatpush1.bf16.msra.mxu0 0
        %761 = vmatprep.subr.bf16.mxu0 0
        %762 = vmatpush1.bf16.msra.mxu0 0
        %763 = vmatprep.subr.bf16.mxu0 0
        %764 = vmatpush1.bf16.msra.mxu0 0
        %765 = vmatprep.subr.bf16.mxu0 0
        %766 = vmatpush1.bf16.msra.mxu0 0
        %767 = vmatprep.subr.bf16.mxu0 0
        %768 = vmatpush1.bf16.msra.mxu0 0
        %769 = vmatprep.subr.bf16.mxu0 0
        %770 = vmatpush1.bf16.msra.mxu0 0
        %771 = vmatprep.mubr.bf16.mxu0 0
        %772 = vmatmul.mubr.bf16.gmra.mrb[0].mxu0 %v607
        %v773 = vpop.f32.mrb[0].mxu0
        %v774 = vadd.f32 %v713, %v773
        %v775 = vpop.f32.mrb[0].mxu0
        %v776 = vpop.f32.mrb[0].mxu0
        %v777 = vadd.f32 %v716, %v776
        %v778 = vpop.f32.mrb[0].mxu0
        %779 = vmatprep.mubr.bf16.mxu0 0
        %780 = vmatmul.mubr.bf16.gmra.mrb[0].mxu0 %v610
        %v781 = vpop.f32.mrb[0].mxu0
        %v782 = vadd.f32 %v721, %v781
        %v783 = vpop.f32.mrb[0].mxu0
        %v784 = vpop.f32.mrb[0].mxu0
        %v785 = vadd.f32 %v724, %v784
        %v786 = vpop.f32.mrb[0].mxu0
        %787 = vdwg.mxu0
        %v788 = vld [vmem:[#allocation2 + $0x2] sm:$0xff]
        %v789 = vld [vmem:[#allocation2 + $0xa] sm:$0xff]
        %v790 = vld [vmem:[#allocation2 + $0x12] sm:$0xff]
        %v791 = vld [vmem:[#allocation2 + $0x1a] sm:$0xf]
        %v792 = vpack.c.bf16 %v789, %v788
        %v793 = vpack.c.bf16 %v791, %v790
        %s794 = scalar_lea.vmem %s1, 32
        %v795 = vld [vmem:[%s794] sm:$0xf]
        %v796 = vld [vmem:[%s794 + $0x4] sm:$0xf]
        %v797 = vld [vmem:[%s794 + $0x8] sm:$0xf]
        %v798 = vld [vmem:[%s794 + $0xc] sm:$0xf]
        %v803 = vunpack.c.l.b16 %v795
        %v804 = vunpack.c.l.b16 %v796
        %v805 = vunpack.c.l.b16 %v797
        %v806 = vunpack.c.l.b16 %v798
        %v807 = vpack.c.b16 %v804, %v803
        %v808 = vpack.c.b16 %v806, %v805
        %v812 = vsel %vm497, %v792, 0
        %v815 = vsel %vm497, %v793, 0
        %817 = vmatprep.subr.bf16.mxu0 0
        %818 = vmatpush1.bf16.msra.mxu0 %v807
        %819 = vmatprep.subr.bf16.mxu0 0
        %820 = vmatpush1.bf16.msra.mxu0 %v808
        %821 = vmatprep.subr.bf16.mxu0 0
        %822 = vmatpush1.bf16.msra.mxu0 0
        %823 = vmatprep.subr.bf16.mxu0 0
        %824 = vmatpush1.bf16.msra.mxu0 0
        %825 = vmatprep.subr.bf16.mxu0 0
        %826 = vmatpush1.bf16.msra.mxu0 0
        %827 = vmatprep.subr.bf16.mxu0 0
        %828 = vmatpush1.bf16.msra.mxu0 0
        %829 = vmatprep.subr.bf16.mxu0 0
        %830 = vmatpush1.bf16.msra.mxu0 0
        %831 = vmatprep.subr.bf16.mxu0 0
        %832 = vmatpush1.bf16.msra.mxu0 0
        %833 = vmatprep.subr.bf16.mxu0 0
        %834 = vmatpush1.bf16.msra.mxu0 0
        %835 = vmatprep.subr.bf16.mxu0 0
        %836 = vmatpush1.bf16.msra.mxu0 0
        %837 = vmatprep.subr.bf16.mxu0 0
        %838 = vmatpush1.bf16.msra.mxu0 0
        %839 = vmatprep.subr.bf16.mxu0 0
        %840 = vmatpush1.bf16.msra.mxu0 0
        %841 = vmatprep.subr.bf16.mxu0 0
        %842 = vmatpush1.bf16.msra.mxu0 0
        %843 = vmatprep.subr.bf16.mxu0 0
        %844 = vmatpush1.bf16.msra.mxu0 0
        %845 = vmatprep.subr.bf16.mxu0 0
        %846 = vmatpush1.bf16.msra.mxu0 0
        %847 = vmatprep.subr.bf16.mxu0 0
        %848 = vmatpush1.bf16.msra.mxu0 0
        %849 = vmatprep.mubr.bf16.mxu0 0
        %850 = vmatmul.mubr.bf16.gmra.mrb[0].mxu0 %v812
        %v851 = vpop.f32.mrb[0].mxu0
        %v852 = vadd.f32 0.0, %v851
        %v853 = vpop.f32.mrb[0].mxu0
        %v854 = vpop.f32.mrb[0].mxu0
        %v855 = vadd.f32 0.0, %v854
        %v856 = vpop.f32.mrb[0].mxu0
        %857 = vmatprep.mubr.bf16.mxu0 0
        %858 = vmatmul.mubr.bf16.gmra.mrb[0].mxu0 %v815
        %v859 = vpop.f32.mrb[0].mxu0
        %v860 = vadd.f32 0.0, %v859
        %v861 = vpop.f32.mrb[0].mxu0
        %v862 = vpop.f32.mrb[0].mxu0
        %v863 = vadd.f32 0.0, %v862
        %v864 = vpop.f32.mrb[0].mxu0
        %865 = vdwg.mxu0
        %v866 = vadd.f32 %v647, %v852
        %v867 = vadd.f32 %v650, %v855
        %v868 = vadd.f32 %v655, %v860
        %v869 = vadd.f32 %v658, %v863
        %s870 = scalar_lea.vmem %s2, 32
        %v871 = vld [vmem:[%s870] sm:$0xf]
        %v872 = vld [vmem:[%s870 + $0x4] sm:$0xf]
        %v873 = vld [vmem:[%s870 + $0x8] sm:$0xf]
        %v874 = vld [vmem:[%s870 + $0xc] sm:$0xf]
        %v879 = vunpack.c.l.b16 %v871
        %v880 = vunpack.c.l.b16 %v872
        %v881 = vunpack.c.l.b16 %v873
        %v882 = vunpack.c.l.b16 %v874
        %v883 = vpack.c.b16 %v880, %v879
        %v884 = vpack.c.b16 %v882, %v881
        %887 = vmatprep.subr.bf16.mxu0 0
        %888 = vmatpush1.bf16.msra.mxu0 %v883
        %889 = vmatprep.subr.bf16.mxu0 0
        %890 = vmatpush1.bf16.msra.mxu0 %v884
        %891 = vmatprep.subr.bf16.mxu0 0
        %892 = vmatpush1.bf16.msra.mxu0 0
        %893 = vmatprep.subr.bf16.mxu0 0
        %894 = vmatpush1.bf16.msra.mxu0 0
        %895 = vmatprep.subr.bf16.mxu0 0
        %896 = vmatpush1.bf16.msra.mxu0 0
        %897 = vmatprep.subr.bf16.mxu0 0
        %898 = vmatpush1.bf16.msra.mxu0 0
        %899 = vmatprep.subr.bf16.mxu0 0
        %900 = vmatpush1.bf16.msra.mxu0 0
        %901 = vmatprep.subr.bf16.mxu0 0
        %902 = vmatpush1.bf16.msra.mxu0 0
        %903 = vmatprep.subr.bf16.mxu0 0
        %904 = vmatpush1.bf16.msra.mxu0 0
        %905 = vmatprep.subr.bf16.mxu0 0
        %906 = vmatpush1.bf16.msra.mxu0 0
        %907 = vmatprep.subr.bf16.mxu0 0
        %908 = vmatpush1.bf16.msra.mxu0 0
        %909 = vmatprep.subr.bf16.mxu0 0
        %910 = vmatpush1.bf16.msra.mxu0 0
        %911 = vmatprep.subr.bf16.mxu0 0
        %912 = vmatpush1.bf16.msra.mxu0 0
        %913 = vmatprep.subr.bf16.mxu0 0
        %914 = vmatpush1.bf16.msra.mxu0 0
        %915 = vmatprep.subr.bf16.mxu0 0
        %916 = vmatpush1.bf16.msra.mxu0 0
        %917 = vmatprep.subr.bf16.mxu0 0
        %918 = vmatpush1.bf16.msra.mxu0 0
        %919 = vmatprep.mubr.bf16.mxu0 0
        %920 = vmatmul.mubr.bf16.gmra.mrb[0].mxu0 %v812
        %v921 = vpop.f32.mrb[0].mxu0
        %v922 = vadd.f32 0.0, %v921
        %v923 = vpop.f32.mrb[0].mxu0
        %v924 = vpop.f32.mrb[0].mxu0
        %v925 = vadd.f32 0.0, %v924
        %v926 = vpop.f32.mrb[0].mxu0
        %927 = vmatprep.mubr.bf16.mxu0 0
        %928 = vmatmul.mubr.bf16.gmra.mrb[0].mxu0 %v815
        %v929 = vpop.f32.mrb[0].mxu0
        %v930 = vadd.f32 0.0, %v929
        %v931 = vpop.f32.mrb[0].mxu0
        %v932 = vpop.f32.mrb[0].mxu0
        %v933 = vadd.f32 0.0, %v932
        %v934 = vpop.f32.mrb[0].mxu0
        %935 = vdwg.mxu0
        %v936 = vadd.f32 %v774, %v922
        %v937 = vadd.f32 %v777, %v925
        %v938 = vadd.f32 %v782, %v930
        %v939 = vadd.f32 %v785, %v933
        %v940 = vld [vmem:[#allocation2 + $0x3] sm:$0xff]
        %v941 = vld [vmem:[#allocation2 + $0xb] sm:$0xff]
        %v942 = vld [vmem:[#allocation2 + $0x13] sm:$0xff]
        %v943 = vld [vmem:[#allocation2 + $0x1b] sm:$0xf]
        %v944 = vpack.c.bf16 %v941, %v940
        %v945 = vpack.c.bf16 %v943, %v942
        %s946 = scalar_lea.vmem %s1, 48
        %v947 = vld [vmem:[%s946] sm:$0xf]
        %v948 = vld [vmem:[%s946 + $0x4] sm:$0xf]
        %v949 = vld [vmem:[%s946 + $0x8] sm:$0xf]
        %v950 = vld [vmem:[%s946 + $0xc] sm:$0xf]
        %v955 = vunpack.c.l.b16 %v947
        %v956 = vunpack.c.l.b16 %v948
        %v957 = vunpack.c.l.b16 %v949
        %v958 = vunpack.c.l.b16 %v950
        %v959 = vpack.c.b16 %v956, %v955
        %v960 = vpack.c.b16 %v958, %v957
        %v964 = vsel %vm497, %v944, 0
        %v967 = vsel %vm497, %v945, 0
        %969 = vmatprep.subr.bf16.mxu0 0
        %970 = vmatpush1.bf16.msra.mxu0 %v959
        %971 = vmatprep.subr.bf16.mxu0 0
        %972 = vmatpush1.bf16.msra.mxu0 %v960
        %973 = vmatprep.subr.bf16.mxu0 0
        %974 = vmatpush1.bf16.msra.mxu0 0
        %975 = vmatprep.subr.bf16.mxu0 0
        %976 = vmatpush1.bf16.msra.mxu0 0
        %977 = vmatprep.subr.bf16.mxu0 0
        %978 = vmatpush1.bf16.msra.mxu0 0
        %979 = vmatprep.subr.bf16.mxu0 0
        %980 = vmatpush1.bf16.msra.mxu0 0
        %981 = vmatprep.subr.bf16.mxu0 0
        %982 = vmatpush1.bf16.msra.mxu0 0
        %983 = vmatprep.subr.bf16.mxu0 0
        %984 = vmatpush1.bf16.msra.mxu0 0
        %985 = vmatprep.subr.bf16.mxu0 0
        %986 = vmatpush1.bf16.msra.mxu0 0
        %987 = vmatprep.subr.bf16.mxu0 0
        %988 = vmatpush1.bf16.msra.mxu0 0
        %989 = vmatprep.subr.bf16.mxu0 0
        %990 = vmatpush1.bf16.msra.mxu0 0
        %991 = vmatprep.subr.bf16.mxu0 0
        %992 = vmatpush1.bf16.msra.mxu0 0
        %993 = vmatprep.subr.bf16.mxu0 0
        %994 = vmatpush1.bf16.msra.mxu0 0
        %995 = vmatprep.subr.bf16.mxu0 0
        %996 = vmatpush1.bf16.msra.mxu0 0
        %997 = vmatprep.subr.bf16.mxu0 0
        %998 = vmatpush1.bf16.msra.mxu0 0
        %999 = vmatprep.subr.bf16.mxu0 0
        %1000 = vmatpush1.bf16.msra.mxu0 0
        %1001 = vmatprep.mubr.bf16.mxu0 0
        %1002 = vmatmul.mubr.bf16.gmra.mrb[0].mxu0 %v964
        %v1003 = vpop.f32.mrb[0].mxu0
        %v1004 = vadd.f32 0.0, %v1003
        %v1005 = vpop.f32.mrb[0].mxu0
        %v1006 = vpop.f32.mrb[0].mxu0
        %v1007 = vadd.f32 0.0, %v1006
        %v1008 = vpop.f32.mrb[0].mxu0
        %1009 = vmatprep.mubr.bf16.mxu0 0
        %1010 = vmatmul.mubr.bf16.gmra.mrb[0].mxu0 %v967
        %v1011 = vpop.f32.mrb[0].mxu0
        %v1012 = vadd.f32 0.0, %v1011
        %v1013 = vpop.f32.mrb[0].mxu0
        %v1014 = vpop.f32.mrb[0].mxu0
        %v1015 = vadd.f32 0.0, %v1014
        %v1016 = vpop.f32.mrb[0].mxu0
        %1017 = vdwg.mxu0
        %v1018 = vadd.f32 %v866, %v1004
        %v1019 = vadd.f32 %v867, %v1007
        %v1020 = vadd.f32 %v868, %v1012
        %v1021 = vadd.f32 %v869, %v1015
        %s1022 = scalar_lea.vmem %s2, 48
        %v1023 = vld [vmem:[%s1022] sm:$0xf]
        %v1024 = vld [vmem:[%s1022 + $0x4] sm:$0xf]
        %v1025 = vld [vmem:[%s1022 + $0x8] sm:$0xf]
        %v1026 = vld [vmem:[%s1022 + $0xc] sm:$0xf]
        %v1031 = vunpack.c.l.b16 %v1023
        %v1032 = vunpack.c.l.b16 %v1024
        %v1033 = vunpack.c.l.b16 %v1025
        %v1034 = vunpack.c.l.b16 %v1026
        %v1035 = vpack.c.b16 %v1032, %v1031
        %v1036 = vpack.c.b16 %v1034, %v1033
        %1039 = vmatprep.subr.bf16.mxu0 0
        %1040 = vmatpush1.bf16.msra.mxu0 %v1035
        %1041 = vmatprep.subr.bf16.mxu0 0
        %1042 = vmatpush1.bf16.msra.mxu0 %v1036
        %1043 = vmatprep.subr.bf16.mxu0 0
        %1044 = vmatpush1.bf16.msra.mxu0 0
        %1045 = vmatprep.subr.bf16.mxu0 0
        %1046 = vmatpush1.bf16.msra.mxu0 0
        %1047 = vmatprep.subr.bf16.mxu0 0
        %1048 = vmatpush1.bf16.msra.mxu0 0
        %1049 = vmatprep.subr.bf16.mxu0 0
        %1050 = vmatpush1.bf16.msra.mxu0 0
        %1051 = vmatprep.subr.bf16.mxu0 0
        %1052 = vmatpush1.bf16.msra.mxu0 0
        %1053 = vmatprep.subr.bf16.mxu0 0
        %1054 = vmatpush1.bf16.msra.mxu0 0
        %1055 = vmatprep.subr.bf16.mxu0 0
        %1056 = vmatpush1.bf16.msra.mxu0 0
        %1057 = vmatprep.subr.bf16.mxu0 0
        %1058 = vmatpush1.bf16.msra.mxu0 0
        %1059 = vmatprep.subr.bf16.mxu0 0
        %1060 = vmatpush1.bf16.msra.mxu0 0
        %1061 = vmatprep.subr.bf16.mxu0 0
        %1062 = vmatpush1.bf16.msra.mxu0 0
        %1063 = vmatprep.subr.bf16.mxu0 0
        %1064 = vmatpush1.bf16.msra.mxu0 0
        %1065 = vmatprep.subr.bf16.mxu0 0
        %1066 = vmatpush1.bf16.msra.mxu0 0
        %1067 = vmatprep.subr.bf16.mxu0 0
        %1068 = vmatpush1.bf16.msra.mxu0 0
        %1069 = vmatprep.subr.bf16.mxu0 0
        %1070 = vmatpush1.bf16.msra.mxu0 0
        %1071 = vmatprep.mubr.bf16.mxu0 0
        %1072 = vmatmul.mubr.bf16.gmra.mrb[0].mxu0 %v964
        %v1073 = vpop.f32.mrb[0].mxu0
        %v1074 = vadd.f32 0.0, %v1073
        %v1075 = vpop.f32.mrb[0].mxu0
        %v1076 = vpop.f32.mrb[0].mxu0
        %v1077 = vadd.f32 0.0, %v1076
        %v1078 = vpop.f32.mrb[0].mxu0
        %1079 = vmatprep.mubr.bf16.mxu0 0
        %1080 = vmatmul.mubr.bf16.gmra.mrb[0].mxu0 %v967
        %v1081 = vpop.f32.mrb[0].mxu0
        %v1082 = vadd.f32 0.0, %v1081
        %v1083 = vpop.f32.mrb[0].mxu0
        %v1084 = vpop.f32.mrb[0].mxu0
        %v1085 = vadd.f32 0.0, %v1084
        %v1086 = vpop.f32.mrb[0].mxu0
        %1087 = vdwg.mxu0
        %v1088 = vadd.f32 %v936, %v1074
        %v1089 = vadd.f32 %v937, %v1077
        %v1090 = vadd.f32 %v938, %v1082
        %v1091 = vadd.f32 %v939, %v1085
        %v1092 = vld [vmem:[#allocation2 + $0x4] sm:$0xff]
        %v1093 = vld [vmem:[#allocation2 + $0xc] sm:$0xff]
        %v1094 = vld [vmem:[#allocation2 + $0x14] sm:$0xff]
        %v1095 = vld [vmem:[#allocation2 + $0x1c] sm:$0xf]
        %v1096 = vpack.c.bf16 %v1093, %v1092
        %v1097 = vpack.c.bf16 %v1095, %v1094
        %s1098 = scalar_lea.vmem %s1, 64
        %v1099 = vld [vmem:[%s1098] sm:$0xf]
        %v1100 = vld [vmem:[%s1098 + $0x4] sm:$0xf]
        %v1101 = vld [vmem:[%s1098 + $0x8] sm:$0xf]
        %v1102 = vld [vmem:[%s1098 + $0xc] sm:$0xf]
        %v1107 = vunpack.c.l.b16 %v1099
        %v1108 = vunpack.c.l.b16 %v1100
        %v1109 = vunpack.c.l.b16 %v1101
        %v1110 = vunpack.c.l.b16 %v1102
        %v1111 = vpack.c.b16 %v1108, %v1107
        %v1112 = vpack.c.b16 %v1110, %v1109
        %v1116 = vsel %vm497, %v1096, 0
        %v1119 = vsel %vm497, %v1097, 0
        %1121 = vmatprep.subr.bf16.mxu0 0
        %1122 = vmatpush1.bf16.msra.mxu0 %v1111
        %1123 = vmatprep.subr.bf16.mxu0 0
        %1124 = vmatpush1.bf16.msra.mxu0 %v1112
        %1125 = vmatprep.subr.bf16.mxu0 0
        %1126 = vmatpush1.bf16.msra.mxu0 0
        %1127 = vmatprep.subr.bf16.mxu0 0
        %1128 = vmatpush1.bf16.msra.mxu0 0
        %1129 = vmatprep.subr.bf16.mxu0 0
        %1130 = vmatpush1.bf16.msra.mxu0 0
        %1131 = vmatprep.subr.bf16.mxu0 0
        %1132 = vmatpush1.bf16.msra.mxu0 0
        %1133 = vmatprep.subr.bf16.mxu0 0
        %1134 = vmatpush1.bf16.msra.mxu0 0
        %1135 = vmatprep.subr.bf16.mxu0 0
        %1136 = vmatpush1.bf16.msra.mxu0 0
        %1137 = vmatprep.subr.bf16.mxu0 0
        %1138 = vmatpush1.bf16.msra.mxu0 0
        %1139 = vmatprep.subr.bf16.mxu0 0
        %1140 = vmatpush1.bf16.msra.mxu0 0
        %1141 = vmatprep.subr.bf16.mxu0 0
        %1142 = vmatpush1.bf16.msra.mxu0 0
        %1143 = vmatprep.subr.bf16.mxu0 0
        %1144 = vmatpush1.bf16.msra.mxu0 0
        %1145 = vmatprep.subr.bf16.mxu0 0
        %1146 = vmatpush1.bf16.msra.mxu0 0
        %1147 = vmatprep.subr.bf16.mxu0 0
        %1148 = vmatpush1.bf16.msra.mxu0 0
        %1149 = vmatprep.subr.bf16.mxu0 0
        %1150 = vmatpush1.bf16.msra.mxu0 0
        %1151 = vmatprep.subr.bf16.mxu0 0
        %1152 = vmatpush1.bf16.msra.mxu0 0
        %1153 = vmatprep.mubr.bf16.mxu0 0
        %1154 = vmatmul.mubr.bf16.gmra.mrb[0].mxu0 %v1116
        %v1155 = vpop.f32.mrb[0].mxu0
        %v1156 = vadd.f32 0.0, %v1155
        %v1157 = vpop.f32.mrb[0].mxu0
        %v1158 = vpop.f32.mrb[0].mxu0
        %v1159 = vadd.f32 0.0, %v1158
        %v1160 = vpop.f32.mrb[0].mxu0
        %1161 = vmatprep.mubr.bf16.mxu0 0
        %1162 = vmatmul.mubr.bf16.gmra.mrb[0].mxu0 %v1119
        %v1163 = vpop.f32.mrb[0].mxu0
        %v1164 = vadd.f32 0.0, %v1163
        %v1165 = vpop.f32.mrb[0].mxu0
        %v1166 = vpop.f32.mrb[0].mxu0
        %v1167 = vadd.f32 0.0, %v1166
        %v1168 = vpop.f32.mrb[0].mxu0
        %1169 = vdwg.mxu0
        %v1170 = vadd.f32 %v1018, %v1156
        %v1171 = vadd.f32 %v1019, %v1159
        %v1172 = vadd.f32 %v1020, %v1164
        %v1173 = vadd.f32 %v1021, %v1167
        %s1174 = scalar_lea.vmem %s2, 64
        %v1175 = vld [vmem:[%s1174] sm:$0xf]
        %v1176 = vld [vmem:[%s1174 + $0x4] sm:$0xf]
        %v1177 = vld [vmem:[%s1174 + $0x8] sm:$0xf]
        %v1178 = vld [vmem:[%s1174 + $0xc] sm:$0xf]
        %v1183 = vunpack.c.l.b16 %v1175
        %v1184 = vunpack.c.l.b16 %v1176
        %v1185 = vunpack.c.l.b16 %v1177
        %v1186 = vunpack.c.l.b16 %v1178
        %v1187 = vpack.c.b16 %v1184, %v1183
        %v1188 = vpack.c.b16 %v1186, %v1185
        %1191 = vmatprep.subr.bf16.mxu0 0
        %1192 = vmatpush1.bf16.msra.mxu0 %v1187
        %1193 = vmatprep.subr.bf16.mxu0 0
        %1194 = vmatpush1.bf16.msra.mxu0 %v1188
        %1195 = vmatprep.subr.bf16.mxu0 0
        %1196 = vmatpush1.bf16.msra.mxu0 0
        %1197 = vmatprep.subr.bf16.mxu0 0
        %1198 = vmatpush1.bf16.msra.mxu0 0
        %1199 = vmatprep.subr.bf16.mxu0 0
        %1200 = vmatpush1.bf16.msra.mxu0 0
        %1201 = vmatprep.subr.bf16.mxu0 0
        %1202 = vmatpush1.bf16.msra.mxu0 0
        %1203 = vmatprep.subr.bf16.mxu0 0
        %1204 = vmatpush1.bf16.msra.mxu0 0
        %1205 = vmatprep.subr.bf16.mxu0 0
        %1206 = vmatpush1.bf16.msra.mxu0 0
        %1207 = vmatprep.subr.bf16.mxu0 0
        %1208 = vmatpush1.bf16.msra.mxu0 0
        %1209 = vmatprep.subr.bf16.mxu0 0
        %1210 = vmatpush1.bf16.msra.mxu0 0
        %1211 = vmatprep.subr.bf16.mxu0 0
        %1212 = vmatpush1.bf16.msra.mxu0 0
        %1213 = vmatprep.subr.bf16.mxu0 0
        %1214 = vmatpush1.bf16.msra.mxu0 0
        %1215 = vmatprep.subr.bf16.mxu0 0
        %1216 = vmatpush1.bf16.msra.mxu0 0
        %1217 = vmatprep.subr.bf16.mxu0 0
        %1218 = vmatpush1.bf16.msra.mxu0 0
        %1219 = vmatprep.subr.bf16.mxu0 0
        %1220 = vmatpush1.bf16.msra.mxu0 0
        %1221 = vmatprep.subr.bf16.mxu0 0
        %1222 = vmatpush1.bf16.msra.mxu0 0
        %1223 = vmatprep.mubr.bf16.mxu0 0
        %1224 = vmatmul.mubr.bf16.gmra.mrb[0].mxu0 %v1116
        %v1225 = vpop.f32.mrb[0].mxu0
        %v1226 = vadd.f32 0.0, %v1225
        %v1227 = vpop.f32.mrb[0].mxu0
        %v1228 = vpop.f32.mrb[0].mxu0
        %v1229 = vadd.f32 0.0, %v1228
        %v1230 = vpop.f32.mrb[0].mxu0
        %1231 = vmatprep.mubr.bf16.mxu0 0
        %1232 = vmatmul.mubr.bf16.gmra.mrb[0].mxu0 %v1119
        %v1233 = vpop.f32.mrb[0].mxu0
        %v1234 = vadd.f32 0.0, %v1233
        %v1235 = vpop.f32.mrb[0].mxu0
        %v1236 = vpop.f32.mrb[0].mxu0
        %v1237 = vadd.f32 0.0, %v1236
        %v1238 = vpop.f32.mrb[0].mxu0
        %1239 = vdwg.mxu0
        %v1240 = vadd.f32 %v1088, %v1226
        %v1241 = vadd.f32 %v1089, %v1229
        %v1242 = vadd.f32 %v1090, %v1234
        %v1243 = vadd.f32 %v1091, %v1237
        %v1244 = vmax.f32 %v1170, %v1240
        %v1245 = vmax.f32 %v1171, %v1241
        %v1246 = vmax.f32 %v1172, %v1242
        %v1247 = vmax.f32 %v1173, %v1243
        %v1248 = vld [vmem:[%s3] sm:$0x1]
        %v1250 = vlaneseq
        %v1251 = vshrl.u32 %v1250, 7
        %v1252 = vsub.s32 0, %v1251
        %v1253 = vrot.slane %v1248, %v1252
        %v1255 = vadd.f32 %v1244, %v1253
        %v1256 = vadd.f32 %v1245, %v1253
        %v1257 = vadd.f32 %v1246, %v1253
        %v1258 = vadd.f32 %v1247, %v1253
        %v1259 = vmax.f32 %v1255, 0.0
        %v1260 = vmax.f32 %v1256, 0.0
        %v1261 = vmax.f32 %v1257, 0.0
        %v1262 = vmax.f32 %v1258, 0.0
        %v1263 = vld [vmem:[%s4] sm:$0xff]
        %v1264 = vld [vmem:[%s4 + $0x8] sm:$0x3f]
        %vm1265 = vcmask 228352
        %v1267 = vsel %vm1265, %v1263, 0
        %v1270 = vsel %vm1265, %v1264, 0
        %vm1272 = vcmask 1043456
        %v1274 = vsel %vm1272, %v1262, 0
        %1276 = vmatprep.subr.mxu0 0.0
        %1277 = vmatpush1.msra.mxu0 %v1259
        %1278 = vmatprep.subr.mxu0 0.0
        %1279 = vmatpush1.msra.mxu0 %v1260
        %1280 = vmatprep.subr.mxu0 0.0
        %1281 = vmatpush1.msra.mxu0 %v1261
        %1282 = vmatprep.subr.mxu0 0.0
        %1283 = vmatpush1.msra.mxu0 %v1274
        %1284 = vmatprep.subr.mxu0 0.0
        %1285 = vmatpush1.msra.mxu0 0.0
        %1286 = vmatprep.subr.mxu0 0.0
        %1287 = vmatpush1.msra.mxu0 0.0
        %1288 = vmatprep.subr.mxu0 0.0
        %1289 = vmatpush1.msra.mxu0 0.0
        %1290 = vmatprep.subr.mxu0 0.0
        %1291 = vmatpush1.msra.mxu0 0.0
        %1292 = vmatprep.subr.mxu0 0.0
        %1293 = vmatpush1.msra.mxu0 0.0
        %1294 = vmatprep.subr.mxu0 0.0
        %1295 = vmatpush1.msra.mxu0 0.0
        %1296 = vmatprep.subr.mxu0 0.0
        %1297 = vmatpush1.msra.mxu0 0.0
        %1298 = vmatprep.subr.mxu0 0.0
        %1299 = vmatpush1.msra.mxu0 0.0
        %1300 = vmatprep.subr.mxu0 0.0
        %1301 = vmatpush1.msra.mxu0 0.0
        %1302 = vmatprep.subr.mxu0 0.0
        %1303 = vmatpush1.msra.mxu0 0.0
        %1304 = vmatprep.subr.mxu0 0.0
        %1305 = vmatpush1.msra.mxu0 0.0
        %1306 = vmatprep.subr.mxu0 0.0
        %1307 = vmatpush1.msra.mxu0 0.0
        %1308 = vmatprep.subr.mxu0 0.0
        %1309 = vmatpush1.msra.mxu0 0.0
        %1310 = vmatprep.subr.mxu0 0.0
        %1311 = vmatpush1.msra.mxu0 0.0
        %1312 = vmatprep.subr.mxu0 0.0
        %1313 = vmatpush1.msra.mxu0 0.0
        %1314 = vmatprep.subr.mxu0 0.0
        %1315 = vmatpush1.msra.mxu0 0.0
        %1316 = vmatprep.subr.mxu0 0.0
        %1317 = vmatpush1.msra.mxu0 0.0
        %1318 = vmatprep.subr.mxu0 0.0
        %1319 = vmatpush1.msra.mxu0 0.0
        %1320 = vmatprep.subr.mxu0 0.0
        %1321 = vmatpush1.msra.mxu0 0.0
        %1322 = vmatprep.subr.mxu0 0.0
        %1323 = vmatpush1.msra.mxu0 0.0
        %1324 = vmatprep.subr.mxu0 0.0
        %1325 = vmatpush1.msra.mxu0 0.0
        %1326 = vmatprep.subr.mxu0 0.0
        %1327 = vmatpush1.msra.mxu0 0.0
        %1328 = vmatprep.subr.mxu0 0.0
        %1329 = vmatpush1.msra.mxu0 0.0
        %1330 = vmatprep.subr.mxu0 0.0
        %1331 = vmatpush1.msra.mxu0 0.0
        %1332 = vmatprep.subr.mxu0 0.0
        %1333 = vmatpush1.msra.mxu0 0.0
        %1334 = vmatprep.subr.mxu0 0.0
        %1335 = vmatpush1.msra.mxu0 0.0
        %1336 = vmatprep.subr.mxu0 0.0
        %1337 = vmatpush1.msra.mxu0 0.0
        %1338 = vmatprep.subr.mxu0 0.0
        %1339 = vmatpush1.msra.mxu0 0.0
        %1340 = vmatprep.mubr.f32.mxu0 0.0
        %1341 = vmatmul.mubr.f32.gmra.mrb[0].mxu0 %v1267
        %v1342 = vpop.f32.mrb[0].mxu0
        %v1343 = vadd.f32 0.0, %v1342
        %v1344 = vpop.f32.mrb[0].mxu0
        %1345 = vmatprep.mubr.f32.mxu0 0.0
        %1346 = vmatmul.mubr.f32.gmra.mrb[0].mxu0 %v1270
        %v1347 = vpop.f32.mrb[0].mxu0
        %v1348 = vadd.f32 0.0, %v1347
        %v1349 = vpop.f32.mrb[0].mxu0
        %1350 = vdwg.mxu0
        %s1351 = scalar_lea.vmem %s4, 16
        %v1352 = vld [vmem:[%s1351] sm:$0xff]
        %v1353 = vld [vmem:[%s1351 + $0x8] sm:$0x3f]
        %v1355 = vsel %vm1265, %v1352, 0
        %v1358 = vsel %vm1265, %v1353, 0
        %1360 = vmatprep.subr.mxu0 0.0
        %1361 = vmatpush1.msra.mxu0 %v1259
        %1362 = vmatprep.subr.mxu0 0.0
        %1363 = vmatpush1.msra.mxu0 %v1260
        %1364 = vmatprep.subr.mxu0 0.0
        %1365 = vmatpush1.msra.mxu0 %v1261
        %1366 = vmatprep.subr.mxu0 0.0
        %1367 = vmatpush1.msra.mxu0 %v1274
        %1368 = vmatprep.subr.mxu0 0.0
        %1369 = vmatpush1.msra.mxu0 0.0
        %1370 = vmatprep.subr.mxu0 0.0
        %1371 = vmatpush1.msra.mxu0 0.0
        %1372 = vmatprep.subr.mxu0 0.0
        %1373 = vmatpush1.msra.mxu0 0.0
        %1374 = vmatprep.subr.mxu0 0.0
        %1375 = vmatpush1.msra.mxu0 0.0
        %1376 = vmatprep.subr.mxu0 0.0
        %1377 = vmatpush1.msra.mxu0 0.0
        %1378 = vmatprep.subr.mxu0 0.0
        %1379 = vmatpush1.msra.mxu0 0.0
        %1380 = vmatprep.subr.mxu0 0.0
        %1381 = vmatpush1.msra.mxu0 0.0
        %1382 = vmatprep.subr.mxu0 0.0
        %1383 = vmatpush1.msra.mxu0 0.0
        %1384 = vmatprep.subr.mxu0 0.0
        %1385 = vmatpush1.msra.mxu0 0.0
        %1386 = vmatprep.subr.mxu0 0.0
        %1387 = vmatpush1.msra.mxu0 0.0
        %1388 = vmatprep.subr.mxu0 0.0
        %1389 = vmatpush1.msra.mxu0 0.0
        %1390 = vmatprep.subr.mxu0 0.0
        %1391 = vmatpush1.msra.mxu0 0.0
        %1392 = vmatprep.subr.mxu0 0.0
        %1393 = vmatpush1.msra.mxu0 0.0
        %1394 = vmatprep.subr.mxu0 0.0
        %1395 = vmatpush1.msra.mxu0 0.0
        %1396 = vmatprep.subr.mxu0 0.0
        %1397 = vmatpush1.msra.mxu0 0.0
        %1398 = vmatprep.subr.mxu0 0.0
        %1399 = vmatpush1.msra.mxu0 0.0
        %1400 = vmatprep.subr.mxu0 0.0
        %1401 = vmatpush1.msra.mxu0 0.0
        %1402 = vmatprep.subr.mxu0 0.0
        %1403 = vmatpush1.msra.mxu0 0.0
        %1404 = vmatprep.subr.mxu0 0.0
        %1405 = vmatpush1.msra.mxu0 0.0
        %1406 = vmatprep.subr.mxu0 0.0
        %1407 = vmatpush1.msra.mxu0 0.0
        %1408 = vmatprep.subr.mxu0 0.0
        %1409 = vmatpush1.msra.mxu0 0.0
        %1410 = vmatprep.subr.mxu0 0.0
        %1411 = vmatpush1.msra.mxu0 0.0
        %1412 = vmatprep.subr.mxu0 0.0
        %1413 = vmatpush1.msra.mxu0 0.0
        %1414 = vmatprep.subr.mxu0 0.0
        %1415 = vmatpush1.msra.mxu0 0.0
        %1416 = vmatprep.subr.mxu0 0.0
        %1417 = vmatpush1.msra.mxu0 0.0
        %1418 = vmatprep.subr.mxu0 0.0
        %1419 = vmatpush1.msra.mxu0 0.0
        %1420 = vmatprep.subr.mxu0 0.0
        %1421 = vmatpush1.msra.mxu0 0.0
        %1422 = vmatprep.subr.mxu0 0.0
        %1423 = vmatpush1.msra.mxu0 0.0
        %1424 = vmatprep.mubr.f32.mxu0 0.0
        %1425 = vmatmul.mubr.f32.gmra.mrb[0].mxu0 %v1355
        %v1426 = vpop.f32.mrb[0].mxu0
        %v1427 = vadd.f32 0.0, %v1426
        %v1428 = vpop.f32.mrb[0].mxu0
        %1429 = vmatprep.mubr.f32.mxu0 0.0
        %1430 = vmatmul.mubr.f32.gmra.mrb[0].mxu0 %v1358
        %v1431 = vpop.f32.mrb[0].mxu0
        %v1432 = vadd.f32 0.0, %v1431
        %v1433 = vpop.f32.mrb[0].mxu0
        %1434 = vdwg.mxu0
        %v1435 = vmax.f32 %v1343, %v1427
        %v1436 = vmax.f32 %v1348, %v1432
        %vm1437 = vcmask 687104
        %1438 = vst.msk [vmem:[#allocation3] sm:$0xff] %vm1437, %v1435
        %vm1439 = vcmask 685056
        %1440 = vst.msk [vmem:[#allocation3 + $0x8] sm:$0x3f] %vm1439, %v1436
        %v1441 = vld [vmem:[#allocation3] sm:$0xff]
        %v1442 = vld [vmem:[#allocation3 + $0x8] sm:$0x3]
        %v1443 = vpack.c.bf16 %v1442, %v1441
        %v1444 = vld [vmem:[%s5] sm:$0xf]
        %v1445 = vld [vmem:[%s5 + $0x4] sm:$0xf]
        %v1446 = vld [vmem:[%s5 + $0x8] sm:$0xf]
        %v1447 = vld [vmem:[%s5 + $0xc] sm:$0xf]
        %v1448 = vld [vmem:[%s5 + $0x10] sm:$0xf]
        %v1449 = vld [vmem:[%s5 + $0x14] sm:$0xf]
        %v1450 = vld [vmem:[%s5 + $0x18] sm:$0xf]
        %v1451 = vld [vmem:[%s5 + $0x1c] sm:$0xf]
        %v1452 = vld [vmem:[%s5 + $0x20] sm:$0xf]
        %v1453 = vld [vmem:[%s5 + $0x24] sm:$0xf]
        %v1454 = vld [vmem:[%s5 + $0x28] sm:$0x3]
        %v1455 = vld [vmem:[%s6] sm:$0xf]
        %v1456 = vld [vmem:[%s6 + $0x4] sm:$0xf]
        %v1457 = vld [vmem:[%s6 + $0x8] sm:$0xf]
        %v1458 = vld [vmem:[%s6 + $0xc] sm:$0xf]
        %v1459 = vld [vmem:[%s6 + $0x10] sm:$0xf]
        %v1460 = vld [vmem:[%s6 + $0x14] sm:$0xf]
        %v1461 = vld [vmem:[%s6 + $0x18] sm:$0xf]
        %v1462 = vld [vmem:[%s6 + $0x1c] sm:$0xf]
        %v1463 = vld [vmem:[%s6 + $0x20] sm:$0xf]
        %v1464 = vld [vmem:[%s6 + $0x24] sm:$0xf]
        %v1465 = vld [vmem:[%s6 + $0x28] sm:$0x3]
        %v1466 = vld [vmem:[#allocation3 + $0x1] sm:$0xff]
        %v1467 = vld [vmem:[#allocation3 + $0x9] sm:$0x3]
        %v1468 = vpack.c.bf16 %v1467, %v1466
        %s1469 = scalar_lea.vmem %s5, 44
        %v1470 = vld [vmem:[%s1469] sm:$0xf]
        %v1471 = vld [vmem:[%s1469 + $0x4] sm:$0xf]
        %v1472 = vld [vmem:[%s1469 + $0x8] sm:$0xf]
        %v1473 = vld [vmem:[%s1469 + $0xc] sm:$0xf]
        %v1474 = vld [vmem:[%s1469 + $0x10] sm:$0xf]
        %v1475 = vld [vmem:[%s1469 + $0x14] sm:$0xf]
        %v1476 = vld [vmem:[%s1469 + $0x18] sm:$0xf]
        %v1477 = vld [vmem:[%s1469 + $0x1c] sm:$0xf]
        %v1478 = vld [vmem:[%s1469 + $0x20] sm:$0xf]
        %v1479 = vld [vmem:[%s1469 + $0x24] sm:$0xf]
        %v1480 = vld [vmem:[%s1469 + $0x28] sm:$0x3]
        %v1492 = vunpack.c.l.b16 %v1470
        %v1493 = vunpack.c.l.b16 %v1471
        %v1494 = vunpack.c.l.b16 %v1472
        %v1495 = vunpack.c.l.b16 %v1473
        %v1496 = vunpack.c.l.b16 %v1474
        %v1497 = vunpack.c.l.b16 %v1475
        %v1498 = vunpack.c.l.b16 %v1476
        %v1499 = vunpack.c.l.b16 %v1477
        %v1500 = vunpack.c.l.b16 %v1478
        %v1501 = vunpack.c.l.b16 %v1479
        %v1502 = vunpack.c.l.b16 %v1480
        %v1503 = vpack.c.b16 %v1493, %v1492
        %v1504 = vpack.c.b16 %v1495, %v1494
        %v1505 = vpack.c.b16 %v1497, %v1496
        %v1506 = vpack.c.b16 %v1499, %v1498
        %v1507 = vpack.c.b16 %v1501, %v1500
        %v1508 = vpack.c.b16 %v1502, %v1502
        %v1515 = vsel %vm1437, %v1468, 0
        %vm1517 = vcmask 1041408
        %v1519 = vsel %vm1517, %v1508, 0
        %1521 = vmatprep.subr.bf16.mxu0 0
        %1522 = vmatpush1.bf16.msra.mxu0 %v1503
        %1523 = vmatprep.subr.bf16.mxu0 0
        %1524 = vmatpush1.bf16.msra.mxu0 %v1504
        %1525 = vmatprep.subr.bf16.mxu0 0
        %1526 = vmatpush1.bf16.msra.mxu0 %v1505
        %1527 = vmatprep.subr.bf16.mxu0 0
        %1528 = vmatpush1.bf16.msra.mxu0 %v1506
        %1529 = vmatprep.subr.bf16.mxu0 0
        %1530 = vmatpush1.bf16.msra.mxu0 %v1507
        %1531 = vmatprep.subr.bf16.mxu0 0
        %1532 = vmatpush1.bf16.msra.mxu0 %v1519
        %1533 = vmatprep.subr.bf16.mxu0 0
        %1534 = vmatpush1.bf16.msra.mxu0 0
        %1535 = vmatprep.subr.bf16.mxu0 0
        %1536 = vmatpush1.bf16.msra.mxu0 0
        %1537 = vmatprep.subr.bf16.mxu0 0
        %1538 = vmatpush1.bf16.msra.mxu0 0
        %1539 = vmatprep.subr.bf16.mxu0 0
        %1540 = vmatpush1.bf16.msra.mxu0 0
        %1541 = vmatprep.subr.bf16.mxu0 0
        %1542 = vmatpush1.bf16.msra.mxu0 0
        %1543 = vmatprep.subr.bf16.mxu0 0
        %1544 = vmatpush1.bf16.msra.mxu0 0
        %1545 = vmatprep.subr.bf16.mxu0 0
        %1546 = vmatpush1.bf16.msra.mxu0 0
        %1547 = vmatprep.subr.bf16.mxu0 0
        %1548 = vmatpush1.bf16.msra.mxu0 0
        %1549 = vmatprep.subr.bf16.mxu0 0
        %1550 = vmatpush1.bf16.msra.mxu0 0
        %1551 = vmatprep.subr.bf16.mxu0 0
        %1552 = vmatpush1.bf16.msra.mxu0 0
        %1553 = vmatprep.mubr.bf16.mxu0 0
        %1554 = vmatmul.mubr.bf16.gmra.mrb[0].mxu0 %v1515
        %v1555 = vpop.f32.mrb[0].mxu0
        %v1556 = vadd.f32 0.0, %v1555
        %v1557 = vpop.f32.mrb[0].mxu0
        %v1558 = vpop.f32.mrb[0].mxu0
        %v1559 = vadd.f32 0.0, %v1558
        %v1560 = vpop.f32.mrb[0].mxu0
        %1561 = vdwg.mxu0
        %v1573 = vunpack.c.l.b16 %v1444
        %v1574 = vunpack.c.l.b16 %v1445
        %v1575 = vunpack.c.l.b16 %v1446
        %v1576 = vunpack.c.l.b16 %v1447
        %v1577 = vunpack.c.l.b16 %v1448
        %v1578 = vunpack.c.l.b16 %v1449
        %v1579 = vunpack.c.l.b16 %v1450
        %v1580 = vunpack.c.l.b16 %v1451
        %v1581 = vunpack.c.l.b16 %v1452
        %v1582 = vunpack.c.l.b16 %v1453
        %v1583 = vunpack.c.l.b16 %v1454
        %v1584 = vpack.c.b16 %v1574, %v1573
        %v1585 = vpack.c.b16 %v1576, %v1575
        %v1586 = vpack.c.b16 %v1578, %v1577
        %v1587 = vpack.c.b16 %v1580, %v1579
        %v1588 = vpack.c.b16 %v1582, %v1581
        %v1589 = vpack.c.b16 %v1583, %v1583
        %v1596 = vsel %vm1437, %v1443, 0
        %v1599 = vsel %vm1517, %v1589, 0
        %1601 = vmatprep.subr.bf16.mxu0 0
        %1602 = vmatpush1.bf16.msra.mxu0 %v1584
        %1603 = vmatprep.subr.bf16.mxu0 0
        %1604 = vmatpush1.bf16.msra.mxu0 %v1585
        %1605 = vmatprep.subr.bf16.mxu0 0
        %1606 = vmatpush1.bf16.msra.mxu0 %v1586
        %1607 = vmatprep.subr.bf16.mxu0 0
        %1608 = vmatpush1.bf16.msra.mxu0 %v1587
        %1609 = vmatprep.subr.bf16.mxu0 0
        %1610 = vmatpush1.bf16.msra.mxu0 %v1588
        %1611 = vmatprep.subr.bf16.mxu0 0
        %1612 = vmatpush1.bf16.msra.mxu0 %v1599
        %1613 = vmatprep.subr.bf16.mxu0 0
        %1614 = vmatpush1.bf16.msra.mxu0 0
        %1615 = vmatprep.subr.bf16.mxu0 0
        %1616 = vmatpush1.bf16.msra.mxu0 0
        %1617 = vmatprep.subr.bf16.mxu0 0
        %1618 = vmatpush1.bf16.msra.mxu0 0
        %1619 = vmatprep.subr.bf16.mxu0 0
        %1620 = vmatpush1.bf16.msra.mxu0 0
        %1621 = vmatprep.subr.bf16.mxu0 0
        %1622 = vmatpush1.bf16.msra.mxu0 0
        %1623 = vmatprep.subr.bf16.mxu0 0
        %1624 = vmatpush1.bf16.msra.mxu0 0
        %1625 = vmatprep.subr.bf16.mxu0 0
        %1626 = vmatpush1.bf16.msra.mxu0 0
        %1627 = vmatprep.subr.bf16.mxu0 0
        %1628 = vmatpush1.bf16.msra.mxu0 0
        %1629 = vmatprep.subr.bf16.mxu0 0
        %1630 = vmatpush1.bf16.msra.mxu0 0
        %1631 = vmatprep.subr.bf16.mxu0 0
        %1632 = vmatpush1.bf16.msra.mxu0 0
        %1633 = vmatprep.mubr.bf16.mxu0 0
        %1634 = vmatmul.mubr.bf16.gmra.mrb[0].mxu0 %v1596
        %v1635 = vpop.f32.mrb[0].mxu0
        %v1636 = vadd.f32 %v1556, %v1635
        %v1637 = vpop.f32.mrb[0].mxu0
        %v1638 = vpop.f32.mrb[0].mxu0
        %v1639 = vadd.f32 %v1559, %v1638
        %v1640 = vpop.f32.mrb[0].mxu0
        %1641 = vdwg.mxu0
        %s1642 = scalar_lea.vmem %s6, 44
        %v1643 = vld [vmem:[%s1642] sm:$0xf]
        %v1644 = vld [vmem:[%s1642 + $0x4] sm:$0xf]
        %v1645 = vld [vmem:[%s1642 + $0x8] sm:$0xf]
        %v1646 = vld [vmem:[%s1642 + $0xc] sm:$0xf]
        %v1647 = vld [vmem:[%s1642 + $0x10] sm:$0xf]
        %v1648 = vld [vmem:[%s1642 + $0x14] sm:$0xf]
        %v1649 = vld [vmem:[%s1642 + $0x18] sm:$0xf]
        %v1650 = vld [vmem:[%s1642 + $0x1c] sm:$0xf]
        %v1651 = vld [vmem:[%s1642 + $0x20] sm:$0xf]
        %v1652 = vld [vmem:[%s1642 + $0x24] sm:$0xf]
        %v1653 = vld [vmem:[%s1642 + $0x28] sm:$0x3]
        %v1665 = vunpack.c.l.b16 %v1643
        %v1666 = vunpack.c.l.b16 %v1644
        %v1667 = vunpack.c.l.b16 %v1645
        %v1668 = vunpack.c.l.b16 %v1646
        %v1669 = vunpack.c.l.b16 %v1647
        %v1670 = vunpack.c.l.b16 %v1648
        %v1671 = vunpack.c.l.b16 %v1649
        %v1672 = vunpack.c.l.b16 %v1650
        %v1673 = vunpack.c.l.b16 %v1651
        %v1674 = vunpack.c.l.b16 %v1652
        %v1675 = vunpack.c.l.b16 %v1653
        %v1676 = vpack.c.b16 %v1666, %v1665
        %v1677 = vpack.c.b16 %v1668, %v1667
        %v1678 = vpack.c.b16 %v1670, %v1669
        %v1679 = vpack.c.b16 %v1672, %v1671
        %v1680 = vpack.c.b16 %v1674, %v1673
        %v1681 = vpack.c.b16 %v1675, %v1675
        %v1688 = vsel %vm1517, %v1681, 0
        %1690 = vmatprep.subr.bf16.mxu0 0
        %1691 = vmatpush1.bf16.msra.mxu0 %v1676
        %1692 = vmatprep.subr.bf16.mxu0 0
        %1693 = vmatpush1.bf16.msra.mxu0 %v1677
        %1694 = vmatprep.subr.bf16.mxu0 0
        %1695 = vmatpush1.bf16.msra.mxu0 %v1678
        %1696 = vmatprep.subr.bf16.mxu0 0
        %1697 = vmatpush1.bf16.msra.mxu0 %v1679
        %1698 = vmatprep.subr.bf16.mxu0 0
        %1699 = vmatpush1.bf16.msra.mxu0 %v1680
        %1700 = vmatprep.subr.bf16.mxu0 0
        %1701 = vmatpush1.bf16.msra.mxu0 %v1688
        %1702 = vmatprep.subr.bf16.mxu0 0
        %1703 = vmatpush1.bf16.msra.mxu0 0
        %1704 = vmatprep.subr.bf16.mxu0 0
        %1705 = vmatpush1.bf16.msra.mxu0 0
        %1706 = vmatprep.subr.bf16.mxu0 0
        %1707 = vmatpush1.bf16.msra.mxu0 0
        %1708 = vmatprep.subr.bf16.mxu0 0
        %1709 = vmatpush1.bf16.msra.mxu0 0
        %1710 = vmatprep.subr.bf16.mxu0 0
        %1711 = vmatpush1.bf16.msra.mxu0 0
        %1712 = vmatprep.subr.bf16.mxu0 0
        %1713 = vmatpush1.bf16.msra.mxu0 0
        %1714 = vmatprep.subr.bf16.mxu0 0
        %1715 = vmatpush1.bf16.msra.mxu0 0
        %1716 = vmatprep.subr.bf16.mxu0 0
        %1717 = vmatpush1.bf16.msra.mxu0 0
        %1718 = vmatprep.subr.bf16.mxu0 0
        %1719 = vmatpush1.bf16.msra.mxu0 0
        %1720 = vmatprep.subr.bf16.mxu0 0
        %1721 = vmatpush1.bf16.msra.mxu0 0
        %1722 = vmatprep.mubr.bf16.mxu0 0
        %1723 = vmatmul.mubr.bf16.gmra.mrb[0].mxu0 %v1515
        %v1724 = vpop.f32.mrb[0].mxu0
        %v1725 = vadd.f32 0.0, %v1724
        %v1726 = vpop.f32.mrb[0].mxu0
        %v1727 = vpop.f32.mrb[0].mxu0
        %v1728 = vadd.f32 0.0, %v1727
        %v1729 = vpop.f32.mrb[0].mxu0
        %1730 = vdwg.mxu0
        %v1742 = vunpack.c.l.b16 %v1455
        %v1743 = vunpack.c.l.b16 %v1456
        %v1744 = vunpack.c.l.b16 %v1457
        %v1745 = vunpack.c.l.b16 %v1458
        %v1746 = vunpack.c.l.b16 %v1459
        %v1747 = vunpack.c.l.b16 %v1460
        %v1748 = vunpack.c.l.b16 %v1461
        %v1749 = vunpack.c.l.b16 %v1462
        %v1750 = vunpack.c.l.b16 %v1463
        %v1751 = vunpack.c.l.b16 %v1464
        %v1752 = vunpack.c.l.b16 %v1465
        %v1753 = vpack.c.b16 %v1743, %v1742
        %v1754 = vpack.c.b16 %v1745, %v1744
        %v1755 = vpack.c.b16 %v1747, %v1746
        %v1756 = vpack.c.b16 %v1749, %v1748
        %v1757 = vpack.c.b16 %v1751, %v1750
        %v1758 = vpack.c.b16 %v1752, %v1752
        %v1765 = vsel %vm1517, %v1758, 0
        %1767 = vmatprep.subr.bf16.mxu0 0
        %1768 = vmatpush1.bf16.msra.mxu0 %v1753
        %1769 = vmatprep.subr.bf16.mxu0 0
        %1770 = vmatpush1.bf16.msra.mxu0 %v1754
        %1771 = vmatprep.subr.bf16.mxu0 0
        %1772 = vmatpush1.bf16.msra.mxu0 %v1755
        %1773 = vmatprep.subr.bf16.mxu0 0
        %1774 = vmatpush1.bf16.msra.mxu0 %v1756
        %1775 = vmatprep.subr.bf16.mxu0 0
        %1776 = vmatpush1.bf16.msra.mxu0 %v1757
        %1777 = vmatprep.subr.bf16.mxu0 0
        %1778 = vmatpush1.bf16.msra.mxu0 %v1765
        %1779 = vmatprep.subr.bf16.mxu0 0
        %1780 = vmatpush1.bf16.msra.mxu0 0
        %1781 = vmatprep.subr.bf16.mxu0 0
        %1782 = vmatpush1.bf16.msra.mxu0 0
        %1783 = vmatprep.subr.bf16.mxu0 0
        %1784 = vmatpush1.bf16.msra.mxu0 0
        %1785 = vmatprep.subr.bf16.mxu0 0
        %1786 = vmatpush1.bf16.msra.mxu0 0
        %1787 = vmatprep.subr.bf16.mxu0 0
        %1788 = vmatpush1.bf16.msra.mxu0 0
        %1789 = vmatprep.subr.bf16.mxu0 0
        %1790 = vmatpush1.bf16.msra.mxu0 0
        %1791 = vmatprep.subr.bf16.mxu0 0
        %1792 = vmatpush1.bf16.msra.mxu0 0
        %1793 = vmatprep.subr.bf16.mxu0 0
        %1794 = vmatpush1.bf16.msra.mxu0 0
        %1795 = vmatprep.subr.bf16.mxu0 0
        %1796 = vmatpush1.bf16.msra.mxu0 0
        %1797 = vmatprep.subr.bf16.mxu0 0
        %1798 = vmatpush1.bf16.msra.mxu0 0
        %1799 = vmatprep.mubr.bf16.mxu0 0
        %1800 = vmatmul.mubr.bf16.gmra.mrb[0].mxu0 %v1596
        %v1801 = vpop.f32.mrb[0].mxu0
        %v1802 = vadd.f32 %v1725, %v1801
        %v1803 = vpop.f32.mrb[0].mxu0
        %v1804 = vpop.f32.mrb[0].mxu0
        %v1805 = vadd.f32 %v1728, %v1804
        %v1806 = vpop.f32.mrb[0].mxu0
        %1807 = vdwg.mxu0
        %v1808 = vld [vmem:[#allocation3 + $0x2] sm:$0xff]
        %v1809 = vld [vmem:[#allocation3 + $0xa] sm:$0x3]
        %v1810 = vpack.c.bf16 %v1809, %v1808
        %s1811 = scalar_lea.vmem %s5, 88
        %v1812 = vld [vmem:[%s1811] sm:$0xf]
        %v1813 = vld [vmem:[%s1811 + $0x4] sm:$0xf]
        %v1814 = vld [vmem:[%s1811 + $0x8] sm:$0xf]
        %v1815 = vld [vmem:[%s1811 + $0xc] sm:$0xf]
        %v1816 = vld [vmem:[%s1811 + $0x10] sm:$0xf]
        %v1817 = vld [vmem:[%s1811 + $0x14] sm:$0xf]
        %v1818 = vld [vmem:[%s1811 + $0x18] sm:$0xf]
        %v1819 = vld [vmem:[%s1811 + $0x1c] sm:$0xf]
        %v1820 = vld [vmem:[%s1811 + $0x20] sm:$0xf]
        %v1821 = vld [vmem:[%s1811 + $0x24] sm:$0xf]
        %v1822 = vld [vmem:[%s1811 + $0x28] sm:$0x3]
        %v1834 = vunpack.c.l.b16 %v1812
        %v1835 = vunpack.c.l.b16 %v1813
        %v1836 = vunpack.c.l.b16 %v1814
        %v1837 = vunpack.c.l.b16 %v1815
        %v1838 = vunpack.c.l.b16 %v1816
        %v1839 = vunpack.c.l.b16 %v1817
        %v1840 = vunpack.c.l.b16 %v1818
        %v1841 = vunpack.c.l.b16 %v1819
        %v1842 = vunpack.c.l.b16 %v1820
        %v1843 = vunpack.c.l.b16 %v1821
        %v1844 = vunpack.c.l.b16 %v1822
        %v1845 = vpack.c.b16 %v1835, %v1834
        %v1846 = vpack.c.b16 %v1837, %v1836
        %v1847 = vpack.c.b16 %v1839, %v1838
        %v1848 = vpack.c.b16 %v1841, %v1840
        %v1849 = vpack.c.b16 %v1843, %v1842
        %v1850 = vpack.c.b16 %v1844, %v1844
        %v1857 = vsel %vm1437, %v1810, 0
        %v1860 = vsel %vm1517, %v1850, 0
        %1862 = vmatprep.subr.bf16.mxu0 0
        %1863 = vmatpush1.bf16.msra.mxu0 %v1845
        %1864 = vmatprep.subr.bf16.mxu0 0
        %1865 = vmatpush1.bf16.msra.mxu0 %v1846
        %1866 = vmatprep.subr.bf16.mxu0 0
        %1867 = vmatpush1.bf16.msra.mxu0 %v1847
        %1868 = vmatprep.subr.bf16.mxu0 0
        %1869 = vmatpush1.bf16.msra.mxu0 %v1848
        %1870 = vmatprep.subr.bf16.mxu0 0
        %1871 = vmatpush1.bf16.msra.mxu0 %v1849
        %1872 = vmatprep.subr.bf16.mxu0 0
        %1873 = vmatpush1.bf16.msra.mxu0 %v1860
        %1874 = vmatprep.subr.bf16.mxu0 0
        %1875 = vmatpush1.bf16.msra.mxu0 0
        %1876 = vmatprep.subr.bf16.mxu0 0
        %1877 = vmatpush1.bf16.msra.mxu0 0
        %1878 = vmatprep.subr.bf16.mxu0 0
        %1879 = vmatpush1.bf16.msra.mxu0 0
        %1880 = vmatprep.subr.bf16.mxu0 0
        %1881 = vmatpush1.bf16.msra.mxu0 0
        %1882 = vmatprep.subr.bf16.mxu0 0
        %1883 = vmatpush1.bf16.msra.mxu0 0
        %1884 = vmatprep.subr.bf16.mxu0 0
        %1885 = vmatpush1.bf16.msra.mxu0 0
        %1886 = vmatprep.subr.bf16.mxu0 0
        %1887 = vmatpush1.bf16.msra.mxu0 0
        %1888 = vmatprep.subr.bf16.mxu0 0
        %1889 = vmatpush1.bf16.msra.mxu0 0
        %1890 = vmatprep.subr.bf16.mxu0 0
        %1891 = vmatpush1.bf16.msra.mxu0 0
        %1892 = vmatprep.subr.bf16.mxu0 0
        %1893 = vmatpush1.bf16.msra.mxu0 0
        %1894 = vmatprep.mubr.bf16.mxu0 0
        %1895 = vmatmul.mubr.bf16.gmra.mrb[0].mxu0 %v1857
        %v1896 = vpop.f32.mrb[0].mxu0
        %v1897 = vadd.f32 0.0, %v1896
        %v1898 = vpop.f32.mrb[0].mxu0
        %v1899 = vpop.f32.mrb[0].mxu0
        %v1900 = vadd.f32 0.0, %v1899
        %v1901 = vpop.f32.mrb[0].mxu0
        %1902 = vdwg.mxu0
        %v1903 = vadd.f32 %v1636, %v1897
        %v1904 = vadd.f32 %v1639, %v1900
        %s1905 = scalar_lea.vmem %s6, 88
        %v1906 = vld [vmem:[%s1905] sm:$0xf]
        %v1907 = vld [vmem:[%s1905 + $0x4] sm:$0xf]
        %v1908 = vld [vmem:[%s1905 + $0x8] sm:$0xf]
        %v1909 = vld [vmem:[%s1905 + $0xc] sm:$0xf]
        %v1910 = vld [vmem:[%s1905 + $0x10] sm:$0xf]
        %v1911 = vld [vmem:[%s1905 + $0x14] sm:$0xf]
        %v1912 = vld [vmem:[%s1905 + $0x18] sm:$0xf]
        %v1913 = vld [vmem:[%s1905 + $0x1c] sm:$0xf]
        %v1914 = vld [vmem:[%s1905 + $0x20] sm:$0xf]
        %v1915 = vld [vmem:[%s1905 + $0x24] sm:$0xf]
        %v1916 = vld [vmem:[%s1905 + $0x28] sm:$0x3]
        %v1928 = vunpack.c.l.b16 %v1906
        %v1929 = vunpack.c.l.b16 %v1907
        %v1930 = vunpack.c.l.b16 %v1908
        %v1931 = vunpack.c.l.b16 %v1909
        %v1932 = vunpack.c.l.b16 %v1910
        %v1933 = vunpack.c.l.b16 %v1911
        %v1934 = vunpack.c.l.b16 %v1912
        %v1935 = vunpack.c.l.b16 %v1913
        %v1936 = vunpack.c.l.b16 %v1914
        %v1937 = vunpack.c.l.b16 %v1915
        %v1938 = vunpack.c.l.b16 %v1916
        %v1939 = vpack.c.b16 %v1929, %v1928
        %v1940 = vpack.c.b16 %v1931, %v1930
        %v1941 = vpack.c.b16 %v1933, %v1932
        %v1942 = vpack.c.b16 %v1935, %v1934
        %v1943 = vpack.c.b16 %v1937, %v1936
        %v1944 = vpack.c.b16 %v1938, %v1938
        %v1951 = vsel %vm1517, %v1944, 0
        %1953 = vmatprep.subr.bf16.mxu0 0
        %1954 = vmatpush1.bf16.msra.mxu0 %v1939
        %1955 = vmatprep.subr.bf16.mxu0 0
        %1956 = vmatpush1.bf16.msra.mxu0 %v1940
        %1957 = vmatprep.subr.bf16.mxu0 0
        %1958 = vmatpush1.bf16.msra.mxu0 %v1941
        %1959 = vmatprep.subr.bf16.mxu0 0
        %1960 = vmatpush1.bf16.msra.mxu0 %v1942
        %1961 = vmatprep.subr.bf16.mxu0 0
        %1962 = vmatpush1.bf16.msra.mxu0 %v1943
        %1963 = vmatprep.subr.bf16.mxu0 0
        %1964 = vmatpush1.bf16.msra.mxu0 %v1951
        %1965 = vmatprep.subr.bf16.mxu0 0
        %1966 = vmatpush1.bf16.msra.mxu0 0
        %1967 = vmatprep.subr.bf16.mxu0 0
        %1968 = vmatpush1.bf16.msra.mxu0 0
        %1969 = vmatprep.subr.bf16.mxu0 0
        %1970 = vmatpush1.bf16.msra.mxu0 0
        %1971 = vmatprep.subr.bf16.mxu0 0
        %1972 = vmatpush1.bf16.msra.mxu0 0
        %1973 = vmatprep.subr.bf16.mxu0 0
        %1974 = vmatpush1.bf16.msra.mxu0 0
        %1975 = vmatprep.subr.bf16.mxu0 0
        %1976 = vmatpush1.bf16.msra.mxu0 0
        %1977 = vmatprep.subr.bf16.mxu0 0
        %1978 = vmatpush1.bf16.msra.mxu0 0
        %1979 = vmatprep.subr.bf16.mxu0 0
        %1980 = vmatpush1.bf16.msra.mxu0 0
        %1981 = vmatprep.subr.bf16.mxu0 0
        %1982 = vmatpush1.bf16.msra.mxu0 0
        %1983 = vmatprep.subr.bf16.mxu0 0
        %1984 = vmatpush1.bf16.msra.mxu0 0
        %1985 = vmatprep.mubr.bf16.mxu0 0
        %1986 = vmatmul.mubr.bf16.gmra.mrb[0].mxu0 %v1857
        %v1987 = vpop.f32.mrb[0].mxu0
        %v1988 = vadd.f32 0.0, %v1987
        %v1989 = vpop.f32.mrb[0].mxu0
        %v1990 = vpop.f32.mrb[0].mxu0
        %v1991 = vadd.f32 0.0, %v1990
        %v1992 = vpop.f32.mrb[0].mxu0
        %1993 = vdwg.mxu0
        %v1994 = vadd.f32 %v1802, %v1988
        %v1995 = vadd.f32 %v1805, %v1991
        %v1996 = vld [vmem:[#allocation3 + $0x3] sm:$0xff]
        %v1997 = vld [vmem:[#allocation3 + $0xb] sm:$0x3]
        %v1998 = vpack.c.bf16 %v1997, %v1996
        %s1999 = scalar_lea.vmem %s5, 132
        %v2000 = vld [vmem:[%s1999] sm:$0xf]
        %v2001 = vld [vmem:[%s1999 + $0x4] sm:$0xf]
        %v2002 = vld [vmem:[%s1999 + $0x8] sm:$0xf]
        %v2003 = vld [vmem:[%s1999 + $0xc] sm:$0xf]
        %v2004 = vld [vmem:[%s1999 + $0x10] sm:$0xf]
        %v2005 = vld [vmem:[%s1999 + $0x14] sm:$0xf]
        %v2006 = vld [vmem:[%s1999 + $0x18] sm:$0xf]
        %v2007 = vld [vmem:[%s1999 + $0x1c] sm:$0xf]
        %v2008 = vld [vmem:[%s1999 + $0x20] sm:$0xf]
        %v2009 = vld [vmem:[%s1999 + $0x24] sm:$0xf]
        %v2010 = vld [vmem:[%s1999 + $0x28] sm:$0x3]
        %v2022 = vunpack.c.l.b16 %v2000
        %v2023 = vunpack.c.l.b16 %v2001
        %v2024 = vunpack.c.l.b16 %v2002
        %v2025 = vunpack.c.l.b16 %v2003
        %v2026 = vunpack.c.l.b16 %v2004
        %v2027 = vunpack.c.l.b16 %v2005
        %v2028 = vunpack.c.l.b16 %v2006
        %v2029 = vunpack.c.l.b16 %v2007
        %v2030 = vunpack.c.l.b16 %v2008
        %v2031 = vunpack.c.l.b16 %v2009
        %v2032 = vunpack.c.l.b16 %v2010
        %v2033 = vpack.c.b16 %v2023, %v2022
        %v2034 = vpack.c.b16 %v2025, %v2024
        %v2035 = vpack.c.b16 %v2027, %v2026
        %v2036 = vpack.c.b16 %v2029, %v2028
        %v2037 = vpack.c.b16 %v2031, %v2030
        %v2038 = vpack.c.b16 %v2032, %v2032
        %v2045 = vsel %vm1437, %v1998, 0
        %v2048 = vsel %vm1517, %v2038, 0
        %2050 = vmatprep.subr.bf16.mxu0 0
        %2051 = vmatpush1.bf16.msra.mxu0 %v2033
        %2052 = vmatprep.subr.bf16.mxu0 0
        %2053 = vmatpush1.bf16.msra.mxu0 %v2034
        %2054 = vmatprep.subr.bf16.mxu0 0
        %2055 = vmatpush1.bf16.msra.mxu0 %v2035
        %2056 = vmatprep.subr.bf16.mxu0 0
        %2057 = vmatpush1.bf16.msra.mxu0 %v2036
        %2058 = vmatprep.subr.bf16.mxu0 0
        %2059 = vmatpush1.bf16.msra.mxu0 %v2037
        %2060 = vmatprep.subr.bf16.mxu0 0
        %2061 = vmatpush1.bf16.msra.mxu0 %v2048
        %2062 = vmatprep.subr.bf16.mxu0 0
        %2063 = vmatpush1.bf16.msra.mxu0 0
        %2064 = vmatprep.subr.bf16.mxu0 0
        %2065 = vmatpush1.bf16.msra.mxu0 0
        %2066 = vmatprep.subr.bf16.mxu0 0
        %2067 = vmatpush1.bf16.msra.mxu0 0
        %2068 = vmatprep.subr.bf16.mxu0 0
        %2069 = vmatpush1.bf16.msra.mxu0 0
        %2070 = vmatprep.subr.bf16.mxu0 0
        %2071 = vmatpush1.bf16.msra.mxu0 0
        %2072 = vmatprep.subr.bf16.mxu0 0
        %2073 = vmatpush1.bf16.msra.mxu0 0
        %2074 = vmatprep.subr.bf16.mxu0 0
        %2075 = vmatpush1.bf16.msra.mxu0 0
        %2076 = vmatprep.subr.bf16.mxu0 0
        %2077 = vmatpush1.bf16.msra.mxu0 0
        %2078 = vmatprep.subr.bf16.mxu0 0
        %2079 = vmatpush1.bf16.msra.mxu0 0
        %2080 = vmatprep.subr.bf16.mxu0 0
        %2081 = vmatpush1.bf16.msra.mxu0 0
        %2082 = vmatprep.mubr.bf16.mxu0 0
        %2083 = vmatmul.mubr.bf16.gmra.mrb[0].mxu0 %v2045
        %v2084 = vpop.f32.mrb[0].mxu0
        %v2085 = vadd.f32 0.0, %v2084
        %v2086 = vpop.f32.mrb[0].mxu0
        %v2087 = vpop.f32.mrb[0].mxu0
        %v2088 = vadd.f32 0.0, %v2087
        %v2089 = vpop.f32.mrb[0].mxu0
        %2090 = vdwg.mxu0
        %v2091 = vadd.f32 %v1903, %v2085
        %v2092 = vadd.f32 %v1904, %v2088
        %s2093 = scalar_lea.vmem %s6, 132
        %v2094 = vld [vmem:[%s2093] sm:$0xf]
        %v2095 = vld [vmem:[%s2093 + $0x4] sm:$0xf]
        %v2096 = vld [vmem:[%s2093 + $0x8] sm:$0xf]
        %v2097 = vld [vmem:[%s2093 + $0xc] sm:$0xf]
        %v2098 = vld [vmem:[%s2093 + $0x10] sm:$0xf]
        %v2099 = vld [vmem:[%s2093 + $0x14] sm:$0xf]
        %v2100 = vld [vmem:[%s2093 + $0x18] sm:$0xf]
        %v2101 = vld [vmem:[%s2093 + $0x1c] sm:$0xf]
        %v2102 = vld [vmem:[%s2093 + $0x20] sm:$0xf]
        %v2103 = vld [vmem:[%s2093 + $0x24] sm:$0xf]
        %v2104 = vld [vmem:[%s2093 + $0x28] sm:$0x3]
        %v2116 = vunpack.c.l.b16 %v2094
        %v2117 = vunpack.c.l.b16 %v2095
        %v2118 = vunpack.c.l.b16 %v2096
        %v2119 = vunpack.c.l.b16 %v2097
        %v2120 = vunpack.c.l.b16 %v2098
        %v2121 = vunpack.c.l.b16 %v2099
        %v2122 = vunpack.c.l.b16 %v2100
        %v2123 = vunpack.c.l.b16 %v2101
        %v2124 = vunpack.c.l.b16 %v2102
        %v2125 = vunpack.c.l.b16 %v2103
        %v2126 = vunpack.c.l.b16 %v2104
        %v2127 = vpack.c.b16 %v2117, %v2116
        %v2128 = vpack.c.b16 %v2119, %v2118
        %v2129 = vpack.c.b16 %v2121, %v2120
        %v2130 = vpack.c.b16 %v2123, %v2122
        %v2131 = vpack.c.b16 %v2125, %v2124
        %v2132 = vpack.c.b16 %v2126, %v2126
        %v2139 = vsel %vm1517, %v2132, 0
        %2141 = vmatprep.subr.bf16.mxu0 0
        %2142 = vmatpush1.bf16.msra.mxu0 %v2127
        %2143 = vmatprep.subr.bf16.mxu0 0
        %2144 = vmatpush1.bf16.msra.mxu0 %v2128
        %2145 = vmatprep.subr.bf16.mxu0 0
        %2146 = vmatpush1.bf16.msra.mxu0 %v2129
        %2147 = vmatprep.subr.bf16.mxu0 0
        %2148 = vmatpush1.bf16.msra.mxu0 %v2130
        %2149 = vmatprep.subr.bf16.mxu0 0
        %2150 = vmatpush1.bf16.msra.mxu0 %v2131
        %2151 = vmatprep.subr.bf16.mxu0 0
        %2152 = vmatpush1.bf16.msra.mxu0 %v2139
        %2153 = vmatprep.subr.bf16.mxu0 0
        %2154 = vmatpush1.bf16.msra.mxu0 0
        %2155 = vmatprep.subr.bf16.mxu0 0
        %2156 = vmatpush1.bf16.msra.mxu0 0
        %2157 = vmatprep.subr.bf16.mxu0 0
        %2158 = vmatpush1.bf16.msra.mxu0 0
        %2159 = vmatprep.subr.bf16.mxu0 0
        %2160 = vmatpush1.bf16.msra.mxu0 0
        %2161 = vmatprep.subr.bf16.mxu0 0
        %2162 = vmatpush1.bf16.msra.mxu0 0
        %2163 = vmatprep.subr.bf16.mxu0 0
        %2164 = vmatpush1.bf16.msra.mxu0 0
        %2165 = vmatprep.subr.bf16.mxu0 0
        %2166 = vmatpush1.bf16.msra.mxu0 0
        %2167 = vmatprep.subr.bf16.mxu0 0
        %2168 = vmatpush1.bf16.msra.mxu0 0
        %2169 = vmatprep.subr.bf16.mxu0 0
        %2170 = vmatpush1.bf16.msra.mxu0 0
        %2171 = vmatprep.subr.bf16.mxu0 0
        %2172 = vmatpush1.bf16.msra.mxu0 0
        %2173 = vmatprep.mubr.bf16.mxu0 0
        %2174 = vmatmul.mubr.bf16.gmra.mrb[0].mxu0 %v2045
        %v2175 = vpop.f32.mrb[0].mxu0
        %v2176 = vadd.f32 0.0, %v2175
        %v2177 = vpop.f32.mrb[0].mxu0
        %v2178 = vpop.f32.mrb[0].mxu0
        %v2179 = vadd.f32 0.0, %v2178
        %v2180 = vpop.f32.mrb[0].mxu0
        %2181 = vdwg.mxu0
        %v2182 = vadd.f32 %v1994, %v2176
        %v2183 = vadd.f32 %v1995, %v2179
        %v2184 = vld [vmem:[#allocation3 + $0x4] sm:$0xff]
        %v2185 = vld [vmem:[#allocation3 + $0xc] sm:$0x3]
        %v2186 = vpack.c.bf16 %v2185, %v2184
        %s2187 = scalar_lea.vmem %s5, 176
        %v2188 = vld [vmem:[%s2187] sm:$0xf]
        %v2189 = vld [vmem:[%s2187 + $0x4] sm:$0xf]
        %v2190 = vld [vmem:[%s2187 + $0x8] sm:$0xf]
        %v2191 = vld [vmem:[%s2187 + $0xc] sm:$0xf]
        %v2192 = vld [vmem:[%s2187 + $0x10] sm:$0xf]
        %v2193 = vld [vmem:[%s2187 + $0x14] sm:$0xf]
        %v2194 = vld [vmem:[%s2187 + $0x18] sm:$0xf]
        %v2195 = vld [vmem:[%s2187 + $0x1c] sm:$0xf]
        %v2196 = vld [vmem:[%s2187 + $0x20] sm:$0xf]
        %v2197 = vld [vmem:[%s2187 + $0x24] sm:$0xf]
        %v2198 = vld [vmem:[%s2187 + $0x28] sm:$0x3]
        %v2210 = vunpack.c.l.b16 %v2188
        %v2211 = vunpack.c.l.b16 %v2189
        %v2212 = vunpack.c.l.b16 %v2190
        %v2213 = vunpack.c.l.b16 %v2191
        %v2214 = vunpack.c.l.b16 %v2192
        %v2215 = vunpack.c.l.b16 %v2193
        %v2216 = vunpack.c.l.b16 %v2194
        %v2217 = vunpack.c.l.b16 %v2195
        %v2218 = vunpack.c.l.b16 %v2196
        %v2219 = vunpack.c.l.b16 %v2197
        %v2220 = vunpack.c.l.b16 %v2198
        %v2221 = vpack.c.b16 %v2211, %v2210
        %v2222 = vpack.c.b16 %v2213, %v2212
        %v2223 = vpack.c.b16 %v2215, %v2214
        %v2224 = vpack.c.b16 %v2217, %v2216
        %v2225 = vpack.c.b16 %v2219, %v2218
        %v2226 = vpack.c.b16 %v2220, %v2220
        %v2233 = vsel %vm1437, %v2186, 0
        %v2236 = vsel %vm1517, %v2226, 0
        %2238 = vmatprep.subr.bf16.mxu0 0
        %2239 = vmatpush1.bf16.msra.mxu0 %v2221
        %2240 = vmatprep.subr.bf16.mxu0 0
        %2241 = vmatpush1.bf16.msra.mxu0 %v2222
        %2242 = vmatprep.subr.bf16.mxu0 0
        %2243 = vmatpush1.bf16.msra.mxu0 %v2223
        %2244 = vmatprep.subr.bf16.mxu0 0
        %2245 = vmatpush1.bf16.msra.mxu0 %v2224
        %2246 = vmatprep.subr.bf16.mxu0 0
        %2247 = vmatpush1.bf16.msra.mxu0 %v2225
        %2248 = vmatprep.subr.bf16.mxu0 0
        %2249 = vmatpush1.bf16.msra.mxu0 %v2236
        %2250 = vmatprep.subr.bf16.mxu0 0
        %2251 = vmatpush1.bf16.msra.mxu0 0
        %2252 = vmatprep.subr.bf16.mxu0 0
        %2253 = vmatpush1.bf16.msra.mxu0 0
        %2254 = vmatprep.subr.bf16.mxu0 0
        %2255 = vmatpush1.bf16.msra.mxu0 0
        %2256 = vmatprep.subr.bf16.mxu0 0
        %2257 = vmatpush1.bf16.msra.mxu0 0
        %2258 = vmatprep.subr.bf16.mxu0 0
        %2259 = vmatpush1.bf16.msra.mxu0 0
        %2260 = vmatprep.subr.bf16.mxu0 0
        %2261 = vmatpush1.bf16.msra.mxu0 0
        %2262 = vmatprep.subr.bf16.mxu0 0
        %2263 = vmatpush1.bf16.msra.mxu0 0
        %2264 = vmatprep.subr.bf16.mxu0 0
        %2265 = vmatpush1.bf16.msra.mxu0 0
        %2266 = vmatprep.subr.bf16.mxu0 0
        %2267 = vmatpush1.bf16.msra.mxu0 0
        %2268 = vmatprep.subr.bf16.mxu0 0
        %2269 = vmatpush1.bf16.msra.mxu0 0
        %2270 = vmatprep.mubr.bf16.mxu0 0
        %2271 = vmatmul.mubr.bf16.gmra.mrb[0].mxu0 %v2233
        %v2272 = vpop.f32.mrb[0].mxu0
        %v2273 = vadd.f32 0.0, %v2272
        %v2274 = vpop.f32.mrb[0].mxu0
        %v2275 = vpop.f32.mrb[0].mxu0
        %v2276 = vadd.f32 0.0, %v2275
        %v2277 = vpop.f32.mrb[0].mxu0
        %2278 = vdwg.mxu0
        %v2279 = vadd.f32 %v2091, %v2273
        %v2280 = vadd.f32 %v2092, %v2276
        %s2281 = scalar_lea.vmem %s6, 176
        %v2282 = vld [vmem:[%s2281] sm:$0xf]
        %v2283 = vld [vmem:[%s2281 + $0x4] sm:$0xf]
        %v2284 = vld [vmem:[%s2281 + $0x8] sm:$0xf]
        %v2285 = vld [vmem:[%s2281 + $0xc] sm:$0xf]
        %v2286 = vld [vmem:[%s2281 + $0x10] sm:$0xf]
        %v2287 = vld [vmem:[%s2281 + $0x14] sm:$0xf]
        %v2288 = vld [vmem:[%s2281 + $0x18] sm:$0xf]
        %v2289 = vld [vmem:[%s2281 + $0x1c] sm:$0xf]
        %v2290 = vld [vmem:[%s2281 + $0x20] sm:$0xf]
        %v2291 = vld [vmem:[%s2281 + $0x24] sm:$0xf]
        %v2292 = vld [vmem:[%s2281 + $0x28] sm:$0x3]
        %v2304 = vunpack.c.l.b16 %v2282
        %v2305 = vunpack.c.l.b16 %v2283
        %v2306 = vunpack.c.l.b16 %v2284
        %v2307 = vunpack.c.l.b16 %v2285
        %v2308 = vunpack.c.l.b16 %v2286
        %v2309 = vunpack.c.l.b16 %v2287
        %v2310 = vunpack.c.l.b16 %v2288
        %v2311 = vunpack.c.l.b16 %v2289
        %v2312 = vunpack.c.l.b16 %v2290
        %v2313 = vunpack.c.l.b16 %v2291
        %v2314 = vunpack.c.l.b16 %v2292
        %v2315 = vpack.c.b16 %v2305, %v2304
        %v2316 = vpack.c.b16 %v2307, %v2306
        %v2317 = vpack.c.b16 %v2309, %v2308
        %v2318 = vpack.c.b16 %v2311, %v2310
        %v2319 = vpack.c.b16 %v2313, %v2312
        %v2320 = vpack.c.b16 %v2314, %v2314
        %v2327 = vsel %vm1517, %v2320, 0
        %2329 = vmatprep.subr.bf16.mxu0 0
        %2330 = vmatpush1.bf16.msra.mxu0 %v2315
        %2331 = vmatprep.subr.bf16.mxu0 0
        %2332 = vmatpush1.bf16.msra.mxu0 %v2316
        %2333 = vmatprep.subr.bf16.mxu0 0
        %2334 = vmatpush1.bf16.msra.mxu0 %v2317
        %2335 = vmatprep.subr.bf16.mxu0 0
        %2336 = vmatpush1.bf16.msra.mxu0 %v2318
        %2337 = vmatprep.subr.bf16.mxu0 0
        %2338 = vmatpush1.bf16.msra.mxu0 %v2319
        %2339 = vmatprep.subr.bf16.mxu0 0
        %2340 = vmatpush1.bf16.msra.mxu0 %v2327
        %2341 = vmatprep.subr.bf16.mxu0 0
        %2342 = vmatpush1.bf16.msra.mxu0 0
        %2343 = vmatprep.subr.bf16.mxu0 0
        %2344 = vmatpush1.bf16.msra.mxu0 0
        %2345 = vmatprep.subr.bf16.mxu0 0
        %2346 = vmatpush1.bf16.msra.mxu0 0
        %2347 = vmatprep.subr.bf16.mxu0 0
        %2348 = vmatpush1.bf16.msra.mxu0 0
        %2349 = vmatprep.subr.bf16.mxu0 0
        %2350 = vmatpush1.bf16.msra.mxu0 0
        %2351 = vmatprep.subr.bf16.mxu0 0
        %2352 = vmatpush1.bf16.msra.mxu0 0
        %2353 = vmatprep.subr.bf16.mxu0 0
        %2354 = vmatpush1.bf16.msra.mxu0 0
        %2355 = vmatprep.subr.bf16.mxu0 0
        %2356 = vmatpush1.bf16.msra.mxu0 0
        %2357 = vmatprep.subr.bf16.mxu0 0
        %2358 = vmatpush1.bf16.msra.mxu0 0
        %2359 = vmatprep.subr.bf16.mxu0 0
        %2360 = vmatpush1.bf16.msra.mxu0 0
        %2361 = vmatprep.mubr.bf16.mxu0 0
        %2362 = vmatmul.mubr.bf16.gmra.mrb[0].mxu0 %v2233
        %v2363 = vpop.f32.mrb[0].mxu0
        %v2364 = vadd.f32 0.0, %v2363
        %v2365 = vpop.f32.mrb[0].mxu0
        %v2366 = vpop.f32.mrb[0].mxu0
        %v2367 = vadd.f32 0.0, %v2366
        %v2368 = vpop.f32.mrb[0].mxu0
        %2369 = vdwg.mxu0
        %v2370 = vadd.f32 %v2182, %v2364
        %v2371 = vadd.f32 %v2183, %v2367
        %v2372 = vmax.f32 %v2279, %v2370
        %v2373 = vmax.f32 %v2280, %v2371
        %v2374 = vld [vmem:[%s7] sm:$0x1]
        %v2376 = vlaneseq
        %v2377 = vshrl.u32 %v2376, 7
        %v2378 = vsub.s32 0, %v2377
        %v2379 = vrot.slane %v2374, %v2378
        %v2381 = vadd.f32 %v2372, %v2379
        %v2382 = vadd.f32 %v2373, %v2379
        %v2383 = vmax.f32 %v2381, 0.0
        %v2384 = vmax.f32 %v2382, 0.0
        %v2385 = vld [vmem:[%s8] sm:$0x1f]
        %vm2386 = vcmask 80896
        %v2388 = vsel %vm2386, %v2385, 0
        %v2391 = vsel %vm1517, %v2384, 0
        %2393 = vmatprep.subr.mxu0 0.0
        %2394 = vmatpush1.msra.mxu0 %v2383
        %2395 = vmatprep.subr.mxu0 0.0
        %2396 = vmatpush1.msra.mxu0 %v2391
        %2397 = vmatprep.subr.mxu0 0.0
        %2398 = vmatpush1.msra.mxu0 0.0
        %2399 = vmatprep.subr.mxu0 0.0
        %2400 = vmatpush1.msra.mxu0 0.0
        %2401 = vmatprep.subr.mxu0 0.0
        %2402 = vmatpush1.msra.mxu0 0.0
        %2403 = vmatprep.subr.mxu0 0.0
        %2404 = vmatpush1.msra.mxu0 0.0
        %2405 = vmatprep.subr.mxu0 0.0
        %2406 = vmatpush1.msra.mxu0 0.0
        %2407 = vmatprep.subr.mxu0 0.0
        %2408 = vmatpush1.msra.mxu0 0.0
        %2409 = vmatprep.subr.mxu0 0.0
        %2410 = vmatpush1.msra.mxu0 0.0
        %2411 = vmatprep.subr.mxu0 0.0
        %2412 = vmatpush1.msra.mxu0 0.0
        %2413 = vmatprep.subr.mxu0 0.0
        %2414 = vmatpush1.msra.mxu0 0.0
        %2415 = vmatprep.subr.mxu0 0.0
        %2416 = vmatpush1.msra.mxu0 0.0
        %2417 = vmatprep.subr.mxu0 0.0
        %2418 = vmatpush1.msra.mxu0 0.0
        %2419 = vmatprep.subr.mxu0 0.0
        %2420 = vmatpush1.msra.mxu0 0.0
        %2421 = vmatprep.subr.mxu0 0.0
        %2422 = vmatpush1.msra.mxu0 0.0
        %2423 = vmatprep.subr.mxu0 0.0
        %2424 = vmatpush1.msra.mxu0 0.0
        %2425 = vmatprep.subr.mxu0 0.0
        %2426 = vmatpush1.msra.mxu0 0.0
        %2427 = vmatprep.subr.mxu0 0.0
        %2428 = vmatpush1.msra.mxu0 0.0
        %2429 = vmatprep.subr.mxu0 0.0
        %2430 = vmatpush1.msra.mxu0 0.0
        %2431 = vmatprep.subr.mxu0 0.0
        %2432 = vmatpush1.msra.mxu0 0.0
        %2433 = vmatprep.subr.mxu0 0.0
        %2434 = vmatpush1.msra.mxu0 0.0
        %2435 = vmatprep.subr.mxu0 0.0
        %2436 = vmatpush1.msra.mxu0 0.0
        %2437 = vmatprep.subr.mxu0 0.0
        %2438 = vmatpush1.msra.mxu0 0.0
        %2439 = vmatprep.subr.mxu0 0.0
        %2440 = vmatpush1.msra.mxu0 0.0
        %2441 = vmatprep.subr.mxu0 0.0
        %2442 = vmatpush1.msra.mxu0 0.0
        %2443 = vmatprep.subr.mxu0 0.0
        %2444 = vmatpush1.msra.mxu0 0.0
        %2445 = vmatprep.subr.mxu0 0.0
        %2446 = vmatpush1.msra.mxu0 0.0
        %2447 = vmatprep.subr.mxu0 0.0
        %2448 = vmatpush1.msra.mxu0 0.0
        %2449 = vmatprep.subr.mxu0 0.0
        %2450 = vmatpush1.msra.mxu0 0.0
        %2451 = vmatprep.subr.mxu0 0.0
        %2452 = vmatpush1.msra.mxu0 0.0
        %2453 = vmatprep.subr.mxu0 0.0
        %2454 = vmatpush1.msra.mxu0 0.0
        %2455 = vmatprep.subr.mxu0 0.0
        %2456 = vmatpush1.msra.mxu0 0.0
        %2457 = vmatprep.mubr.f32.mxu0 0.0
        %2458 = vmatmul.mubr.f32.gmra.mrb[0].mxu0 %v2388
        %v2459 = vpop.f32.mrb[0].mxu0
        %v2460 = vadd.f32 0.0, %v2459
        %v2461 = vpop.f32.mrb[0].mxu0
        %2462 = vdwg.mxu0
        %s2463 = scalar_lea.vmem %s8, 8
        %v2464 = vld [vmem:[%s2463] sm:$0x1f]
        %v2466 = vsel %vm2386, %v2464, 0
        %2468 = vmatprep.subr.mxu0 0.0
        %2469 = vmatpush1.msra.mxu0 %v2383
        %2470 = vmatprep.subr.mxu0 0.0
        %2471 = vmatpush1.msra.mxu0 %v2391
        %2472 = vmatprep.subr.mxu0 0.0
        %2473 = vmatpush1.msra.mxu0 0.0
        %2474 = vmatprep.subr.mxu0 0.0
        %2475 = vmatpush1.msra.mxu0 0.0
        %2476 = vmatprep.subr.mxu0 0.0
        %2477 = vmatpush1.msra.mxu0 0.0
        %2478 = vmatprep.subr.mxu0 0.0
        %2479 = vmatpush1.msra.mxu0 0.0
        %2480 = vmatprep.subr.mxu0 0.0
        %2481 = vmatpush1.msra.mxu0 0.0
        %2482 = vmatprep.subr.mxu0 0.0
        %2483 = vmatpush1.msra.mxu0 0.0
        %2484 = vmatprep.subr.mxu0 0.0
        %2485 = vmatpush1.msra.mxu0 0.0
        %2486 = vmatprep.subr.mxu0 0.0
        %2487 = vmatpush1.msra.mxu0 0.0
        %2488 = vmatprep.subr.mxu0 0.0
        %2489 = vmatpush1.msra.mxu0 0.0
        %2490 = vmatprep.subr.mxu0 0.0
        %2491 = vmatpush1.msra.mxu0 0.0
        %2492 = vmatprep.subr.mxu0 0.0
        %2493 = vmatpush1.msra.mxu0 0.0
        %2494 = vmatprep.subr.mxu0 0.0
        %2495 = vmatpush1.msra.mxu0 0.0
        %2496 = vmatprep.subr.mxu0 0.0
        %2497 = vmatpush1.msra.mxu0 0.0
        %2498 = vmatprep.subr.mxu0 0.0
        %2499 = vmatpush1.msra.mxu0 0.0
        %2500 = vmatprep.subr.mxu0 0.0
        %2501 = vmatpush1.msra.mxu0 0.0
        %2502 = vmatprep.subr.mxu0 0.0
        %2503 = vmatpush1.msra.mxu0 0.0
        %2504 = vmatprep.subr.mxu0 0.0
        %2505 = vmatpush1.msra.mxu0 0.0
        %2506 = vmatprep.subr.mxu0 0.0
        %2507 = vmatpush1.msra.mxu0 0.0
        %2508 = vmatprep.subr.mxu0 0.0
        %2509 = vmatpush1.msra.mxu0 0.0
        %2510 = vmatprep.subr.mxu0 0.0
        %2511 = vmatpush1.msra.mxu0 0.0
        %2512 = vmatprep.subr.mxu0 0.0
        %2513 = vmatpush1.msra.mxu0 0.0
        %2514 = vmatprep.subr.mxu0 0.0
        %2515 = vmatpush1.msra.mxu0 0.0
        %2516 = vmatprep.subr.mxu0 0.0
        %2517 = vmatpush1.msra.mxu0 0.0
        %2518 = vmatprep.subr.mxu0 0.0
        %2519 = vmatpush1.msra.mxu0 0.0
        %2520 = vmatprep.subr.mxu0 0.0
        %2521 = vmatpush1.msra.mxu0 0.0
        %2522 = vmatprep.subr.mxu0 0.0
        %2523 = vmatpush1.msra.mxu0 0.0
        %2524 = vmatprep.subr.mxu0 0.0
        %2525 = vmatpush1.msra.mxu0 0.0
        %2526 = vmatprep.subr.mxu0 0.0
        %2527 = vmatpush1.msra.mxu0 0.0
        %2528 = vmatprep.subr.mxu0 0.0
        %2529 = vmatpush1.msra.mxu0 0.0
        %2530 = vmatprep.subr.mxu0 0.0
        %2531 = vmatpush1.msra.mxu0 0.0
        %2532 = vmatprep.mubr.f32.mxu0 0.0
        %2533 = vmatmul.mubr.f32.gmra.mrb[0].mxu0 %v2466
        %v2534 = vpop.f32.mrb[0].mxu0
        %v2535 = vadd.f32 0.0, %v2534
        %v2536 = vpop.f32.mrb[0].mxu0
        %2537 = vdwg.mxu0
        %v2538 = vmax.f32 %v2460, %v2535
        %vm2539 = vcmask 651264
        %2540 = vst.msk [vmem:[#allocation4] sm:$0x1f] %vm2539, %v2538
        %v2541 = vld [vmem:[%s10] sm:$0x1]
        %v2542 = vld [vmem:[#allocation4] sm:$0x1]
        %v2543 = vpack.c.bf16 %v2542, %v2542
        %v2544 = vld [vmem:[%s9] sm:$0xf]
        %v2545 = vld [vmem:[%s9 + $0x4] sm:$0xf]
        %v2546 = vld [vmem:[%s9 + $0x8] sm:$0xf]
        %v2547 = vld [vmem:[%s9 + $0xc] sm:$0xf]
        %v2548 = vld [vmem:[%s9 + $0x10] sm:$0xf]
        %v2549 = vld [vmem:[%s9 + $0x14] sm:$0xf]
        %v2550 = vld [vmem:[%s9 + $0x18] sm:$0xf]
        %v2551 = vld [vmem:[%s9 + $0x1c] sm:$0xf]
        %v2552 = vld [vmem:[%s9 + $0x20] sm:$0xf]
        %v2553 = vld [vmem:[%s9 + $0x24] sm:$0xf]
        %v2564 = vunpack.c.l.b16 %v2544
        %v2565 = vunpack.c.l.b16 %v2545
        %v2566 = vunpack.c.l.b16 %v2546
        %v2567 = vunpack.c.l.b16 %v2547
        %v2568 = vunpack.c.l.b16 %v2548
        %v2569 = vunpack.c.l.b16 %v2549
        %v2570 = vunpack.c.l.b16 %v2550
        %v2571 = vunpack.c.l.b16 %v2551
        %v2572 = vunpack.c.l.b16 %v2552
        %v2573 = vunpack.c.l.b16 %v2553
        %v2574 = vpack.c.b16 %v2565, %v2564
        %v2575 = vpack.c.b16 %v2567, %v2566
        %v2576 = vpack.c.b16 %v2569, %v2568
        %v2577 = vpack.c.b16 %v2571, %v2570
        %v2578 = vpack.c.b16 %v2573, %v2572
        %vm2584 = vcmask 654336
        %v2586 = vsel %vm2584, %v2543, 0
        %2588 = vmatprep.subr.bf16.mxu0 0
        %2589 = vmatpush1.bf16.msra.mxu0 %v2574
        %2590 = vmatprep.subr.bf16.mxu0 0
        %2591 = vmatpush1.bf16.msra.mxu0 %v2575
        %2592 = vmatprep.subr.bf16.mxu0 0
        %2593 = vmatpush1.bf16.msra.mxu0 %v2576
        %2594 = vmatprep.subr.bf16.mxu0 0
        %2595 = vmatpush1.bf16.msra.mxu0 %v2577
        %2596 = vmatprep.subr.bf16.mxu0 0
        %2597 = vmatpush1.bf16.msra.mxu0 %v2578
        %2598 = vmatprep.subr.bf16.mxu0 0
        %2599 = vmatpush1.bf16.msra.mxu0 0
        %2600 = vmatprep.subr.bf16.mxu0 0
        %2601 = vmatpush1.bf16.msra.mxu0 0
        %2602 = vmatprep.subr.bf16.mxu0 0
        %2603 = vmatpush1.bf16.msra.mxu0 0
        %2604 = vmatprep.subr.bf16.mxu0 0
        %2605 = vmatpush1.bf16.msra.mxu0 0
        %2606 = vmatprep.subr.bf16.mxu0 0
        %2607 = vmatpush1.bf16.msra.mxu0 0
        %2608 = vmatprep.subr.bf16.mxu0 0
        %2609 = vmatpush1.bf16.msra.mxu0 0
        %2610 = vmatprep.subr.bf16.mxu0 0
        %2611 = vmatpush1.bf16.msra.mxu0 0
        %2612 = vmatprep.subr.bf16.mxu0 0
        %2613 = vmatpush1.bf16.msra.mxu0 0
        %2614 = vmatprep.subr.bf16.mxu0 0
        %2615 = vmatpush1.bf16.msra.mxu0 0
        %2616 = vmatprep.subr.bf16.mxu0 0
        %2617 = vmatpush1.bf16.msra.mxu0 0
        %2618 = vmatprep.subr.bf16.mxu0 0
        %2619 = vmatpush1.bf16.msra.mxu0 0
        %2620 = vmatprep.mubr.bf16.mxu0 0
        %2621 = vmatmul.mubr.bf16.gmra.mrb[0].mxu0 %v2586
        %v2622 = vpop.f32.mrb[0].mxu0
        %v2623 = vadd.f32 0.0, %v2622
        %v2624 = vpop.f32.mrb[0].mxu0
        %v2625 = vpop.f32.mrb[0].mxu0
        %v2626 = vpop.f32.mrb[0].mxu0
        %2627 = vdwg.mxu0
        %v2628 = vadd.f32 %v2541, %v2623
        %v2629 = vld [vmem:[#allocation4 + $0x1] sm:$0x1]
        %v2630 = vpack.c.bf16 %v2629, %v2629
        %s2631 = scalar_lea.vmem %s9, 40
        %v2632 = vld [vmem:[%s2631] sm:$0xf]
        %v2633 = vld [vmem:[%s2631 + $0x4] sm:$0xf]
        %v2634 = vld [vmem:[%s2631 + $0x8] sm:$0xf]
        %v2635 = vld [vmem:[%s2631 + $0xc] sm:$0xf]
        %v2636 = vld [vmem:[%s2631 + $0x10] sm:$0xf]
        %v2637 = vld [vmem:[%s2631 + $0x14] sm:$0xf]
        %v2638 = vld [vmem:[%s2631 + $0x18] sm:$0xf]
        %v2639 = vld [vmem:[%s2631 + $0x1c] sm:$0xf]
        %v2640 = vld [vmem:[%s2631 + $0x20] sm:$0xf]
        %v2641 = vld [vmem:[%s2631 + $0x24] sm:$0xf]
        %v2652 = vunpack.c.l.b16 %v2632
        %v2653 = vunpack.c.l.b16 %v2633
        %v2654 = vunpack.c.l.b16 %v2634
        %v2655 = vunpack.c.l.b16 %v2635
        %v2656 = vunpack.c.l.b16 %v2636
        %v2657 = vunpack.c.l.b16 %v2637
        %v2658 = vunpack.c.l.b16 %v2638
        %v2659 = vunpack.c.l.b16 %v2639
        %v2660 = vunpack.c.l.b16 %v2640
        %v2661 = vunpack.c.l.b16 %v2641
        %v2662 = vpack.c.b16 %v2653, %v2652
        %v2663 = vpack.c.b16 %v2655, %v2654
        %v2664 = vpack.c.b16 %v2657, %v2656
        %v2665 = vpack.c.b16 %v2659, %v2658
        %v2666 = vpack.c.b16 %v2661, %v2660
        %v2673 = vsel %vm2584, %v2630, 0
        %2675 = vmatprep.subr.bf16.mxu0 0
        %2676 = vmatpush1.bf16.msra.mxu0 %v2662
        %2677 = vmatprep.subr.bf16.mxu0 0
        %2678 = vmatpush1.bf16.msra.mxu0 %v2663
        %2679 = vmatprep.subr.bf16.mxu0 0
        %2680 = vmatpush1.bf16.msra.mxu0 %v2664
        %2681 = vmatprep.subr.bf16.mxu0 0
        %2682 = vmatpush1.bf16.msra.mxu0 %v2665
        %2683 = vmatprep.subr.bf16.mxu0 0
        %2684 = vmatpush1.bf16.msra.mxu0 %v2666
        %2685 = vmatprep.subr.bf16.mxu0 0
        %2686 = vmatpush1.bf16.msra.mxu0 0
        %2687 = vmatprep.subr.bf16.mxu0 0
        %2688 = vmatpush1.bf16.msra.mxu0 0
        %2689 = vmatprep.subr.bf16.mxu0 0
        %2690 = vmatpush1.bf16.msra.mxu0 0
        %2691 = vmatprep.subr.bf16.mxu0 0
        %2692 = vmatpush1.bf16.msra.mxu0 0
        %2693 = vmatprep.subr.bf16.mxu0 0
        %2694 = vmatpush1.bf16.msra.mxu0 0
        %2695 = vmatprep.subr.bf16.mxu0 0
        %2696 = vmatpush1.bf16.msra.mxu0 0
        %2697 = vmatprep.subr.bf16.mxu0 0
        %2698 = vmatpush1.bf16.msra.mxu0 0
        %2699 = vmatprep.subr.bf16.mxu0 0
        %2700 = vmatpush1.bf16.msra.mxu0 0
        %2701 = vmatprep.subr.bf16.mxu0 0
        %2702 = vmatpush1.bf16.msra.mxu0 0
        %2703 = vmatprep.subr.bf16.mxu0 0
        %2704 = vmatpush1.bf16.msra.mxu0 0
        %2705 = vmatprep.subr.bf16.mxu0 0
        %2706 = vmatpush1.bf16.msra.mxu0 0
        %2707 = vmatprep.mubr.bf16.mxu0 0
        %2708 = vmatmul.mubr.bf16.gmra.mrb[0].mxu0 %v2673
        %v2709 = vpop.f32.mrb[0].mxu0
        %v2710 = vadd.f32 0.0, %v2709
        %v2711 = vpop.f32.mrb[0].mxu0
        %v2712 = vpop.f32.mrb[0].mxu0
        %v2713 = vpop.f32.mrb[0].mxu0
        %2714 = vdwg.mxu0
        %v2715 = vadd.f32 %v2628, %v2710
        %v2716 = vld [vmem:[#allocation4 + $0x2] sm:$0x1]
        %v2717 = vpack.c.bf16 %v2716, %v2716
        %s2718 = scalar_lea.vmem %s9, 80
        %v2719 = vld [vmem:[%s2718] sm:$0xf]
        %v2720 = vld [vmem:[%s2718 + $0x4] sm:$0xf]
        %v2721 = vld [vmem:[%s2718 + $0x8] sm:$0xf]
        %v2722 = vld [vmem:[%s2718 + $0xc] sm:$0xf]
        %v2723 = vld [vmem:[%s2718 + $0x10] sm:$0xf]
        %v2724 = vld [vmem:[%s2718 + $0x14] sm:$0xf]
        %v2725 = vld [vmem:[%s2718 + $0x18] sm:$0xf]
        %v2726 = vld [vmem:[%s2718 + $0x1c] sm:$0xf]
        %v2727 = vld [vmem:[%s2718 + $0x20] sm:$0xf]
        %v2728 = vld [vmem:[%s2718 + $0x24] sm:$0xf]
        %v2739 = vunpack.c.l.b16 %v2719
        %v2740 = vunpack.c.l.b16 %v2720
        %v2741 = vunpack.c.l.b16 %v2721
        %v2742 = vunpack.c.l.b16 %v2722
        %v2743 = vunpack.c.l.b16 %v2723
        %v2744 = vunpack.c.l.b16 %v2724
        %v2745 = vunpack.c.l.b16 %v2725
        %v2746 = vunpack.c.l.b16 %v2726
        %v2747 = vunpack.c.l.b16 %v2727
        %v2748 = vunpack.c.l.b16 %v2728
        %v2749 = vpack.c.b16 %v2740, %v2739
        %v2750 = vpack.c.b16 %v2742, %v2741
        %v2751 = vpack.c.b16 %v2744, %v2743
        %v2752 = vpack.c.b16 %v2746, %v2745
        %v2753 = vpack.c.b16 %v2748, %v2747
        %v2760 = vsel %vm2584, %v2717, 0
        %2762 = vmatprep.subr.bf16.mxu0 0
        %2763 = vmatpush1.bf16.msra.mxu0 %v2749
        %2764 = vmatprep.subr.bf16.mxu0 0
        %2765 = vmatpush1.bf16.msra.mxu0 %v2750
        %2766 = vmatprep.subr.bf16.mxu0 0
        %2767 = vmatpush1.bf16.msra.mxu0 %v2751
        %2768 = vmatprep.subr.bf16.mxu0 0
        %2769 = vmatpush1.bf16.msra.mxu0 %v2752
        %2770 = vmatprep.subr.bf16.mxu0 0
        %2771 = vmatpush1.bf16.msra.mxu0 %v2753
        %2772 = vmatprep.subr.bf16.mxu0 0
        %2773 = vmatpush1.bf16.msra.mxu0 0
        %2774 = vmatprep.subr.bf16.mxu0 0
        %2775 = vmatpush1.bf16.msra.mxu0 0
        %2776 = vmatprep.subr.bf16.mxu0 0
        %2777 = vmatpush1.bf16.msra.mxu0 0
        %2778 = vmatprep.subr.bf16.mxu0 0
        %2779 = vmatpush1.bf16.msra.mxu0 0
        %2780 = vmatprep.subr.bf16.mxu0 0
        %2781 = vmatpush1.bf16.msra.mxu0 0
        %2782 = vmatprep.subr.bf16.mxu0 0
        %2783 = vmatpush1.bf16.msra.mxu0 0
        %2784 = vmatprep.subr.bf16.mxu0 0
        %2785 = vmatpush1.bf16.msra.mxu0 0
        %2786 = vmatprep.subr.bf16.mxu0 0
        %2787 = vmatpush1.bf16.msra.mxu0 0
        %2788 = vmatprep.subr.bf16.mxu0 0
        %2789 = vmatpush1.bf16.msra.mxu0 0
        %2790 = vmatprep.subr.bf16.mxu0 0
        %2791 = vmatpush1.bf16.msra.mxu0 0
        %2792 = vmatprep.subr.bf16.mxu0 0
        %2793 = vmatpush1.bf16.msra.mxu0 0
        %2794 = vmatprep.mubr.bf16.mxu0 0
        %2795 = vmatmul.mubr.bf16.gmra.mrb[0].mxu0 %v2760
        %v2796 = vpop.f32.mrb[0].mxu0
        %v2797 = vadd.f32 0.0, %v2796
        %v2798 = vpop.f32.mrb[0].mxu0
        %v2799 = vpop.f32.mrb[0].mxu0
        %v2800 = vpop.f32.mrb[0].mxu0
        %2801 = vdwg.mxu0
        %v2802 = vadd.f32 %v2715, %v2797
        %v2803 = vld [vmem:[#allocation4 + $0x3] sm:$0x1]
        %v2804 = vpack.c.bf16 %v2803, %v2803
        %s2805 = scalar_lea.vmem %s9, 120
        %v2806 = vld [vmem:[%s2805] sm:$0xf]
        %v2807 = vld [vmem:[%s2805 + $0x4] sm:$0xf]
        %v2808 = vld [vmem:[%s2805 + $0x8] sm:$0xf]
        %v2809 = vld [vmem:[%s2805 + $0xc] sm:$0xf]
        %v2810 = vld [vmem:[%s2805 + $0x10] sm:$0xf]
        %v2811 = vld [vmem:[%s2805 + $0x14] sm:$0xf]
        %v2812 = vld [vmem:[%s2805 + $0x18] sm:$0xf]
        %v2813 = vld [vmem:[%s2805 + $0x1c] sm:$0xf]
        %v2814 = vld [vmem:[%s2805 + $0x20] sm:$0xf]
        %v2815 = vld [vmem:[%s2805 + $0x24] sm:$0xf]
        %v2826 = vunpack.c.l.b16 %v2806
        %v2827 = vunpack.c.l.b16 %v2807
        %v2828 = vunpack.c.l.b16 %v2808
        %v2829 = vunpack.c.l.b16 %v2809
        %v2830 = vunpack.c.l.b16 %v2810
        %v2831 = vunpack.c.l.b16 %v2811
        %v2832 = vunpack.c.l.b16 %v2812
        %v2833 = vunpack.c.l.b16 %v2813
        %v2834 = vunpack.c.l.b16 %v2814
        %v2835 = vunpack.c.l.b16 %v2815
        %v2836 = vpack.c.b16 %v2827, %v2826
        %v2837 = vpack.c.b16 %v2829, %v2828
        %v2838 = vpack.c.b16 %v2831, %v2830
        %v2839 = vpack.c.b16 %v2833, %v2832
        %v2840 = vpack.c.b16 %v2835, %v2834
        %v2847 = vsel %vm2584, %v2804, 0
        %2849 = vmatprep.subr.bf16.mxu0 0
        %2850 = vmatpush1.bf16.msra.mxu0 %v2836
        %2851 = vmatprep.subr.bf16.mxu0 0
        %2852 = vmatpush1.bf16.msra.mxu0 %v2837
        %2853 = vmatprep.subr.bf16.mxu0 0
        %2854 = vmatpush1.bf16.msra.mxu0 %v2838
        %2855 = vmatprep.subr.bf16.mxu0 0
        %2856 = vmatpush1.bf16.msra.mxu0 %v2839
        %2857 = vmatprep.subr.bf16.mxu0 0
        %2858 = vmatpush1.bf16.msra.mxu0 %v2840
        %2859 = vmatprep.subr.bf16.mxu0 0
        %2860 = vmatpush1.bf16.msra.mxu0 0
        %2861 = vmatprep.subr.bf16.mxu0 0
        %2862 = vmatpush1.bf16.msra.mxu0 0
        %2863 = vmatprep.subr.bf16.mxu0 0
        %2864 = vmatpush1.bf16.msra.mxu0 0
        %2865 = vmatprep.subr.bf16.mxu0 0
        %2866 = vmatpush1.bf16.msra.mxu0 0
        %2867 = vmatprep.subr.bf16.mxu0 0
        %2868 = vmatpush1.bf16.msra.mxu0 0
        %2869 = vmatprep.subr.bf16.mxu0 0
        %2870 = vmatpush1.bf16.msra.mxu0 0
        %2871 = vmatprep.subr.bf16.mxu0 0
        %2872 = vmatpush1.bf16.msra.mxu0 0
        %2873 = vmatprep.subr.bf16.mxu0 0
        %2874 = vmatpush1.bf16.msra.mxu0 0
        %2875 = vmatprep.subr.bf16.mxu0 0
        %2876 = vmatpush1.bf16.msra.mxu0 0
        %2877 = vmatprep.subr.bf16.mxu0 0
        %2878 = vmatpush1.bf16.msra.mxu0 0
        %2879 = vmatprep.subr.bf16.mxu0 0
        %2880 = vmatpush1.bf16.msra.mxu0 0
        %2881 = vmatprep.mubr.bf16.mxu0 0
        %2882 = vmatmul.mubr.bf16.gmra.mrb[0].mxu0 %v2847
        %v2883 = vpop.f32.mrb[0].mxu0
        %v2884 = vadd.f32 0.0, %v2883
        %v2885 = vpop.f32.mrb[0].mxu0
        %v2886 = vpop.f32.mrb[0].mxu0
        %v2887 = vpop.f32.mrb[0].mxu0
        %2888 = vdwg.mxu0
        %v2889 = vadd.f32 %v2802, %v2884
        %v2890 = vld [vmem:[#allocation4 + $0x4] sm:$0x1]
        %v2891 = vpack.c.bf16 %v2890, %v2890
        %s2892 = scalar_lea.vmem %s9, 160
        %v2893 = vld [vmem:[%s2892] sm:$0xf]
        %v2894 = vld [vmem:[%s2892 + $0x4] sm:$0xf]
        %v2895 = vld [vmem:[%s2892 + $0x8] sm:$0xf]
        %v2896 = vld [vmem:[%s2892 + $0xc] sm:$0xf]
        %v2897 = vld [vmem:[%s2892 + $0x10] sm:$0xf]
        %v2898 = vld [vmem:[%s2892 + $0x14] sm:$0xf]
        %v2899 = vld [vmem:[%s2892 + $0x18] sm:$0xf]
        %v2900 = vld [vmem:[%s2892 + $0x1c] sm:$0xf]
        %v2901 = vld [vmem:[%s2892 + $0x20] sm:$0xf]
        %v2902 = vld [vmem:[%s2892 + $0x24] sm:$0xf]
        %v2913 = vunpack.c.l.b16 %v2893
        %v2914 = vunpack.c.l.b16 %v2894
        %v2915 = vunpack.c.l.b16 %v2895
        %v2916 = vunpack.c.l.b16 %v2896
        %v2917 = vunpack.c.l.b16 %v2897
        %v2918 = vunpack.c.l.b16 %v2898
        %v2919 = vunpack.c.l.b16 %v2899
        %v2920 = vunpack.c.l.b16 %v2900
        %v2921 = vunpack.c.l.b16 %v2901
        %v2922 = vunpack.c.l.b16 %v2902
        %v2923 = vpack.c.b16 %v2914, %v2913
        %v2924 = vpack.c.b16 %v2916, %v2915
        %v2925 = vpack.c.b16 %v2918, %v2917
        %v2926 = vpack.c.b16 %v2920, %v2919
        %v2927 = vpack.c.b16 %v2922, %v2921
        %v2934 = vsel %vm2584, %v2891, 0
        %2936 = vmatprep.subr.bf16.mxu0 0
        %2937 = vmatpush1.bf16.msra.mxu0 %v2923
        %2938 = vmatprep.subr.bf16.mxu0 0
        %2939 = vmatpush1.bf16.msra.mxu0 %v2924
        %2940 = vmatprep.subr.bf16.mxu0 0
        %2941 = vmatpush1.bf16.msra.mxu0 %v2925
        %2942 = vmatprep.subr.bf16.mxu0 0
        %2943 = vmatpush1.bf16.msra.mxu0 %v2926
        %2944 = vmatprep.subr.bf16.mxu0 0
        %2945 = vmatpush1.bf16.msra.mxu0 %v2927
        %2946 = vmatprep.subr.bf16.mxu0 0
        %2947 = vmatpush1.bf16.msra.mxu0 0
        %2948 = vmatprep.subr.bf16.mxu0 0
        %2949 = vmatpush1.bf16.msra.mxu0 0
        %2950 = vmatprep.subr.bf16.mxu0 0
        %2951 = vmatpush1.bf16.msra.mxu0 0
        %2952 = vmatprep.subr.bf16.mxu0 0
        %2953 = vmatpush1.bf16.msra.mxu0 0
        %2954 = vmatprep.subr.bf16.mxu0 0
        %2955 = vmatpush1.bf16.msra.mxu0 0
        %2956 = vmatprep.subr.bf16.mxu0 0
        %2957 = vmatpush1.bf16.msra.mxu0 0
        %2958 = vmatprep.subr.bf16.mxu0 0
        %2959 = vmatpush1.bf16.msra.mxu0 0
        %2960 = vmatprep.subr.bf16.mxu0 0
        %2961 = vmatpush1.bf16.msra.mxu0 0
        %2962 = vmatprep.subr.bf16.mxu0 0
        %2963 = vmatpush1.bf16.msra.mxu0 0
        %2964 = vmatprep.subr.bf16.mxu0 0
        %2965 = vmatpush1.bf16.msra.mxu0 0
        %2966 = vmatprep.subr.bf16.mxu0 0
        %2967 = vmatpush1.bf16.msra.mxu0 0
        %2968 = vmatprep.mubr.bf16.mxu0 0
        %2969 = vmatmul.mubr.bf16.gmra.mrb[0].mxu0 %v2934
        %v2970 = vpop.f32.mrb[0].mxu0
        %v2971 = vadd.f32 0.0, %v2970
        %v2972 = vpop.f32.mrb[0].mxu0
        %v2973 = vpop.f32.mrb[0].mxu0
        %v2974 = vpop.f32.mrb[0].mxu0
        %2975 = vdwg.mxu0
        %v2976 = vadd.f32 %v2889, %v2971
        %v2977 = vmax.f32 %v2976, 0.0
        %v2978 = vpack.c.bf16 %v2977, %v2977
        %v2979 = vld [vmem:[%s11] sm:$0xf]
        %v2980 = vld [vmem:[%s11 + $0x4] sm:$0xf]
        %v2981 = vld [vmem:[%s11 + $0x8] sm:$0xf]
        %v2982 = vld [vmem:[%s11 + $0xc] sm:$0xf]
        %v2983 = vld [vmem:[%s11 + $0x10] sm:$0xf]
        %v2984 = vld [vmem:[%s11 + $0x14] sm:$0xf]
        %v2985 = vld [vmem:[%s11 + $0x18] sm:$0xf]
        %v2986 = vld [vmem:[%s11 + $0x1c] sm:$0xf]
        %v2987 = vld [vmem:[%s11 + $0x20] sm:$0xf]
        %v2988 = vld [vmem:[%s11 + $0x24] sm:$0xf]
        %v2989 = vld [vmem:[%s11 + $0x28] sm:$0xf]
        %v2990 = vld [vmem:[%s11 + $0x2c] sm:$0xf]
        %v2991 = vld [vmem:[%s11 + $0x30] sm:$0xf]
        %v2992 = vld [vmem:[%s11 + $0x34] sm:$0xf]
        %v2993 = vld [vmem:[%s11 + $0x38] sm:$0xf]
        %v2994 = vld [vmem:[%s12] sm:$0x1]
        %v3010 = vunpack.c.l.b16 %v2979
        %v3011 = vunpack.c.l.b16 %v2980
        %v3012 = vunpack.c.l.b16 %v2981
        %v3013 = vunpack.c.l.b16 %v2982
        %v3014 = vunpack.c.l.b16 %v2983
        %v3015 = vunpack.c.l.b16 %v2984
        %v3016 = vunpack.c.l.b16 %v2985
        %v3017 = vunpack.c.l.b16 %v2986
        %v3018 = vunpack.c.l.b16 %v2987
        %v3019 = vunpack.c.l.b16 %v2988
        %v3020 = vunpack.c.l.b16 %v2989
        %v3021 = vunpack.c.l.b16 %v2990
        %v3022 = vunpack.c.l.b16 %v2991
        %v3023 = vunpack.c.l.b16 %v2992
        %v3024 = vunpack.c.l.b16 %v2993
        %v3025 = vpack.c.b16 %v3011, %v3010
        %v3026 = vpack.c.b16 %v3013, %v3012
        %v3027 = vpack.c.b16 %v3015, %v3014
        %v3028 = vpack.c.b16 %v3017, %v3016
        %v3029 = vpack.c.b16 %v3019, %v3018
        %v3030 = vpack.c.b16 %v3021, %v3020
        %v3031 = vpack.c.b16 %v3023, %v3022
        %v3032 = vpack.c.b16 %v3024, %v3024
        %vm3040 = vcmask 982016
        %v3042 = vsel %vm3040, %v2978, 0
        %v3045 = vsel %vm1272, %v3032, 0
        %3047 = vmatprep.subr.bf16.mxu0 0
        %3048 = vmatpush1.bf16.msra.mxu0 %v3025
        %3049 = vmatprep.subr.bf16.mxu0 0
        %3050 = vmatpush1.bf16.msra.mxu0 %v3026
        %3051 = vmatprep.subr.bf16.mxu0 0
        %3052 = vmatpush1.bf16.msra.mxu0 %v3027
        %3053 = vmatprep.subr.bf16.mxu0 0
        %3054 = vmatpush1.bf16.msra.mxu0 %v3028
        %3055 = vmatprep.subr.bf16.mxu0 0
        %3056 = vmatpush1.bf16.msra.mxu0 %v3029
        %3057 = vmatprep.subr.bf16.mxu0 0
        %3058 = vmatpush1.bf16.msra.mxu0 %v3030
        %3059 = vmatprep.subr.bf16.mxu0 0
        %3060 = vmatpush1.bf16.msra.mxu0 %v3031
        %3061 = vmatprep.subr.bf16.mxu0 0
        %3062 = vmatpush1.bf16.msra.mxu0 %v3045
        %3063 = vmatprep.subr.bf16.mxu0 0
        %3064 = vmatpush1.bf16.msra.mxu0 0
        %3065 = vmatprep.subr.bf16.mxu0 0
        %3066 = vmatpush1.bf16.msra.mxu0 0
        %3067 = vmatprep.subr.bf16.mxu0 0
        %3068 = vmatpush1.bf16.msra.mxu0 0
        %3069 = vmatprep.subr.bf16.mxu0 0
        %3070 = vmatpush1.bf16.msra.mxu0 0
        %3071 = vmatprep.subr.bf16.mxu0 0
        %3072 = vmatpush1.bf16.msra.mxu0 0
        %3073 = vmatprep.subr.bf16.mxu0 0
        %3074 = vmatpush1.bf16.msra.mxu0 0
        %3075 = vmatprep.subr.bf16.mxu0 0
        %3076 = vmatpush1.bf16.msra.mxu0 0
        %3077 = vmatprep.subr.bf16.mxu0 0
        %3078 = vmatpush1.bf16.msra.mxu0 0
        %3079 = vmatprep.mubr.bf16.mxu0 0
        %3080 = vmatmul.mubr.bf16.gmra.mrb[0].mxu0 %v3042
        %v3081 = vpop.f32.mrb[0].mxu0
        %v3082 = vadd.f32 %v2994, %v3081
        %v3083 = vpop.f32.mrb[0].mxu0
        %v3084 = vpop.f32.mrb[0].mxu0
        %v3085 = vpop.f32.mrb[0].mxu0
        %3086 = vdwg.mxu0
        %v3087 = vmax.f32 %v3082, 0.0
        %v3088 = vpack.c.bf16 %v3087, %v3087
        %v3089 = vld [vmem:[%s13] sm:$0xf]
        %v3090 = vld [vmem:[%s13 + $0x4] sm:$0xf]
        %v3091 = vld [vmem:[%s13 + $0x8] sm:$0xf]
        %v3092 = vld [vmem:[%s13 + $0xc] sm:$0xf]
        %v3093 = vld [vmem:[%s13 + $0x10] sm:$0xf]
        %v3094 = vld [vmem:[%s13 + $0x14] sm:$0xf]
        %v3095 = vld [vmem:[%s13 + $0x18] sm:$0xf]
        %v3096 = vld [vmem:[%s13 + $0x1c] sm:$0xf]
        %v3097 = vld [vmem:[%s13 + $0x20] sm:$0xf]
        %v3098 = vld [vmem:[%s13 + $0x24] sm:$0xf]
        %v3099 = vld [vmem:[%s13 + $0x28] sm:$0x3]
        %v3100 = vld [vmem:[%s14] sm:$0x1]
        %v3112 = vunpack.c.l.b16 %v3089
        %v3113 = vunpack.c.l.b16 %v3090
        %v3114 = vunpack.c.l.b16 %v3091
        %v3115 = vunpack.c.l.b16 %v3092
        %v3116 = vunpack.c.l.b16 %v3093
        %v3117 = vunpack.c.l.b16 %v3094
        %v3118 = vunpack.c.l.b16 %v3095
        %v3119 = vunpack.c.l.b16 %v3096
        %v3120 = vunpack.c.l.b16 %v3097
        %v3121 = vunpack.c.l.b16 %v3098
        %v3122 = vunpack.c.l.b16 %v3099
        %v3123 = vpack.c.b16 %v3113, %v3112
        %v3124 = vpack.c.b16 %v3115, %v3114
        %v3125 = vpack.c.b16 %v3117, %v3116
        %v3126 = vpack.c.b16 %v3119, %v3118
        %v3127 = vpack.c.b16 %v3121, %v3120
        %v3128 = vpack.c.b16 %v3122, %v3122
        %v3135 = vsel %vm1437, %v3088, 0
        %v3138 = vsel %vm1517, %v3128, 0
        %3140 = vmatprep.subr.bf16.mxu0 0
        %3141 = vmatpush1.bf16.msra.mxu0 %v3123
        %3142 = vmatprep.subr.bf16.mxu0 0
        %3143 = vmatpush1.bf16.msra.mxu0 %v3124
        %3144 = vmatprep.subr.bf16.mxu0 0
        %3145 = vmatpush1.bf16.msra.mxu0 %v3125
        %3146 = vmatprep.subr.bf16.mxu0 0
        %3147 = vmatpush1.bf16.msra.mxu0 %v3126
        %3148 = vmatprep.subr.bf16.mxu0 0
        %3149 = vmatpush1.bf16.msra.mxu0 %v3127
        %3150 = vmatprep.subr.bf16.mxu0 0
        %3151 = vmatpush1.bf16.msra.mxu0 %v3138
        %3152 = vmatprep.subr.bf16.mxu0 0
        %3153 = vmatpush1.bf16.msra.mxu0 0
        %3154 = vmatprep.subr.bf16.mxu0 0
        %3155 = vmatpush1.bf16.msra.mxu0 0
        %3156 = vmatprep.subr.bf16.mxu0 0
        %3157 = vmatpush1.bf16.msra.mxu0 0
        %3158 = vmatprep.subr.bf16.mxu0 0
        %3159 = vmatpush1.bf16.msra.mxu0 0
        %3160 = vmatprep.subr.bf16.mxu0 0
        %3161 = vmatpush1.bf16.msra.mxu0 0
        %3162 = vmatprep.subr.bf16.mxu0 0
        %3163 = vmatpush1.bf16.msra.mxu0 0
        %3164 = vmatprep.subr.bf16.mxu0 0
        %3165 = vmatpush1.bf16.msra.mxu0 0
        %3166 = vmatprep.subr.bf16.mxu0 0
        %3167 = vmatpush1.bf16.msra.mxu0 0
        %3168 = vmatprep.subr.bf16.mxu0 0
        %3169 = vmatpush1.bf16.msra.mxu0 0
        %3170 = vmatprep.subr.bf16.mxu0 0
        %3171 = vmatpush1.bf16.msra.mxu0 0
        %3172 = vmatprep.mubr.bf16.mxu0 0
        %3173 = vmatmul.mubr.bf16.gmra.mrb[0].mxu0 %v3135
        %v3174 = vpop.f32.mrb[0].mxu0
        %v3175 = vadd.f32 %v3100, %v3174
        %v3176 = vpop.f32.mrb[0].mxu0
        %v3177 = vpop.f32.mrb[0].mxu0
        %v3178 = vpop.f32.mrb[0].mxu0
        %3179 = vdwg.mxu0
        %vm3180 = vcmask 73728
        %3181 = vst.msk [vmem:[%s486] sm:$0x1] %vm3180, %v3175
        %s3182 = sand.u32 %s357, 1
        %s3183 = scalar_lea.sflag [#allocation6], %s3182
        %s3184 = sand.u32 %s357, 1
        %s3185 = scalar_lea.vmem [#allocation5], %s3184
        // Predicated region
        $region81: #{lenet_forward.1} parent=79 // pred_check
          %p3186 = pneg %p367
        $region82: #{lenet_forward.1} parent=79 // pred_check_branch
          %3188 = sbr.rel (%p3186) target = $region84
        $region83: #{lenet_forward.1} parent=79 // pred_region
          %s3190 = ssub.s32 16, 16
          %3191 = vsyncadd %s3183, %s3190
          %s3192 = smul.addr %s29, 16
          %s3193 = scalar_lea.hbm %s15, %s3192
          %s3195 = sshll.u32 %s3185, 4
          %s3196 = int_to_ptr.vmem [resolvable:$true] %s3195
          %3198 = dma.vmem_to_hbm [thread:$0]  %s3196, 16, %s3193, %s3183
        $region84: #{lenet_forward.1} parent=79 // pred_fallthru
          _
      $region80: #{lenet_forward.1} parent=5 // pred_fallthru
        _
      %p3199 = scmp.le.s32.totalorder 2, %s24
      // Predicated region
      $region85: #{lenet_forward.1} parent=5 // pred_check
        %p3200 = pneg %p3199
      $region86: #{lenet_forward.1} parent=5 // pred_check_branch
        %3202 = sbr.rel (%p3200) target = $region88
      $region87: #{lenet_forward.1} parent=5 // pred_region
        %s3203 = ssub.s32 %s24, 2
        // Predicated region
        $region89: #{lenet_forward.1} parent=87 // pred_check
          %p3204 = pneg %p373
        $region90: #{lenet_forward.1} parent=87 // pred_check_branch
          %3206 = sbr.rel (%p3204) target = $region92
        $region91: #{lenet_forward.1} parent=87 // pred_region
          %s3207 = sand.u32 %s358, 1
          %s3208 = scalar_lea.sflag [#allocation6], %s3207
          %s3209 = sand.u32 %s358, 1
          %s3210 = scalar_lea.vmem [#allocation5], %s3209
          %3211 = dma.done %s3208, 16
        $region92: #{lenet_forward.1} parent=87 // pred_fallthru
          _
      $region88: #{lenet_forward.1} parent=5 // pred_fallthru
        _
    $region6: #{lenet_forward.1} parent=1 // loop_footer
      %s28 = sadd.s32 1, %s24
    $region7: #{lenet_forward.1} parent=1 // loop_footer_branch
      %23 = sbr.rel target = $region3
    $region8: #{lenet_forward.1} parent=1 // loop_exit
      _
    %3212 = vsyncpa [#allocation6], 1
    %s3213 = scalar_lea.sflag [#allocation6], 1
    %3214 = vsyncpa %s3213, 1

</llo_original>
